<compile_context>
chip_gen: v6e
topology: v6e:2x2x1
jax: 0.10.0
libtpu: 0.0.40
codegen_flags: <defaults>
</compile_context>

<pallas_src>
import functools

import jax
import jax.numpy as jnp
import numpy as np
from jax.experimental import pallas as pl
from jax.experimental.pallas import tpu as pltpu


def _tile_sum(a):
    """(rows, lanes) -> (1, 1), staying 2-D (lane reduce, then sublane reduce)."""
    return jnp.sum(jnp.sum(a, axis=1, keepdims=True), axis=0, keepdims=True)


def _conv_stats_kernel(x_ref, w_ref, b_ref, conv_ref, stats_ref, *, K):
    # x_ref:     (1, Cin, H, W)        full (unpadded) image for batch n  [VMEM]
    # w_ref:     (Cout*Cin*K*K,)       flattened conv weights             [SMEM]
    # b_ref:     (Cout,)               conv bias                          [SMEM]
    # conv_ref:  (1, Cout, th, W)      conv output tile (lane-dense NCHW)
    # stats_ref: (1, 1, Cout, 2)       per-tile [sum, sum_sq] per channel
    _, Cin, H, W = x_ref.shape
    _, Cout, th, _ = conv_ref.shape
    hb = pl.program_id(1)
    nh = pl.num_programs(1)
    r0 = pl.multiple_of(hb * th, th)

    # Rows for this tile plus a 1-row halo each side. Halo rows are loaded with a
    # clamped index and zeroed at the image border; zero columns give the W halo.
    # This implements padding=1 without any host-side jnp.pad of the activation.
    body = x_ref[0, :, pl.ds(r0, th), :].astype(jnp.float32)              # (Cin, th, W)
    top = x_ref[0, :, pl.ds(jnp.maximum(r0 - 1, 0), 1), :].astype(jnp.float32)
    bot = x_ref[0, :, pl.ds(jnp.minimum(r0 + th, H - 1), 1), :].astype(jnp.float32)
    top = top * (hb > 0).astype(jnp.float32)
    bot = bot * (hb < nh - 1).astype(jnp.float32)
    zcol = jnp.zeros((Cin, th + 2, 1), jnp.float32)
    xt = jnp.concatenate([top, body, bot], axis=1)                        # (Cin, th+2, W)
    xt = jnp.concatenate([zcol, xt, zcol], axis=2)                        # (Cin, th+2, W+2)

    # 3x3 conv as a VPU multiply-accumulate with W mapped to the lane dimension.
    # (Conv bias is mathematically cancelled by the train-mode BN mean
    #  subtraction, but it is free as the accumulator init, so keep exact parity.)
    acc = [jnp.zeros((th, W), jnp.float32) + b_ref[co] for co in range(Cout)]
    for ci in range(Cin):
        for ky in range(K):
            for kx in range(K):
                sh = xt[ci, ky:ky + th, kx:kx + W]                        # (th, W)
                for co in range(Cout):
                    w_s = w_ref[((co * Cin + ci) * K + ky) * K + kx]
                    acc[co] = acc[co] + w_s * sh

    for co in range(Cout):
        conv_ref[0, co] = acc[co]

    # Per-tile partial BatchNorm statistics (kept in f32).
    s = jnp.concatenate([_tile_sum(acc[co]) for co in range(Cout)], axis=0)           # (Cout, 1)
    ss = jnp.concatenate([_tile_sum(acc[co] * acc[co]) for co in range(Cout)], axis=0)
    stats_ref[0, 0] = jnp.concatenate([s, ss], axis=1)                                # (Cout, 2)


def _bn_relu_kernel(y_ref, scale_ref, shift_ref, o_ref):
    # y_ref/o_ref: (1, Cout, th, W); scale/shift: (Cout,) in SMEM.
    Cout = y_ref.shape[1]
    for co in range(Cout):
        y = y_ref[0, co].astype(jnp.float32) * scale_ref[co] + shift_ref[co]
        o_ref[0, co] = jnp.maximum(y, 0.0).astype(o_ref.dtype)


def _pick_tile_h(H):
    # Largest row block (multiple of 8, divides H) that still yields >= 2 blocks.
    # For very large images you would additionally cap this by the VMEM budget
    # (64 MiB physical on v7x vs 128 MiB on v5e/v6e).
    for t in (128, 64, 32, 16, 8):
        if H % t == 0 and H // t >= 2:
            return t
    return H


def conv_bn_relu(x_nchw, w_oihw, bias, gamma, beta, eps=1e-5):
    """Fused Conv2d(3x3, stride 1, pad 1) + BatchNorm2d(training) + ReLU.

    Args (PyTorch conventions):
      x_nchw: (N, Cin, H, W), w_oihw: (Cout, Cin, K, K), bias/gamma/beta: (Cout,)
    Returns: (N, Cout, H, W) float32 (NCHW, no layout shuffles needed).
    """
    N, Cin, H, W = x_nchw.shape
    Cout, Cin_w, KH, KW = w_oihw.shape
    assert Cin_w == Cin and KH == KW

    th = _pick_tile_h(H)
    nh = H // th
    grid = (N, nh)

    x = x_nchw.astype(jnp.float32)
    w_flat = w_oihw.astype(jnp.float32).reshape(-1)   # flat 1-D => cheap in SMEM
    b = bias.astype(jnp.float32)

    cparams = pltpu.CompilerParams(
        dimension_semantics=("parallel", "parallel"),
        vmem_limit_bytes=32 * 1024 * 1024,   # raise scoped VMEM (v5e default 16 MiB)
    )

    conv_out, stats = pl.pallas_call(
        functools.partial(_conv_stats_kernel, K=KH),
        grid=grid,
        in_specs=[
            pl.BlockSpec((1, Cin, H, W), lambda n, hb: (n, 0, 0, 0)),
            pl.BlockSpec(memory_space=pltpu.MemorySpace.SMEM),
            pl.BlockSpec(memory_space=pltpu.MemorySpace.SMEM),
        ],
        out_specs=(
            pl.BlockSpec((1, Cout, th, W), lambda n, hb: (n, 0, hb, 0)),
            pl.BlockSpec((1, 1, Cout, 2), lambda n, hb: (n, hb, 0, 0)),
        ),
        out_shape=(
            jax.ShapeDtypeStruct((N, Cout, H, W), jnp.float32),
            jax.ShapeDtypeStruct((N, nh, Cout, 2), jnp.float32),
        ),
        compiler_params=cparams,
        cost_estimate=pl.CostEstimate(
            flops=2 * N * H * W * KH * KW * Cin * Cout,
            transcendentals=0,
            bytes_accessed=4 * (x.size + w_flat.size + b.size + 2 * N * Cout * H * W),
        ),
    )(x, w_flat, b)

    # Global training-mode BatchNorm2d statistics (biased variance), in f32.
    count = float(N * H * W)
    tot = jnp.sum(stats, axis=(0, 1))                       # (Cout, 2)
    mean = tot[:, 0] / count
    var = jnp.maximum(tot[:, 1] / count - mean * mean, 0.0)  # guard fp cancellation
    inv_std = jax.lax.rsqrt(var + eps)
    scale = gamma.astype(jnp.float32) * inv_std
    shift = beta.astype(jnp.float32) - mean * scale

    out = pl.pallas_call(
        _bn_relu_kernel,
        grid=grid,
        in_specs=[
            pl.BlockSpec((1, Cout, th, W), lambda n, hb: (n, 0, hb, 0)),
            pl.BlockSpec(memory_space=pltpu.MemorySpace.SMEM),
            pl.BlockSpec(memory_space=pltpu.MemorySpace.SMEM),
        ],
        out_specs=pl.BlockSpec((1, Cout, th, W), lambda n, hb: (n, 0, hb, 0)),
        out_shape=jax.ShapeDtypeStruct((N, Cout, H, W), jnp.float32),
        compiler_params=cparams,
    )(conv_out, scale, shift)
    return out


def _reference(x_nchw, w_oihw, bias, gamma, beta, eps=1e-5):
    y = jax.lax.conv_general_dilated(
        x_nchw, w_oihw, window_strides=(1, 1), padding="SAME",
        dimension_numbers=("NCHW", "OIHW", "NCHW"),
        precision=jax.lax.Precision.HIGHEST)
    y = y + bias[None, :, None, None]
    mean = jnp.mean(y, axis=(0, 2, 3), keepdims=True)
    var = jnp.mean((y - mean) ** 2, axis=(0, 2, 3), keepdims=True)
    y = (y - mean) / jnp.sqrt(var + eps)
    y = y * gamma[None, :, None, None] + beta[None, :, None, None]
    return jnp.maximum(y, 0.0)


if __name__ == "__main__":
    # Small shapes consistent with the module: in_channels=4, out_channels=8.
    N, Cin, Cout, H, W, K = 2, 4, 8, 16, 16, 3

    key = jax.random.PRNGKey(0)
    k_x, k_w, k_b, k_g, k_be = jax.random.split(key, 5)

    x = jax.random.normal(k_x, (N, Cin, H, W), dtype=jnp.float32)
    fan_in = Cin * K * K
    w = jax.random.uniform(k_w, (Cout, Cin, K, K), dtype=jnp.float32,
                           minval=-1.0, maxval=1.0) / np.sqrt(fan_in)
    b = jax.random.uniform(k_b, (Cout,), dtype=jnp.float32,
                           minval=-1.0, maxval=1.0) / np.sqrt(fan_in)
    gamma = 1.0 + 0.1 * jax.random.normal(k_g, (Cout,), dtype=jnp.float32)
    beta = 0.1 * jax.random.normal(k_be, (Cout,), dtype=jnp.float32)

    out = jax.block_until_ready(conv_bn_relu(x, w, b, gamma, beta))
    ref = jax.block_until_ready(_reference(x, w, b, gamma, beta))
    np.testing.assert_allclose(np.asarray(out), np.asarray(ref),
                               rtol=1e-4, atol=1e-4)
    print("KERNEL_OK")
</pallas_src>

<mosaic_0001>
module attributes {stable_mosaic.version = 11 : i64} {
  func.func @_conv_stats_kernel(%arg0: i32, %arg1: i32, %arg2: memref<1x4x16x16xf32, #tpu.memory_space<vmem>>, %arg3: memref<288xf32, #tpu.memory_space<smem>>, %arg4: memref<8xf32, #tpu.memory_space<smem>>, %arg5: memref<1x8x8x16xf32, #tpu.memory_space<vmem>>, %arg6: memref<1x1x8x2xf32, #tpu.memory_space<vmem>>) attributes {dimension_semantics = [#tpu.dimension_semantics<parallel>, #tpu.dimension_semantics<parallel>], iteration_bounds = array<i64: 2, 2>, scalar_prefetch = 0 : i64, scratch_operands = 0 : i64, tpu.core_type = #tpu.core_type<tc>, window_params = [{transform_indices = @transform_0, window_bounds = array<i64: 1, 4, 16, 16>}, {transform_indices = @transform_1, window_bounds = array<i64: 288>}, {transform_indices = @transform_2, window_bounds = array<i64: 8>}, {transform_indices = @transform_3, window_bounds = array<i64: 1, 8, 8, 16>}, {transform_indices = @transform_4, window_bounds = array<i64: 1, 1, 8, 2>}]} {
    %c8_i32 = arith.constant 8 : i32
    %0 = arith.muli %arg1, %c8_i32 : i32
    %1 = tpu.assume_multiple %0, 8 : i32
    %c0 = arith.constant 0 : index
    %c0_0 = arith.constant 0 : index
    %2 = arith.index_cast %1 : i32 to index
    %c0_1 = arith.constant 0 : index
    %3 = vector.load %arg2[%c0, %c0_0, %2, %c0_1] : memref<1x4x16x16xf32, #tpu.memory_space<vmem>>, vector<1x4x8x16xf32>
    %4 = vector.shape_cast %3 : vector<1x4x8x16xf32> to vector<4x8x16xf32>
    %c1_i32 = arith.constant 1 : i32
    %5 = arith.subi %1, %c1_i32 : i32
    %c0_i32 = arith.constant 0 : i32
    %6 = arith.maxsi %5, %c0_i32 : i32
    %c0_2 = arith.constant 0 : index
    %c0_3 = arith.constant 0 : index
    %7 = arith.index_cast %6 : i32 to index
    %c0_4 = arith.constant 0 : index
    %8 = vector.load %arg2[%c0_2, %c0_3, %7, %c0_4] : memref<1x4x16x16xf32, #tpu.memory_space<vmem>>, vector<1x4x1x16xf32>
    %9 = vector.shape_cast %8 : vector<1x4x1x16xf32> to vector<4x1x16xf32>
    %c8_i32_5 = arith.constant 8 : i32
    %10 = arith.addi %1, %c8_i32_5 : i32
    %c15_i32 = arith.constant 15 : i32
    %11 = arith.minsi %10, %c15_i32 : i32
    %c0_6 = arith.constant 0 : index
    %c0_7 = arith.constant 0 : index
    %12 = arith.index_cast %11 : i32 to index
    %c0_8 = arith.constant 0 : index
    %13 = vector.load %arg2[%c0_6, %c0_7, %12, %c0_8] : memref<1x4x16x16xf32, #tpu.memory_space<vmem>>, vector<1x4x1x16xf32>
    %14 = vector.shape_cast %13 : vector<1x4x1x16xf32> to vector<4x1x16xf32>
    %c0_i32_9 = arith.constant 0 : i32
    %15 = arith.cmpi sgt, %arg1, %c0_i32_9 : i32
    %16 = arith.extui %15 : i1 to i32
    %17 = arith.sitofp %16 : i32 to f32
    %18 = vector.broadcast %17 : f32 to vector<4x1x16xf32>
    %19 = arith.mulf %9, %18 : vector<4x1x16xf32>
    %c1_i32_10 = arith.constant 1 : i32
    %20 = arith.cmpi slt, %arg1, %c1_i32_10 : i32
    %21 = arith.extui %20 : i1 to i32
    %22 = arith.sitofp %21 : i32 to f32
    %23 = vector.broadcast %22 : f32 to vector<4x1x16xf32>
    %24 = arith.mulf %14, %23 : vector<4x1x16xf32>
    %cst = arith.constant 0.000000e+00 : f32
    %25 = vector.broadcast %cst : f32 to vector<4x10x1xf32>
    %26 = tpu.concatenate %19, %4, %24 in 1 : vector<4x1x16xf32>, vector<4x8x16xf32>, vector<4x1x16xf32> -> vector<4x10x16xf32>
    %27 = tpu.concatenate %25, %26, %25 in 2 : vector<4x10x1xf32>, vector<4x10x16xf32>, vector<4x10x1xf32> -> vector<4x10x18xf32>
    %cst_11 = arith.constant 0.000000e+00 : f32
    %28 = vector.broadcast %cst_11 : f32 to vector<8x16xf32>
    %c0_12 = arith.constant 0 : index
    %29 = memref.load %arg4[%c0_12] : memref<8xf32, #tpu.memory_space<smem>>
    %30 = vector.broadcast %29 : f32 to vector<8x16xf32>
    %31 = arith.addf %28, %30 : vector<8x16xf32>
    %cst_13 = arith.constant 0.000000e+00 : f32
    %32 = vector.broadcast %cst_13 : f32 to vector<8x16xf32>
    %c1 = arith.constant 1 : index
    %33 = memref.load %arg4[%c1] : memref<8xf32, #tpu.memory_space<smem>>
    %34 = vector.broadcast %33 : f32 to vector<8x16xf32>
    %35 = arith.addf %32, %34 : vector<8x16xf32>
    %cst_14 = arith.constant 0.000000e+00 : f32
    %36 = vector.broadcast %cst_14 : f32 to vector<8x16xf32>
    %c2 = arith.constant 2 : index
    %37 = memref.load %arg4[%c2] : memref<8xf32, #tpu.memory_space<smem>>
    %38 = vector.broadcast %37 : f32 to vector<8x16xf32>
    %39 = arith.addf %36, %38 : vector<8x16xf32>
    %cst_15 = arith.constant 0.000000e+00 : f32
    %40 = vector.broadcast %cst_15 : f32 to vector<8x16xf32>
    %c3 = arith.constant 3 : index
    %41 = memref.load %arg4[%c3] : memref<8xf32, #tpu.memory_space<smem>>
    %42 = vector.broadcast %41 : f32 to vector<8x16xf32>
    %43 = arith.addf %40, %42 : vector<8x16xf32>
    %cst_16 = arith.constant 0.000000e+00 : f32
    %44 = vector.broadcast %cst_16 : f32 to vector<8x16xf32>
    %c4 = arith.constant 4 : index
    %45 = memref.load %arg4[%c4] : memref<8xf32, #tpu.memory_space<smem>>
    %46 = vector.broadcast %45 : f32 to vector<8x16xf32>
    %47 = arith.addf %44, %46 : vector<8x16xf32>
    %cst_17 = arith.constant 0.000000e+00 : f32
    %48 = vector.broadcast %cst_17 : f32 to vector<8x16xf32>
    %c5 = arith.constant 5 : index
    %49 = memref.load %arg4[%c5] : memref<8xf32, #tpu.memory_space<smem>>
    %50 = vector.broadcast %49 : f32 to vector<8x16xf32>
    %51 = arith.addf %48, %50 : vector<8x16xf32>
    %cst_18 = arith.constant 0.000000e+00 : f32
    %52 = vector.broadcast %cst_18 : f32 to vector<8x16xf32>
    %c6 = arith.constant 6 : index
    %53 = memref.load %arg4[%c6] : memref<8xf32, #tpu.memory_space<smem>>
    %54 = vector.broadcast %53 : f32 to vector<8x16xf32>
    %55 = arith.addf %52, %54 : vector<8x16xf32>
    %cst_19 = arith.constant 0.000000e+00 : f32
    %56 = vector.broadcast %cst_19 : f32 to vector<8x16xf32>
    %c7 = arith.constant 7 : index
    %57 = memref.load %arg4[%c7] : memref<8xf32, #tpu.memory_space<smem>>
    %58 = vector.broadcast %57 : f32 to vector<8x16xf32>
    %59 = arith.addf %56, %58 : vector<8x16xf32>
    %60 = vector.extract_strided_slice %27 {offsets = [0, 0, 0], sizes = [1, 8, 16], strides = [1, 1, 1]} : vector<4x10x18xf32> to vector<1x8x16xf32>
    %61 = vector.shape_cast %60 : vector<1x8x16xf32> to vector<8x16xf32>
    %c0_20 = arith.constant 0 : index
    %62 = memref.load %arg3[%c0_20] : memref<288xf32, #tpu.memory_space<smem>>
    %63 = vector.broadcast %62 : f32 to vector<8x16xf32>
    %64 = arith.mulf %63, %61 : vector<8x16xf32>
    %65 = arith.addf %31, %64 : vector<8x16xf32>
    %c36 = arith.constant 36 : index
    %66 = memref.load %arg3[%c36] : memref<288xf32, #tpu.memory_space<smem>>
    %67 = vector.broadcast %66 : f32 to vector<8x16xf32>
    %68 = arith.mulf %67, %61 : vector<8x16xf32>
    %69 = arith.addf %35, %68 : vector<8x16xf32>
    %c72 = arith.constant 72 : index
    %70 = memref.load %arg3[%c72] : memref<288xf32, #tpu.memory_space<smem>>
    %71 = vector.broadcast %70 : f32 to vector<8x16xf32>
    %72 = arith.mulf %71, %61 : vector<8x16xf32>
    %73 = arith.addf %39, %72 : vector<8x16xf32>
    %c108 = arith.constant 108 : index
    %74 = memref.load %arg3[%c108] : memref<288xf32, #tpu.memory_space<smem>>
    %75 = vector.broadcast %74 : f32 to vector<8x16xf32>
    %76 = arith.mulf %75, %61 : vector<8x16xf32>
    %77 = arith.addf %43, %76 : vector<8x16xf32>
    %c144 = arith.constant 144 : index
    %78 = memref.load %arg3[%c144] : memref<288xf32, #tpu.memory_space<smem>>
    %79 = vector.broadcast %78 : f32 to vector<8x16xf32>
    %80 = arith.mulf %79, %61 : vector<8x16xf32>
    %81 = arith.addf %47, %80 : vector<8x16xf32>
    %c180 = arith.constant 180 : index
    %82 = memref.load %arg3[%c180] : memref<288xf32, #tpu.memory_space<smem>>
    %83 = vector.broadcast %82 : f32 to vector<8x16xf32>
    %84 = arith.mulf %83, %61 : vector<8x16xf32>
    %85 = arith.addf %51, %84 : vector<8x16xf32>
    %c216 = arith.constant 216 : index
    %86 = memref.load %arg3[%c216] : memref<288xf32, #tpu.memory_space<smem>>
    %87 = vector.broadcast %86 : f32 to vector<8x16xf32>
    %88 = arith.mulf %87, %61 : vector<8x16xf32>
    %89 = arith.addf %55, %88 : vector<8x16xf32>
    %c252 = arith.constant 252 : index
    %90 = memref.load %arg3[%c252] : memref<288xf32, #tpu.memory_space<smem>>
    %91 = vector.broadcast %90 : f32 to vector<8x16xf32>
    %92 = arith.mulf %91, %61 : vector<8x16xf32>
    %93 = arith.addf %59, %92 : vector<8x16xf32>
    %94 = vector.extract_strided_slice %27 {offsets = [0, 0, 1], sizes = [1, 8, 16], strides = [1, 1, 1]} : vector<4x10x18xf32> to vector<1x8x16xf32>
    %95 = vector.shape_cast %94 : vector<1x8x16xf32> to vector<8x16xf32>
    %c1_21 = arith.constant 1 : index
    %96 = memref.load %arg3[%c1_21] : memref<288xf32, #tpu.memory_space<smem>>
    %97 = vector.broadcast %96 : f32 to vector<8x16xf32>
    %98 = arith.mulf %97, %95 : vector<8x16xf32>
    %99 = arith.addf %65, %98 : vector<8x16xf32>
    %c37 = arith.constant 37 : index
    %100 = memref.load %arg3[%c37] : memref<288xf32, #tpu.memory_space<smem>>
    %101 = vector.broadcast %100 : f32 to vector<8x16xf32>
    %102 = arith.mulf %101, %95 : vector<8x16xf32>
    %103 = arith.addf %69, %102 : vector<8x16xf32>
    %c73 = arith.constant 73 : index
    %104 = memref.load %arg3[%c73] : memref<288xf32, #tpu.memory_space<smem>>
    %105 = vector.broadcast %104 : f32 to vector<8x16xf32>
    %106 = arith.mulf %105, %95 : vector<8x16xf32>
    %107 = arith.addf %73, %106 : vector<8x16xf32>
    %c109 = arith.constant 109 : index
    %108 = memref.load %arg3[%c109] : memref<288xf32, #tpu.memory_space<smem>>
    %109 = vector.broadcast %108 : f32 to vector<8x16xf32>
    %110 = arith.mulf %109, %95 : vector<8x16xf32>
    %111 = arith.addf %77, %110 : vector<8x16xf32>
    %c145 = arith.constant 145 : index
    %112 = memref.load %arg3[%c145] : memref<288xf32, #tpu.memory_space<smem>>
    %113 = vector.broadcast %112 : f32 to vector<8x16xf32>
    %114 = arith.mulf %113, %95 : vector<8x16xf32>
    %115 = arith.addf %81, %114 : vector<8x16xf32>
    %c181 = arith.constant 181 : index
    %116 = memref.load %arg3[%c181] : memref<288xf32, #tpu.memory_space<smem>>
    %117 = vector.broadcast %116 : f32 to vector<8x16xf32>
    %118 = arith.mulf %117, %95 : vector<8x16xf32>
    %119 = arith.addf %85, %118 : vector<8x16xf32>
    %c217 = arith.constant 217 : index
    %120 = memref.load %arg3[%c217] : memref<288xf32, #tpu.memory_space<smem>>
    %121 = vector.broadcast %120 : f32 to vector<8x16xf32>
    %122 = arith.mulf %121, %95 : vector<8x16xf32>
    %123 = arith.addf %89, %122 : vector<8x16xf32>
    %c253 = arith.constant 253 : index
    %124 = memref.load %arg3[%c253] : memref<288xf32, #tpu.memory_space<smem>>
    %125 = vector.broadcast %124 : f32 to vector<8x16xf32>
    %126 = arith.mulf %125, %95 : vector<8x16xf32>
    %127 = arith.addf %93, %126 : vector<8x16xf32>
    %128 = vector.extract_strided_slice %27 {offsets = [0, 0, 2], sizes = [1, 8, 16], strides = [1, 1, 1]} : vector<4x10x18xf32> to vector<1x8x16xf32>
    %129 = vector.shape_cast %128 : vector<1x8x16xf32> to vector<8x16xf32>
    %c2_22 = arith.constant 2 : index
    %130 = memref.load %arg3[%c2_22] : memref<288xf32, #tpu.memory_space<smem>>
    %131 = vector.broadcast %130 : f32 to vector<8x16xf32>
    %132 = arith.mulf %131, %129 : vector<8x16xf32>
    %133 = arith.addf %99, %132 : vector<8x16xf32>
    %c38 = arith.constant 38 : index
    %134 = memref.load %arg3[%c38] : memref<288xf32, #tpu.memory_space<smem>>
    %135 = vector.broadcast %134 : f32 to vector<8x16xf32>
    %136 = arith.mulf %135, %129 : vector<8x16xf32>
    %137 = arith.addf %103, %136 : vector<8x16xf32>
    %c74 = arith.constant 74 : index
    %138 = memref.load %arg3[%c74] : memref<288xf32, #tpu.memory_space<smem>>
    %139 = vector.broadcast %138 : f32 to vector<8x16xf32>
    %140 = arith.mulf %139, %129 : vector<8x16xf32>
    %141 = arith.addf %107, %140 : vector<8x16xf32>
    %c110 = arith.constant 110 : index
    %142 = memref.load %arg3[%c110] : memref<288xf32, #tpu.memory_space<smem>>
    %143 = vector.broadcast %142 : f32 to vector<8x16xf32>
    %144 = arith.mulf %143, %129 : vector<8x16xf32>
    %145 = arith.addf %111, %144 : vector<8x16xf32>
    %c146 = arith.constant 146 : index
    %146 = memref.load %arg3[%c146] : memref<288xf32, #tpu.memory_space<smem>>
    %147 = vector.broadcast %146 : f32 to vector<8x16xf32>
    %148 = arith.mulf %147, %129 : vector<8x16xf32>
    %149 = arith.addf %115, %148 : vector<8x16xf32>
    %c182 = arith.constant 182 : index
    %150 = memref.load %arg3[%c182] : memref<288xf32, #tpu.memory_space<smem>>
    %151 = vector.broadcast %150 : f32 to vector<8x16xf32>
    %152 = arith.mulf %151, %129 : vector<8x16xf32>
    %153 = arith.addf %119, %152 : vector<8x16xf32>
    %c218 = arith.constant 218 : index
    %154 = memref.load %arg3[%c218] : memref<288xf32, #tpu.memory_space<smem>>
    %155 = vector.broadcast %154 : f32 to vector<8x16xf32>
    %156 = arith.mulf %155, %129 : vector<8x16xf32>
    %157 = arith.addf %123, %156 : vector<8x16xf32>
    %c254 = arith.constant 254 : index
    %158 = memref.load %arg3[%c254] : memref<288xf32, #tpu.memory_space<smem>>
    %159 = vector.broadcast %158 : f32 to vector<8x16xf32>
    %160 = arith.mulf %159, %129 : vector<8x16xf32>
    %161 = arith.addf %127, %160 : vector<8x16xf32>
    %162 = vector.extract_strided_slice %27 {offsets = [0, 1, 0], sizes = [1, 8, 16], strides = [1, 1, 1]} : vector<4x10x18xf32> to vector<1x8x16xf32>
    %163 = vector.shape_cast %162 : vector<1x8x16xf32> to vector<8x16xf32>
    %c3_23 = arith.constant 3 : index
    %164 = memref.load %arg3[%c3_23] : memref<288xf32, #tpu.memory_space<smem>>
    %165 = vector.broadcast %164 : f32 to vector<8x16xf32>
    %166 = arith.mulf %165, %163 : vector<8x16xf32>
    %167 = arith.addf %133, %166 : vector<8x16xf32>
    %c39 = arith.constant 39 : index
    %168 = memref.load %arg3[%c39] : memref<288xf32, #tpu.memory_space<smem>>
    %169 = vector.broadcast %168 : f32 to vector<8x16xf32>
    %170 = arith.mulf %169, %163 : vector<8x16xf32>
    %171 = arith.addf %137, %170 : vector<8x16xf32>
    %c75 = arith.constant 75 : index
    %172 = memref.load %arg3[%c75] : memref<288xf32, #tpu.memory_space<smem>>
    %173 = vector.broadcast %172 : f32 to vector<8x16xf32>
    %174 = arith.mulf %173, %163 : vector<8x16xf32>
    %175 = arith.addf %141, %174 : vector<8x16xf32>
    %c111 = arith.constant 111 : index
    %176 = memref.load %arg3[%c111] : memref<288xf32, #tpu.memory_space<smem>>
    %177 = vector.broadcast %176 : f32 to vector<8x16xf32>
    %178 = arith.mulf %177, %163 : vector<8x16xf32>
    %179 = arith.addf %145, %178 : vector<8x16xf32>
    %c147 = arith.constant 147 : index
    %180 = memref.load %arg3[%c147] : memref<288xf32, #tpu.memory_space<smem>>
    %181 = vector.broadcast %180 : f32 to vector<8x16xf32>
    %182 = arith.mulf %181, %163 : vector<8x16xf32>
    %183 = arith.addf %149, %182 : vector<8x16xf32>
    %c183 = arith.constant 183 : index
    %184 = memref.load %arg3[%c183] : memref<288xf32, #tpu.memory_space<smem>>
    %185 = vector.broadcast %184 : f32 to vector<8x16xf32>
    %186 = arith.mulf %185, %163 : vector<8x16xf32>
    %187 = arith.addf %153, %186 : vector<8x16xf32>
    %c219 = arith.constant 219 : index
    %188 = memref.load %arg3[%c219] : memref<288xf32, #tpu.memory_space<smem>>
    %189 = vector.broadcast %188 : f32 to vector<8x16xf32>
    %190 = arith.mulf %189, %163 : vector<8x16xf32>
    %191 = arith.addf %157, %190 : vector<8x16xf32>
    %c255 = arith.constant 255 : index
    %192 = memref.load %arg3[%c255] : memref<288xf32, #tpu.memory_space<smem>>
    %193 = vector.broadcast %192 : f32 to vector<8x16xf32>
    %194 = arith.mulf %193, %163 : vector<8x16xf32>
    %195 = arith.addf %161, %194 : vector<8x16xf32>
    %196 = vector.extract_strided_slice %27 {offsets = [0, 1, 1], sizes = [1, 8, 16], strides = [1, 1, 1]} : vector<4x10x18xf32> to vector<1x8x16xf32>
    %197 = vector.shape_cast %196 : vector<1x8x16xf32> to vector<8x16xf32>
    %c4_24 = arith.constant 4 : index
    %198 = memref.load %arg3[%c4_24] : memref<288xf32, #tpu.memory_space<smem>>
    %199 = vector.broadcast %198 : f32 to vector<8x16xf32>
    %200 = arith.mulf %199, %197 : vector<8x16xf32>
    %201 = arith.addf %167, %200 : vector<8x16xf32>
    %c40 = arith.constant 40 : index
    %202 = memref.load %arg3[%c40] : memref<288xf32, #tpu.memory_space<smem>>
    %203 = vector.broadcast %202 : f32 to vector<8x16xf32>
    %204 = arith.mulf %203, %197 : vector<8x16xf32>
    %205 = arith.addf %171, %204 : vector<8x16xf32>
    %c76 = arith.constant 76 : index
    %206 = memref.load %arg3[%c76] : memref<288xf32, #tpu.memory_space<smem>>
    %207 = vector.broadcast %206 : f32 to vector<8x16xf32>
    %208 = arith.mulf %207, %197 : vector<8x16xf32>
    %209 = arith.addf %175, %208 : vector<8x16xf32>
    %c112 = arith.constant 112 : index
    %210 = memref.load %arg3[%c112] : memref<288xf32, #tpu.memory_space<smem>>
    %211 = vector.broadcast %210 : f32 to vector<8x16xf32>
    %212 = arith.mulf %211, %197 : vector<8x16xf32>
    %213 = arith.addf %179, %212 : vector<8x16xf32>
    %c148 = arith.constant 148 : index
    %214 = memref.load %arg3[%c148] : memref<288xf32, #tpu.memory_space<smem>>
    %215 = vector.broadcast %214 : f32 to vector<8x16xf32>
    %216 = arith.mulf %215, %197 : vector<8x16xf32>
    %217 = arith.addf %183, %216 : vector<8x16xf32>
    %c184 = arith.constant 184 : index
    %218 = memref.load %arg3[%c184] : memref<288xf32, #tpu.memory_space<smem>>
    %219 = vector.broadcast %218 : f32 to vector<8x16xf32>
    %220 = arith.mulf %219, %197 : vector<8x16xf32>
    %221 = arith.addf %187, %220 : vector<8x16xf32>
    %c220 = arith.constant 220 : index
    %222 = memref.load %arg3[%c220] : memref<288xf32, #tpu.memory_space<smem>>
    %223 = vector.broadcast %222 : f32 to vector<8x16xf32>
    %224 = arith.mulf %223, %197 : vector<8x16xf32>
    %225 = arith.addf %191, %224 : vector<8x16xf32>
    %c256 = arith.constant 256 : index
    %226 = memref.load %arg3[%c256] : memref<288xf32, #tpu.memory_space<smem>>
    %227 = vector.broadcast %226 : f32 to vector<8x16xf32>
    %228 = arith.mulf %227, %197 : vector<8x16xf32>
    %229 = arith.addf %195, %228 : vector<8x16xf32>
    %230 = vector.extract_strided_slice %27 {offsets = [0, 1, 2], sizes = [1, 8, 16], strides = [1, 1, 1]} : vector<4x10x18xf32> to vector<1x8x16xf32>
    %231 = vector.shape_cast %230 : vector<1x8x16xf32> to vector<8x16xf32>
    %c5_25 = arith.constant 5 : index
    %232 = memref.load %arg3[%c5_25] : memref<288xf32, #tpu.memory_space<smem>>
    %233 = vector.broadcast %232 : f32 to vector<8x16xf32>
    %234 = arith.mulf %233, %231 : vector<8x16xf32>
    %235 = arith.addf %201, %234 : vector<8x16xf32>
    %c41 = arith.constant 41 : index
    %236 = memref.load %arg3[%c41] : memref<288xf32, #tpu.memory_space<smem>>
    %237 = vector.broadcast %236 : f32 to vector<8x16xf32>
    %238 = arith.mulf %237, %231 : vector<8x16xf32>
    %239 = arith.addf %205, %238 : vector<8x16xf32>
    %c77 = arith.constant 77 : index
    %240 = memref.load %arg3[%c77] : memref<288xf32, #tpu.memory_space<smem>>
    %241 = vector.broadcast %240 : f32 to vector<8x16xf32>
    %242 = arith.mulf %241, %231 : vector<8x16xf32>
    %243 = arith.addf %209, %242 : vector<8x16xf32>
    %c113 = arith.constant 113 : index
    %244 = memref.load %arg3[%c113] : memref<288xf32, #tpu.memory_space<smem>>
    %245 = vector.broadcast %244 : f32 to vector<8x16xf32>
    %246 = arith.mulf %245, %231 : vector<8x16xf32>
    %247 = arith.addf %213, %246 : vector<8x16xf32>
    %c149 = arith.constant 149 : index
    %248 = memref.load %arg3[%c149] : memref<288xf32, #tpu.memory_space<smem>>
    %249 = vector.broadcast %248 : f32 to vector<8x16xf32>
    %250 = arith.mulf %249, %231 : vector<8x16xf32>
    %251 = arith.addf %217, %250 : vector<8x16xf32>
    %c185 = arith.constant 185 : index
    %252 = memref.load %arg3[%c185] : memref<288xf32, #tpu.memory_space<smem>>
    %253 = vector.broadcast %252 : f32 to vector<8x16xf32>
    %254 = arith.mulf %253, %231 : vector<8x16xf32>
    %255 = arith.addf %221, %254 : vector<8x16xf32>
    %c221 = arith.constant 221 : index
    %256 = memref.load %arg3[%c221] : memref<288xf32, #tpu.memory_space<smem>>
    %257 = vector.broadcast %256 : f32 to vector<8x16xf32>
    %258 = arith.mulf %257, %231 : vector<8x16xf32>
    %259 = arith.addf %225, %258 : vector<8x16xf32>
    %c257 = arith.constant 257 : index
    %260 = memref.load %arg3[%c257] : memref<288xf32, #tpu.memory_space<smem>>
    %261 = vector.broadcast %260 : f32 to vector<8x16xf32>
    %262 = arith.mulf %261, %231 : vector<8x16xf32>
    %263 = arith.addf %229, %262 : vector<8x16xf32>
    %264 = vector.extract_strided_slice %27 {offsets = [0, 2, 0], sizes = [1, 8, 16], strides = [1, 1, 1]} : vector<4x10x18xf32> to vector<1x8x16xf32>
    %265 = vector.shape_cast %264 : vector<1x8x16xf32> to vector<8x16xf32>
    %c6_26 = arith.constant 6 : index
    %266 = memref.load %arg3[%c6_26] : memref<288xf32, #tpu.memory_space<smem>>
    %267 = vector.broadcast %266 : f32 to vector<8x16xf32>
    %268 = arith.mulf %267, %265 : vector<8x16xf32>
    %269 = arith.addf %235, %268 : vector<8x16xf32>
    %c42 = arith.constant 42 : index
    %270 = memref.load %arg3[%c42] : memref<288xf32, #tpu.memory_space<smem>>
    %271 = vector.broadcast %270 : f32 to vector<8x16xf32>
    %272 = arith.mulf %271, %265 : vector<8x16xf32>
    %273 = arith.addf %239, %272 : vector<8x16xf32>
    %c78 = arith.constant 78 : index
    %274 = memref.load %arg3[%c78] : memref<288xf32, #tpu.memory_space<smem>>
    %275 = vector.broadcast %274 : f32 to vector<8x16xf32>
    %276 = arith.mulf %275, %265 : vector<8x16xf32>
    %277 = arith.addf %243, %276 : vector<8x16xf32>
    %c114 = arith.constant 114 : index
    %278 = memref.load %arg3[%c114] : memref<288xf32, #tpu.memory_space<smem>>
    %279 = vector.broadcast %278 : f32 to vector<8x16xf32>
    %280 = arith.mulf %279, %265 : vector<8x16xf32>
    %281 = arith.addf %247, %280 : vector<8x16xf32>
    %c150 = arith.constant 150 : index
    %282 = memref.load %arg3[%c150] : memref<288xf32, #tpu.memory_space<smem>>
    %283 = vector.broadcast %282 : f32 to vector<8x16xf32>
    %284 = arith.mulf %283, %265 : vector<8x16xf32>
    %285 = arith.addf %251, %284 : vector<8x16xf32>
    %c186 = arith.constant 186 : index
    %286 = memref.load %arg3[%c186] : memref<288xf32, #tpu.memory_space<smem>>
    %287 = vector.broadcast %286 : f32 to vector<8x16xf32>
    %288 = arith.mulf %287, %265 : vector<8x16xf32>
    %289 = arith.addf %255, %288 : vector<8x16xf32>
    %c222 = arith.constant 222 : index
    %290 = memref.load %arg3[%c222] : memref<288xf32, #tpu.memory_space<smem>>
    %291 = vector.broadcast %290 : f32 to vector<8x16xf32>
    %292 = arith.mulf %291, %265 : vector<8x16xf32>
    %293 = arith.addf %259, %292 : vector<8x16xf32>
    %c258 = arith.constant 258 : index
    %294 = memref.load %arg3[%c258] : memref<288xf32, #tpu.memory_space<smem>>
    %295 = vector.broadcast %294 : f32 to vector<8x16xf32>
    %296 = arith.mulf %295, %265 : vector<8x16xf32>
    %297 = arith.addf %263, %296 : vector<8x16xf32>
    %298 = vector.extract_strided_slice %27 {offsets = [0, 2, 1], sizes = [1, 8, 16], strides = [1, 1, 1]} : vector<4x10x18xf32> to vector<1x8x16xf32>
    %299 = vector.shape_cast %298 : vector<1x8x16xf32> to vector<8x16xf32>
    %c7_27 = arith.constant 7 : index
    %300 = memref.load %arg3[%c7_27] : memref<288xf32, #tpu.memory_space<smem>>
    %301 = vector.broadcast %300 : f32 to vector<8x16xf32>
    %302 = arith.mulf %301, %299 : vector<8x16xf32>
    %303 = arith.addf %269, %302 : vector<8x16xf32>
    %c43 = arith.constant 43 : index
    %304 = memref.load %arg3[%c43] : memref<288xf32, #tpu.memory_space<smem>>
    %305 = vector.broadcast %304 : f32 to vector<8x16xf32>
    %306 = arith.mulf %305, %299 : vector<8x16xf32>
    %307 = arith.addf %273, %306 : vector<8x16xf32>
    %c79 = arith.constant 79 : index
    %308 = memref.load %arg3[%c79] : memref<288xf32, #tpu.memory_space<smem>>
    %309 = vector.broadcast %308 : f32 to vector<8x16xf32>
    %310 = arith.mulf %309, %299 : vector<8x16xf32>
    %311 = arith.addf %277, %310 : vector<8x16xf32>
    %c115 = arith.constant 115 : index
    %312 = memref.load %arg3[%c115] : memref<288xf32, #tpu.memory_space<smem>>
    %313 = vector.broadcast %312 : f32 to vector<8x16xf32>
    %314 = arith.mulf %313, %299 : vector<8x16xf32>
    %315 = arith.addf %281, %314 : vector<8x16xf32>
    %c151 = arith.constant 151 : index
    %316 = memref.load %arg3[%c151] : memref<288xf32, #tpu.memory_space<smem>>
    %317 = vector.broadcast %316 : f32 to vector<8x16xf32>
    %318 = arith.mulf %317, %299 : vector<8x16xf32>
    %319 = arith.addf %285, %318 : vector<8x16xf32>
    %c187 = arith.constant 187 : index
    %320 = memref.load %arg3[%c187] : memref<288xf32, #tpu.memory_space<smem>>
    %321 = vector.broadcast %320 : f32 to vector<8x16xf32>
    %322 = arith.mulf %321, %299 : vector<8x16xf32>
    %323 = arith.addf %289, %322 : vector<8x16xf32>
    %c223 = arith.constant 223 : index
    %324 = memref.load %arg3[%c223] : memref<288xf32, #tpu.memory_space<smem>>
    %325 = vector.broadcast %324 : f32 to vector<8x16xf32>
    %326 = arith.mulf %325, %299 : vector<8x16xf32>
    %327 = arith.addf %293, %326 : vector<8x16xf32>
    %c259 = arith.constant 259 : index
    %328 = memref.load %arg3[%c259] : memref<288xf32, #tpu.memory_space<smem>>
    %329 = vector.broadcast %328 : f32 to vector<8x16xf32>
    %330 = arith.mulf %329, %299 : vector<8x16xf32>
    %331 = arith.addf %297, %330 : vector<8x16xf32>
    %332 = vector.extract_strided_slice %27 {offsets = [0, 2, 2], sizes = [1, 8, 16], strides = [1, 1, 1]} : vector<4x10x18xf32> to vector<1x8x16xf32>
    %333 = vector.shape_cast %332 : vector<1x8x16xf32> to vector<8x16xf32>
    %c8 = arith.constant 8 : index
    %334 = memref.load %arg3[%c8] : memref<288xf32, #tpu.memory_space<smem>>
    %335 = vector.broadcast %334 : f32 to vector<8x16xf32>
    %336 = arith.mulf %335, %333 : vector<8x16xf32>
    %337 = arith.addf %303, %336 : vector<8x16xf32>
    %c44 = arith.constant 44 : index
    %338 = memref.load %arg3[%c44] : memref<288xf32, #tpu.memory_space<smem>>
    %339 = vector.broadcast %338 : f32 to vector<8x16xf32>
    %340 = arith.mulf %339, %333 : vector<8x16xf32>
    %341 = arith.addf %307, %340 : vector<8x16xf32>
    %c80 = arith.constant 80 : index
    %342 = memref.load %arg3[%c80] : memref<288xf32, #tpu.memory_space<smem>>
    %343 = vector.broadcast %342 : f32 to vector<8x16xf32>
    %344 = arith.mulf %343, %333 : vector<8x16xf32>
    %345 = arith.addf %311, %344 : vector<8x16xf32>
    %c116 = arith.constant 116 : index
    %346 = memref.load %arg3[%c116] : memref<288xf32, #tpu.memory_space<smem>>
    %347 = vector.broadcast %346 : f32 to vector<8x16xf32>
    %348 = arith.mulf %347, %333 : vector<8x16xf32>
    %349 = arith.addf %315, %348 : vector<8x16xf32>
    %c152 = arith.constant 152 : index
    %350 = memref.load %arg3[%c152] : memref<288xf32, #tpu.memory_space<smem>>
    %351 = vector.broadcast %350 : f32 to vector<8x16xf32>
    %352 = arith.mulf %351, %333 : vector<8x16xf32>
    %353 = arith.addf %319, %352 : vector<8x16xf32>
    %c188 = arith.constant 188 : index
    %354 = memref.load %arg3[%c188] : memref<288xf32, #tpu.memory_space<smem>>
    %355 = vector.broadcast %354 : f32 to vector<8x16xf32>
    %356 = arith.mulf %355, %333 : vector<8x16xf32>
    %357 = arith.addf %323, %356 : vector<8x16xf32>
    %c224 = arith.constant 224 : index
    %358 = memref.load %arg3[%c224] : memref<288xf32, #tpu.memory_space<smem>>
    %359 = vector.broadcast %358 : f32 to vector<8x16xf32>
    %360 = arith.mulf %359, %333 : vector<8x16xf32>
    %361 = arith.addf %327, %360 : vector<8x16xf32>
    %c260 = arith.constant 260 : index
    %362 = memref.load %arg3[%c260] : memref<288xf32, #tpu.memory_space<smem>>
    %363 = vector.broadcast %362 : f32 to vector<8x16xf32>
    %364 = arith.mulf %363, %333 : vector<8x16xf32>
    %365 = arith.addf %331, %364 : vector<8x16xf32>
    %366 = vector.extract_strided_slice %27 {offsets = [1, 0, 0], sizes = [1, 8, 16], strides = [1, 1, 1]} : vector<4x10x18xf32> to vector<1x8x16xf32>
    %367 = vector.shape_cast %366 : vector<1x8x16xf32> to vector<8x16xf32>
    %c9 = arith.constant 9 : index
    %368 = memref.load %arg3[%c9] : memref<288xf32, #tpu.memory_space<smem>>
    %369 = vector.broadcast %368 : f32 to vector<8x16xf32>
    %370 = arith.mulf %369, %367 : vector<8x16xf32>
    %371 = arith.addf %337, %370 : vector<8x16xf32>
    %c45 = arith.constant 45 : index
    %372 = memref.load %arg3[%c45] : memref<288xf32, #tpu.memory_space<smem>>
    %373 = vector.broadcast %372 : f32 to vector<8x16xf32>
    %374 = arith.mulf %373, %367 : vector<8x16xf32>
    %375 = arith.addf %341, %374 : vector<8x16xf32>
    %c81 = arith.constant 81 : index
    %376 = memref.load %arg3[%c81] : memref<288xf32, #tpu.memory_space<smem>>
    %377 = vector.broadcast %376 : f32 to vector<8x16xf32>
    %378 = arith.mulf %377, %367 : vector<8x16xf32>
    %379 = arith.addf %345, %378 : vector<8x16xf32>
    %c117 = arith.constant 117 : index
    %380 = memref.load %arg3[%c117] : memref<288xf32, #tpu.memory_space<smem>>
    %381 = vector.broadcast %380 : f32 to vector<8x16xf32>
    %382 = arith.mulf %381, %367 : vector<8x16xf32>
    %383 = arith.addf %349, %382 : vector<8x16xf32>
    %c153 = arith.constant 153 : index
    %384 = memref.load %arg3[%c153] : memref<288xf32, #tpu.memory_space<smem>>
    %385 = vector.broadcast %384 : f32 to vector<8x16xf32>
    %386 = arith.mulf %385, %367 : vector<8x16xf32>
    %387 = arith.addf %353, %386 : vector<8x16xf32>
    %c189 = arith.constant 189 : index
    %388 = memref.load %arg3[%c189] : memref<288xf32, #tpu.memory_space<smem>>
    %389 = vector.broadcast %388 : f32 to vector<8x16xf32>
    %390 = arith.mulf %389, %367 : vector<8x16xf32>
    %391 = arith.addf %357, %390 : vector<8x16xf32>
    %c225 = arith.constant 225 : index
    %392 = memref.load %arg3[%c225] : memref<288xf32, #tpu.memory_space<smem>>
    %393 = vector.broadcast %392 : f32 to vector<8x16xf32>
    %394 = arith.mulf %393, %367 : vector<8x16xf32>
    %395 = arith.addf %361, %394 : vector<8x16xf32>
    %c261 = arith.constant 261 : index
    %396 = memref.load %arg3[%c261] : memref<288xf32, #tpu.memory_space<smem>>
    %397 = vector.broadcast %396 : f32 to vector<8x16xf32>
    %398 = arith.mulf %397, %367 : vector<8x16xf32>
    %399 = arith.addf %365, %398 : vector<8x16xf32>
    %400 = vector.extract_strided_slice %27 {offsets = [1, 0, 1], sizes = [1, 8, 16], strides = [1, 1, 1]} : vector<4x10x18xf32> to vector<1x8x16xf32>
    %401 = vector.shape_cast %400 : vector<1x8x16xf32> to vector<8x16xf32>
    %c10 = arith.constant 10 : index
    %402 = memref.load %arg3[%c10] : memref<288xf32, #tpu.memory_space<smem>>
    %403 = vector.broadcast %402 : f32 to vector<8x16xf32>
    %404 = arith.mulf %403, %401 : vector<8x16xf32>
    %405 = arith.addf %371, %404 : vector<8x16xf32>
    %c46 = arith.constant 46 : index
    %406 = memref.load %arg3[%c46] : memref<288xf32, #tpu.memory_space<smem>>
    %407 = vector.broadcast %406 : f32 to vector<8x16xf32>
    %408 = arith.mulf %407, %401 : vector<8x16xf32>
    %409 = arith.addf %375, %408 : vector<8x16xf32>
    %c82 = arith.constant 82 : index
    %410 = memref.load %arg3[%c82] : memref<288xf32, #tpu.memory_space<smem>>
    %411 = vector.broadcast %410 : f32 to vector<8x16xf32>
    %412 = arith.mulf %411, %401 : vector<8x16xf32>
    %413 = arith.addf %379, %412 : vector<8x16xf32>
    %c118 = arith.constant 118 : index
    %414 = memref.load %arg3[%c118] : memref<288xf32, #tpu.memory_space<smem>>
    %415 = vector.broadcast %414 : f32 to vector<8x16xf32>
    %416 = arith.mulf %415, %401 : vector<8x16xf32>
    %417 = arith.addf %383, %416 : vector<8x16xf32>
    %c154 = arith.constant 154 : index
    %418 = memref.load %arg3[%c154] : memref<288xf32, #tpu.memory_space<smem>>
    %419 = vector.broadcast %418 : f32 to vector<8x16xf32>
    %420 = arith.mulf %419, %401 : vector<8x16xf32>
    %421 = arith.addf %387, %420 : vector<8x16xf32>
    %c190 = arith.constant 190 : index
    %422 = memref.load %arg3[%c190] : memref<288xf32, #tpu.memory_space<smem>>
    %423 = vector.broadcast %422 : f32 to vector<8x16xf32>
    %424 = arith.mulf %423, %401 : vector<8x16xf32>
    %425 = arith.addf %391, %424 : vector<8x16xf32>
    %c226 = arith.constant 226 : index
    %426 = memref.load %arg3[%c226] : memref<288xf32, #tpu.memory_space<smem>>
    %427 = vector.broadcast %426 : f32 to vector<8x16xf32>
    %428 = arith.mulf %427, %401 : vector<8x16xf32>
    %429 = arith.addf %395, %428 : vector<8x16xf32>
    %c262 = arith.constant 262 : index
    %430 = memref.load %arg3[%c262] : memref<288xf32, #tpu.memory_space<smem>>
    %431 = vector.broadcast %430 : f32 to vector<8x16xf32>
    %432 = arith.mulf %431, %401 : vector<8x16xf32>
    %433 = arith.addf %399, %432 : vector<8x16xf32>
    %434 = vector.extract_strided_slice %27 {offsets = [1, 0, 2], sizes = [1, 8, 16], strides = [1, 1, 1]} : vector<4x10x18xf32> to vector<1x8x16xf32>
    %435 = vector.shape_cast %434 : vector<1x8x16xf32> to vector<8x16xf32>
    %c11 = arith.constant 11 : index
    %436 = memref.load %arg3[%c11] : memref<288xf32, #tpu.memory_space<smem>>
    %437 = vector.broadcast %436 : f32 to vector<8x16xf32>
    %438 = arith.mulf %437, %435 : vector<8x16xf32>
    %439 = arith.addf %405, %438 : vector<8x16xf32>
    %c47 = arith.constant 47 : index
    %440 = memref.load %arg3[%c47] : memref<288xf32, #tpu.memory_space<smem>>
    %441 = vector.broadcast %440 : f32 to vector<8x16xf32>
    %442 = arith.mulf %441, %435 : vector<8x16xf32>
    %443 = arith.addf %409, %442 : vector<8x16xf32>
    %c83 = arith.constant 83 : index
    %444 = memref.load %arg3[%c83] : memref<288xf32, #tpu.memory_space<smem>>
    %445 = vector.broadcast %444 : f32 to vector<8x16xf32>
    %446 = arith.mulf %445, %435 : vector<8x16xf32>
    %447 = arith.addf %413, %446 : vector<8x16xf32>
    %c119 = arith.constant 119 : index
    %448 = memref.load %arg3[%c119] : memref<288xf32, #tpu.memory_space<smem>>
    %449 = vector.broadcast %448 : f32 to vector<8x16xf32>
    %450 = arith.mulf %449, %435 : vector<8x16xf32>
    %451 = arith.addf %417, %450 : vector<8x16xf32>
    %c155 = arith.constant 155 : index
    %452 = memref.load %arg3[%c155] : memref<288xf32, #tpu.memory_space<smem>>
    %453 = vector.broadcast %452 : f32 to vector<8x16xf32>
    %454 = arith.mulf %453, %435 : vector<8x16xf32>
    %455 = arith.addf %421, %454 : vector<8x16xf32>
    %c191 = arith.constant 191 : index
    %456 = memref.load %arg3[%c191] : memref<288xf32, #tpu.memory_space<smem>>
    %457 = vector.broadcast %456 : f32 to vector<8x16xf32>
    %458 = arith.mulf %457, %435 : vector<8x16xf32>
    %459 = arith.addf %425, %458 : vector<8x16xf32>
    %c227 = arith.constant 227 : index
    %460 = memref.load %arg3[%c227] : memref<288xf32, #tpu.memory_space<smem>>
    %461 = vector.broadcast %460 : f32 to vector<8x16xf32>
    %462 = arith.mulf %461, %435 : vector<8x16xf32>
    %463 = arith.addf %429, %462 : vector<8x16xf32>
    %c263 = arith.constant 263 : index
    %464 = memref.load %arg3[%c263] : memref<288xf32, #tpu.memory_space<smem>>
    %465 = vector.broadcast %464 : f32 to vector<8x16xf32>
    %466 = arith.mulf %465, %435 : vector<8x16xf32>
    %467 = arith.addf %433, %466 : vector<8x16xf32>
    %468 = vector.extract_strided_slice %27 {offsets = [1, 1, 0], sizes = [1, 8, 16], strides = [1, 1, 1]} : vector<4x10x18xf32> to vector<1x8x16xf32>
    %469 = vector.shape_cast %468 : vector<1x8x16xf32> to vector<8x16xf32>
    %c12 = arith.constant 12 : index
    %470 = memref.load %arg3[%c12] : memref<288xf32, #tpu.memory_space<smem>>
    %471 = vector.broadcast %470 : f32 to vector<8x16xf32>
    %472 = arith.mulf %471, %469 : vector<8x16xf32>
    %473 = arith.addf %439, %472 : vector<8x16xf32>
    %c48 = arith.constant 48 : index
    %474 = memref.load %arg3[%c48] : memref<288xf32, #tpu.memory_space<smem>>
    %475 = vector.broadcast %474 : f32 to vector<8x16xf32>
    %476 = arith.mulf %475, %469 : vector<8x16xf32>
    %477 = arith.addf %443, %476 : vector<8x16xf32>
    %c84 = arith.constant 84 : index
    %478 = memref.load %arg3[%c84] : memref<288xf32, #tpu.memory_space<smem>>
    %479 = vector.broadcast %478 : f32 to vector<8x16xf32>
    %480 = arith.mulf %479, %469 : vector<8x16xf32>
    %481 = arith.addf %447, %480 : vector<8x16xf32>
    %c120 = arith.constant 120 : index
    %482 = memref.load %arg3[%c120] : memref<288xf32, #tpu.memory_space<smem>>
    %483 = vector.broadcast %482 : f32 to vector<8x16xf32>
    %484 = arith.mulf %483, %469 : vector<8x16xf32>
    %485 = arith.addf %451, %484 : vector<8x16xf32>
    %c156 = arith.constant 156 : index
    %486 = memref.load %arg3[%c156] : memref<288xf32, #tpu.memory_space<smem>>
    %487 = vector.broadcast %486 : f32 to vector<8x16xf32>
    %488 = arith.mulf %487, %469 : vector<8x16xf32>
    %489 = arith.addf %455, %488 : vector<8x16xf32>
    %c192 = arith.constant 192 : index
    %490 = memref.load %arg3[%c192] : memref<288xf32, #tpu.memory_space<smem>>
    %491 = vector.broadcast %490 : f32 to vector<8x16xf32>
    %492 = arith.mulf %491, %469 : vector<8x16xf32>
    %493 = arith.addf %459, %492 : vector<8x16xf32>
    %c228 = arith.constant 228 : index
    %494 = memref.load %arg3[%c228] : memref<288xf32, #tpu.memory_space<smem>>
    %495 = vector.broadcast %494 : f32 to vector<8x16xf32>
    %496 = arith.mulf %495, %469 : vector<8x16xf32>
    %497 = arith.addf %463, %496 : vector<8x16xf32>
    %c264 = arith.constant 264 : index
    %498 = memref.load %arg3[%c264] : memref<288xf32, #tpu.memory_space<smem>>
    %499 = vector.broadcast %498 : f32 to vector<8x16xf32>
    %500 = arith.mulf %499, %469 : vector<8x16xf32>
    %501 = arith.addf %467, %500 : vector<8x16xf32>
    %502 = vector.extract_strided_slice %27 {offsets = [1, 1, 1], sizes = [1, 8, 16], strides = [1, 1, 1]} : vector<4x10x18xf32> to vector<1x8x16xf32>
    %503 = vector.shape_cast %502 : vector<1x8x16xf32> to vector<8x16xf32>
    %c13 = arith.constant 13 : index
    %504 = memref.load %arg3[%c13] : memref<288xf32, #tpu.memory_space<smem>>
    %505 = vector.broadcast %504 : f32 to vector<8x16xf32>
    %506 = arith.mulf %505, %503 : vector<8x16xf32>
    %507 = arith.addf %473, %506 : vector<8x16xf32>
    %c49 = arith.constant 49 : index
    %508 = memref.load %arg3[%c49] : memref<288xf32, #tpu.memory_space<smem>>
    %509 = vector.broadcast %508 : f32 to vector<8x16xf32>
    %510 = arith.mulf %509, %503 : vector<8x16xf32>
    %511 = arith.addf %477, %510 : vector<8x16xf32>
    %c85 = arith.constant 85 : index
    %512 = memref.load %arg3[%c85] : memref<288xf32, #tpu.memory_space<smem>>
    %513 = vector.broadcast %512 : f32 to vector<8x16xf32>
    %514 = arith.mulf %513, %503 : vector<8x16xf32>
    %515 = arith.addf %481, %514 : vector<8x16xf32>
    %c121 = arith.constant 121 : index
    %516 = memref.load %arg3[%c121] : memref<288xf32, #tpu.memory_space<smem>>
    %517 = vector.broadcast %516 : f32 to vector<8x16xf32>
    %518 = arith.mulf %517, %503 : vector<8x16xf32>
    %519 = arith.addf %485, %518 : vector<8x16xf32>
    %c157 = arith.constant 157 : index
    %520 = memref.load %arg3[%c157] : memref<288xf32, #tpu.memory_space<smem>>
    %521 = vector.broadcast %520 : f32 to vector<8x16xf32>
    %522 = arith.mulf %521, %503 : vector<8x16xf32>
    %523 = arith.addf %489, %522 : vector<8x16xf32>
    %c193 = arith.constant 193 : index
    %524 = memref.load %arg3[%c193] : memref<288xf32, #tpu.memory_space<smem>>
    %525 = vector.broadcast %524 : f32 to vector<8x16xf32>
    %526 = arith.mulf %525, %503 : vector<8x16xf32>
    %527 = arith.addf %493, %526 : vector<8x16xf32>
    %c229 = arith.constant 229 : index
    %528 = memref.load %arg3[%c229] : memref<288xf32, #tpu.memory_space<smem>>
    %529 = vector.broadcast %528 : f32 to vector<8x16xf32>
    %530 = arith.mulf %529, %503 : vector<8x16xf32>
    %531 = arith.addf %497, %530 : vector<8x16xf32>
    %c265 = arith.constant 265 : index
    %532 = memref.load %arg3[%c265] : memref<288xf32, #tpu.memory_space<smem>>
    %533 = vector.broadcast %532 : f32 to vector<8x16xf32>
    %534 = arith.mulf %533, %503 : vector<8x16xf32>
    %535 = arith.addf %501, %534 : vector<8x16xf32>
    %536 = vector.extract_strided_slice %27 {offsets = [1, 1, 2], sizes = [1, 8, 16], strides = [1, 1, 1]} : vector<4x10x18xf32> to vector<1x8x16xf32>
    %537 = vector.shape_cast %536 : vector<1x8x16xf32> to vector<8x16xf32>
    %c14 = arith.constant 14 : index
    %538 = memref.load %arg3[%c14] : memref<288xf32, #tpu.memory_space<smem>>
    %539 = vector.broadcast %538 : f32 to vector<8x16xf32>
    %540 = arith.mulf %539, %537 : vector<8x16xf32>
    %541 = arith.addf %507, %540 : vector<8x16xf32>
    %c50 = arith.constant 50 : index
    %542 = memref.load %arg3[%c50] : memref<288xf32, #tpu.memory_space<smem>>
    %543 = vector.broadcast %542 : f32 to vector<8x16xf32>
    %544 = arith.mulf %543, %537 : vector<8x16xf32>
    %545 = arith.addf %511, %544 : vector<8x16xf32>
    %c86 = arith.constant 86 : index
    %546 = memref.load %arg3[%c86] : memref<288xf32, #tpu.memory_space<smem>>
    %547 = vector.broadcast %546 : f32 to vector<8x16xf32>
    %548 = arith.mulf %547, %537 : vector<8x16xf32>
    %549 = arith.addf %515, %548 : vector<8x16xf32>
    %c122 = arith.constant 122 : index
    %550 = memref.load %arg3[%c122] : memref<288xf32, #tpu.memory_space<smem>>
    %551 = vector.broadcast %550 : f32 to vector<8x16xf32>
    %552 = arith.mulf %551, %537 : vector<8x16xf32>
    %553 = arith.addf %519, %552 : vector<8x16xf32>
    %c158 = arith.constant 158 : index
    %554 = memref.load %arg3[%c158] : memref<288xf32, #tpu.memory_space<smem>>
    %555 = vector.broadcast %554 : f32 to vector<8x16xf32>
    %556 = arith.mulf %555, %537 : vector<8x16xf32>
    %557 = arith.addf %523, %556 : vector<8x16xf32>
    %c194 = arith.constant 194 : index
    %558 = memref.load %arg3[%c194] : memref<288xf32, #tpu.memory_space<smem>>
    %559 = vector.broadcast %558 : f32 to vector<8x16xf32>
    %560 = arith.mulf %559, %537 : vector<8x16xf32>
    %561 = arith.addf %527, %560 : vector<8x16xf32>
    %c230 = arith.constant 230 : index
    %562 = memref.load %arg3[%c230] : memref<288xf32, #tpu.memory_space<smem>>
    %563 = vector.broadcast %562 : f32 to vector<8x16xf32>
    %564 = arith.mulf %563, %537 : vector<8x16xf32>
    %565 = arith.addf %531, %564 : vector<8x16xf32>
    %c266 = arith.constant 266 : index
    %566 = memref.load %arg3[%c266] : memref<288xf32, #tpu.memory_space<smem>>
    %567 = vector.broadcast %566 : f32 to vector<8x16xf32>
    %568 = arith.mulf %567, %537 : vector<8x16xf32>
    %569 = arith.addf %535, %568 : vector<8x16xf32>
    %570 = vector.extract_strided_slice %27 {offsets = [1, 2, 0], sizes = [1, 8, 16], strides = [1, 1, 1]} : vector<4x10x18xf32> to vector<1x8x16xf32>
    %571 = vector.shape_cast %570 : vector<1x8x16xf32> to vector<8x16xf32>
    %c15 = arith.constant 15 : index
    %572 = memref.load %arg3[%c15] : memref<288xf32, #tpu.memory_space<smem>>
    %573 = vector.broadcast %572 : f32 to vector<8x16xf32>
    %574 = arith.mulf %573, %571 : vector<8x16xf32>
    %575 = arith.addf %541, %574 : vector<8x16xf32>
    %c51 = arith.constant 51 : index
    %576 = memref.load %arg3[%c51] : memref<288xf32, #tpu.memory_space<smem>>
    %577 = vector.broadcast %576 : f32 to vector<8x16xf32>
    %578 = arith.mulf %577, %571 : vector<8x16xf32>
    %579 = arith.addf %545, %578 : vector<8x16xf32>
    %c87 = arith.constant 87 : index
    %580 = memref.load %arg3[%c87] : memref<288xf32, #tpu.memory_space<smem>>
    %581 = vector.broadcast %580 : f32 to vector<8x16xf32>
    %582 = arith.mulf %581, %571 : vector<8x16xf32>
    %583 = arith.addf %549, %582 : vector<8x16xf32>
    %c123 = arith.constant 123 : index
    %584 = memref.load %arg3[%c123] : memref<288xf32, #tpu.memory_space<smem>>
    %585 = vector.broadcast %584 : f32 to vector<8x16xf32>
    %586 = arith.mulf %585, %571 : vector<8x16xf32>
    %587 = arith.addf %553, %586 : vector<8x16xf32>
    %c159 = arith.constant 159 : index
    %588 = memref.load %arg3[%c159] : memref<288xf32, #tpu.memory_space<smem>>
    %589 = vector.broadcast %588 : f32 to vector<8x16xf32>
    %590 = arith.mulf %589, %571 : vector<8x16xf32>
    %591 = arith.addf %557, %590 : vector<8x16xf32>
    %c195 = arith.constant 195 : index
    %592 = memref.load %arg3[%c195] : memref<288xf32, #tpu.memory_space<smem>>
    %593 = vector.broadcast %592 : f32 to vector<8x16xf32>
    %594 = arith.mulf %593, %571 : vector<8x16xf32>
    %595 = arith.addf %561, %594 : vector<8x16xf32>
    %c231 = arith.constant 231 : index
    %596 = memref.load %arg3[%c231] : memref<288xf32, #tpu.memory_space<smem>>
    %597 = vector.broadcast %596 : f32 to vector<8x16xf32>
    %598 = arith.mulf %597, %571 : vector<8x16xf32>
    %599 = arith.addf %565, %598 : vector<8x16xf32>
    %c267 = arith.constant 267 : index
    %600 = memref.load %arg3[%c267] : memref<288xf32, #tpu.memory_space<smem>>
    %601 = vector.broadcast %600 : f32 to vector<8x16xf32>
    %602 = arith.mulf %601, %571 : vector<8x16xf32>
    %603 = arith.addf %569, %602 : vector<8x16xf32>
    %604 = vector.extract_strided_slice %27 {offsets = [1, 2, 1], sizes = [1, 8, 16], strides = [1, 1, 1]} : vector<4x10x18xf32> to vector<1x8x16xf32>
    %605 = vector.shape_cast %604 : vector<1x8x16xf32> to vector<8x16xf32>
    %c16 = arith.constant 16 : index
    %606 = memref.load %arg3[%c16] : memref<288xf32, #tpu.memory_space<smem>>
    %607 = vector.broadcast %606 : f32 to vector<8x16xf32>
    %608 = arith.mulf %607, %605 : vector<8x16xf32>
    %609 = arith.addf %575, %608 : vector<8x16xf32>
    %c52 = arith.constant 52 : index
    %610 = memref.load %arg3[%c52] : memref<288xf32, #tpu.memory_space<smem>>
    %611 = vector.broadcast %610 : f32 to vector<8x16xf32>
    %612 = arith.mulf %611, %605 : vector<8x16xf32>
    %613 = arith.addf %579, %612 : vector<8x16xf32>
    %c88 = arith.constant 88 : index
    %614 = memref.load %arg3[%c88] : memref<288xf32, #tpu.memory_space<smem>>
    %615 = vector.broadcast %614 : f32 to vector<8x16xf32>
    %616 = arith.mulf %615, %605 : vector<8x16xf32>
    %617 = arith.addf %583, %616 : vector<8x16xf32>
    %c124 = arith.constant 124 : index
    %618 = memref.load %arg3[%c124] : memref<288xf32, #tpu.memory_space<smem>>
    %619 = vector.broadcast %618 : f32 to vector<8x16xf32>
    %620 = arith.mulf %619, %605 : vector<8x16xf32>
    %621 = arith.addf %587, %620 : vector<8x16xf32>
    %c160 = arith.constant 160 : index
    %622 = memref.load %arg3[%c160] : memref<288xf32, #tpu.memory_space<smem>>
    %623 = vector.broadcast %622 : f32 to vector<8x16xf32>
    %624 = arith.mulf %623, %605 : vector<8x16xf32>
    %625 = arith.addf %591, %624 : vector<8x16xf32>
    %c196 = arith.constant 196 : index
    %626 = memref.load %arg3[%c196] : memref<288xf32, #tpu.memory_space<smem>>
    %627 = vector.broadcast %626 : f32 to vector<8x16xf32>
    %628 = arith.mulf %627, %605 : vector<8x16xf32>
    %629 = arith.addf %595, %628 : vector<8x16xf32>
    %c232 = arith.constant 232 : index
    %630 = memref.load %arg3[%c232] : memref<288xf32, #tpu.memory_space<smem>>
    %631 = vector.broadcast %630 : f32 to vector<8x16xf32>
    %632 = arith.mulf %631, %605 : vector<8x16xf32>
    %633 = arith.addf %599, %632 : vector<8x16xf32>
    %c268 = arith.constant 268 : index
    %634 = memref.load %arg3[%c268] : memref<288xf32, #tpu.memory_space<smem>>
    %635 = vector.broadcast %634 : f32 to vector<8x16xf32>
    %636 = arith.mulf %635, %605 : vector<8x16xf32>
    %637 = arith.addf %603, %636 : vector<8x16xf32>
    %638 = vector.extract_strided_slice %27 {offsets = [1, 2, 2], sizes = [1, 8, 16], strides = [1, 1, 1]} : vector<4x10x18xf32> to vector<1x8x16xf32>
    %639 = vector.shape_cast %638 : vector<1x8x16xf32> to vector<8x16xf32>
    %c17 = arith.constant 17 : index
    %640 = memref.load %arg3[%c17] : memref<288xf32, #tpu.memory_space<smem>>
    %641 = vector.broadcast %640 : f32 to vector<8x16xf32>
    %642 = arith.mulf %641, %639 : vector<8x16xf32>
    %643 = arith.addf %609, %642 : vector<8x16xf32>
    %c53 = arith.constant 53 : index
    %644 = memref.load %arg3[%c53] : memref<288xf32, #tpu.memory_space<smem>>
    %645 = vector.broadcast %644 : f32 to vector<8x16xf32>
    %646 = arith.mulf %645, %639 : vector<8x16xf32>
    %647 = arith.addf %613, %646 : vector<8x16xf32>
    %c89 = arith.constant 89 : index
    %648 = memref.load %arg3[%c89] : memref<288xf32, #tpu.memory_space<smem>>
    %649 = vector.broadcast %648 : f32 to vector<8x16xf32>
    %650 = arith.mulf %649, %639 : vector<8x16xf32>
    %651 = arith.addf %617, %650 : vector<8x16xf32>
    %c125 = arith.constant 125 : index
    %652 = memref.load %arg3[%c125] : memref<288xf32, #tpu.memory_space<smem>>
    %653 = vector.broadcast %652 : f32 to vector<8x16xf32>
    %654 = arith.mulf %653, %639 : vector<8x16xf32>
    %655 = arith.addf %621, %654 : vector<8x16xf32>
    %c161 = arith.constant 161 : index
    %656 = memref.load %arg3[%c161] : memref<288xf32, #tpu.memory_space<smem>>
    %657 = vector.broadcast %656 : f32 to vector<8x16xf32>
    %658 = arith.mulf %657, %639 : vector<8x16xf32>
    %659 = arith.addf %625, %658 : vector<8x16xf32>
    %c197 = arith.constant 197 : index
    %660 = memref.load %arg3[%c197] : memref<288xf32, #tpu.memory_space<smem>>
    %661 = vector.broadcast %660 : f32 to vector<8x16xf32>
    %662 = arith.mulf %661, %639 : vector<8x16xf32>
    %663 = arith.addf %629, %662 : vector<8x16xf32>
    %c233 = arith.constant 233 : index
    %664 = memref.load %arg3[%c233] : memref<288xf32, #tpu.memory_space<smem>>
    %665 = vector.broadcast %664 : f32 to vector<8x16xf32>
    %666 = arith.mulf %665, %639 : vector<8x16xf32>
    %667 = arith.addf %633, %666 : vector<8x16xf32>
    %c269 = arith.constant 269 : index
    %668 = memref.load %arg3[%c269] : memref<288xf32, #tpu.memory_space<smem>>
    %669 = vector.broadcast %668 : f32 to vector<8x16xf32>
    %670 = arith.mulf %669, %639 : vector<8x16xf32>
    %671 = arith.addf %637, %670 : vector<8x16xf32>
    %672 = vector.extract_strided_slice %27 {offsets = [2, 0, 0], sizes = [1, 8, 16], strides = [1, 1, 1]} : vector<4x10x18xf32> to vector<1x8x16xf32>
    %673 = vector.shape_cast %672 : vector<1x8x16xf32> to vector<8x16xf32>
    %c18 = arith.constant 18 : index
    %674 = memref.load %arg3[%c18] : memref<288xf32, #tpu.memory_space<smem>>
    %675 = vector.broadcast %674 : f32 to vector<8x16xf32>
    %676 = arith.mulf %675, %673 : vector<8x16xf32>
    %677 = arith.addf %643, %676 : vector<8x16xf32>
    %c54 = arith.constant 54 : index
    %678 = memref.load %arg3[%c54] : memref<288xf32, #tpu.memory_space<smem>>
    %679 = vector.broadcast %678 : f32 to vector<8x16xf32>
    %680 = arith.mulf %679, %673 : vector<8x16xf32>
    %681 = arith.addf %647, %680 : vector<8x16xf32>
    %c90 = arith.constant 90 : index
    %682 = memref.load %arg3[%c90] : memref<288xf32, #tpu.memory_space<smem>>
    %683 = vector.broadcast %682 : f32 to vector<8x16xf32>
    %684 = arith.mulf %683, %673 : vector<8x16xf32>
    %685 = arith.addf %651, %684 : vector<8x16xf32>
    %c126 = arith.constant 126 : index
    %686 = memref.load %arg3[%c126] : memref<288xf32, #tpu.memory_space<smem>>
    %687 = vector.broadcast %686 : f32 to vector<8x16xf32>
    %688 = arith.mulf %687, %673 : vector<8x16xf32>
    %689 = arith.addf %655, %688 : vector<8x16xf32>
    %c162 = arith.constant 162 : index
    %690 = memref.load %arg3[%c162] : memref<288xf32, #tpu.memory_space<smem>>
    %691 = vector.broadcast %690 : f32 to vector<8x16xf32>
    %692 = arith.mulf %691, %673 : vector<8x16xf32>
    %693 = arith.addf %659, %692 : vector<8x16xf32>
    %c198 = arith.constant 198 : index
    %694 = memref.load %arg3[%c198] : memref<288xf32, #tpu.memory_space<smem>>
    %695 = vector.broadcast %694 : f32 to vector<8x16xf32>
    %696 = arith.mulf %695, %673 : vector<8x16xf32>
    %697 = arith.addf %663, %696 : vector<8x16xf32>
    %c234 = arith.constant 234 : index
    %698 = memref.load %arg3[%c234] : memref<288xf32, #tpu.memory_space<smem>>
    %699 = vector.broadcast %698 : f32 to vector<8x16xf32>
    %700 = arith.mulf %699, %673 : vector<8x16xf32>
    %701 = arith.addf %667, %700 : vector<8x16xf32>
    %c270 = arith.constant 270 : index
    %702 = memref.load %arg3[%c270] : memref<288xf32, #tpu.memory_space<smem>>
    %703 = vector.broadcast %702 : f32 to vector<8x16xf32>
    %704 = arith.mulf %703, %673 : vector<8x16xf32>
    %705 = arith.addf %671, %704 : vector<8x16xf32>
    %706 = vector.extract_strided_slice %27 {offsets = [2, 0, 1], sizes = [1, 8, 16], strides = [1, 1, 1]} : vector<4x10x18xf32> to vector<1x8x16xf32>
    %707 = vector.shape_cast %706 : vector<1x8x16xf32> to vector<8x16xf32>
    %c19 = arith.constant 19 : index
    %708 = memref.load %arg3[%c19] : memref<288xf32, #tpu.memory_space<smem>>
    %709 = vector.broadcast %708 : f32 to vector<8x16xf32>
    %710 = arith.mulf %709, %707 : vector<8x16xf32>
    %711 = arith.addf %677, %710 : vector<8x16xf32>
    %c55 = arith.constant 55 : index
    %712 = memref.load %arg3[%c55] : memref<288xf32, #tpu.memory_space<smem>>
    %713 = vector.broadcast %712 : f32 to vector<8x16xf32>
    %714 = arith.mulf %713, %707 : vector<8x16xf32>
    %715 = arith.addf %681, %714 : vector<8x16xf32>
    %c91 = arith.constant 91 : index
    %716 = memref.load %arg3[%c91] : memref<288xf32, #tpu.memory_space<smem>>
    %717 = vector.broadcast %716 : f32 to vector<8x16xf32>
    %718 = arith.mulf %717, %707 : vector<8x16xf32>
    %719 = arith.addf %685, %718 : vector<8x16xf32>
    %c127 = arith.constant 127 : index
    %720 = memref.load %arg3[%c127] : memref<288xf32, #tpu.memory_space<smem>>
    %721 = vector.broadcast %720 : f32 to vector<8x16xf32>
    %722 = arith.mulf %721, %707 : vector<8x16xf32>
    %723 = arith.addf %689, %722 : vector<8x16xf32>
    %c163 = arith.constant 163 : index
    %724 = memref.load %arg3[%c163] : memref<288xf32, #tpu.memory_space<smem>>
    %725 = vector.broadcast %724 : f32 to vector<8x16xf32>
    %726 = arith.mulf %725, %707 : vector<8x16xf32>
    %727 = arith.addf %693, %726 : vector<8x16xf32>
    %c199 = arith.constant 199 : index
    %728 = memref.load %arg3[%c199] : memref<288xf32, #tpu.memory_space<smem>>
    %729 = vector.broadcast %728 : f32 to vector<8x16xf32>
    %730 = arith.mulf %729, %707 : vector<8x16xf32>
    %731 = arith.addf %697, %730 : vector<8x16xf32>
    %c235 = arith.constant 235 : index
    %732 = memref.load %arg3[%c235] : memref<288xf32, #tpu.memory_space<smem>>
    %733 = vector.broadcast %732 : f32 to vector<8x16xf32>
    %734 = arith.mulf %733, %707 : vector<8x16xf32>
    %735 = arith.addf %701, %734 : vector<8x16xf32>
    %c271 = arith.constant 271 : index
    %736 = memref.load %arg3[%c271] : memref<288xf32, #tpu.memory_space<smem>>
    %737 = vector.broadcast %736 : f32 to vector<8x16xf32>
    %738 = arith.mulf %737, %707 : vector<8x16xf32>
    %739 = arith.addf %705, %738 : vector<8x16xf32>
    %740 = vector.extract_strided_slice %27 {offsets = [2, 0, 2], sizes = [1, 8, 16], strides = [1, 1, 1]} : vector<4x10x18xf32> to vector<1x8x16xf32>
    %741 = vector.shape_cast %740 : vector<1x8x16xf32> to vector<8x16xf32>
    %c20 = arith.constant 20 : index
    %742 = memref.load %arg3[%c20] : memref<288xf32, #tpu.memory_space<smem>>
    %743 = vector.broadcast %742 : f32 to vector<8x16xf32>
    %744 = arith.mulf %743, %741 : vector<8x16xf32>
    %745 = arith.addf %711, %744 : vector<8x16xf32>
    %c56 = arith.constant 56 : index
    %746 = memref.load %arg3[%c56] : memref<288xf32, #tpu.memory_space<smem>>
    %747 = vector.broadcast %746 : f32 to vector<8x16xf32>
    %748 = arith.mulf %747, %741 : vector<8x16xf32>
    %749 = arith.addf %715, %748 : vector<8x16xf32>
    %c92 = arith.constant 92 : index
    %750 = memref.load %arg3[%c92] : memref<288xf32, #tpu.memory_space<smem>>
    %751 = vector.broadcast %750 : f32 to vector<8x16xf32>
    %752 = arith.mulf %751, %741 : vector<8x16xf32>
    %753 = arith.addf %719, %752 : vector<8x16xf32>
    %c128 = arith.constant 128 : index
    %754 = memref.load %arg3[%c128] : memref<288xf32, #tpu.memory_space<smem>>
    %755 = vector.broadcast %754 : f32 to vector<8x16xf32>
    %756 = arith.mulf %755, %741 : vector<8x16xf32>
    %757 = arith.addf %723, %756 : vector<8x16xf32>
    %c164 = arith.constant 164 : index
    %758 = memref.load %arg3[%c164] : memref<288xf32, #tpu.memory_space<smem>>
    %759 = vector.broadcast %758 : f32 to vector<8x16xf32>
    %760 = arith.mulf %759, %741 : vector<8x16xf32>
    %761 = arith.addf %727, %760 : vector<8x16xf32>
    %c200 = arith.constant 200 : index
    %762 = memref.load %arg3[%c200] : memref<288xf32, #tpu.memory_space<smem>>
    %763 = vector.broadcast %762 : f32 to vector<8x16xf32>
    %764 = arith.mulf %763, %741 : vector<8x16xf32>
    %765 = arith.addf %731, %764 : vector<8x16xf32>
    %c236 = arith.constant 236 : index
    %766 = memref.load %arg3[%c236] : memref<288xf32, #tpu.memory_space<smem>>
    %767 = vector.broadcast %766 : f32 to vector<8x16xf32>
    %768 = arith.mulf %767, %741 : vector<8x16xf32>
    %769 = arith.addf %735, %768 : vector<8x16xf32>
    %c272 = arith.constant 272 : index
    %770 = memref.load %arg3[%c272] : memref<288xf32, #tpu.memory_space<smem>>
    %771 = vector.broadcast %770 : f32 to vector<8x16xf32>
    %772 = arith.mulf %771, %741 : vector<8x16xf32>
    %773 = arith.addf %739, %772 : vector<8x16xf32>
    %774 = vector.extract_strided_slice %27 {offsets = [2, 1, 0], sizes = [1, 8, 16], strides = [1, 1, 1]} : vector<4x10x18xf32> to vector<1x8x16xf32>
    %775 = vector.shape_cast %774 : vector<1x8x16xf32> to vector<8x16xf32>
    %c21 = arith.constant 21 : index
    %776 = memref.load %arg3[%c21] : memref<288xf32, #tpu.memory_space<smem>>
    %777 = vector.broadcast %776 : f32 to vector<8x16xf32>
    %778 = arith.mulf %777, %775 : vector<8x16xf32>
    %779 = arith.addf %745, %778 : vector<8x16xf32>
    %c57 = arith.constant 57 : index
    %780 = memref.load %arg3[%c57] : memref<288xf32, #tpu.memory_space<smem>>
    %781 = vector.broadcast %780 : f32 to vector<8x16xf32>
    %782 = arith.mulf %781, %775 : vector<8x16xf32>
    %783 = arith.addf %749, %782 : vector<8x16xf32>
    %c93 = arith.constant 93 : index
    %784 = memref.load %arg3[%c93] : memref<288xf32, #tpu.memory_space<smem>>
    %785 = vector.broadcast %784 : f32 to vector<8x16xf32>
    %786 = arith.mulf %785, %775 : vector<8x16xf32>
    %787 = arith.addf %753, %786 : vector<8x16xf32>
    %c129 = arith.constant 129 : index
    %788 = memref.load %arg3[%c129] : memref<288xf32, #tpu.memory_space<smem>>
    %789 = vector.broadcast %788 : f32 to vector<8x16xf32>
    %790 = arith.mulf %789, %775 : vector<8x16xf32>
    %791 = arith.addf %757, %790 : vector<8x16xf32>
    %c165 = arith.constant 165 : index
    %792 = memref.load %arg3[%c165] : memref<288xf32, #tpu.memory_space<smem>>
    %793 = vector.broadcast %792 : f32 to vector<8x16xf32>
    %794 = arith.mulf %793, %775 : vector<8x16xf32>
    %795 = arith.addf %761, %794 : vector<8x16xf32>
    %c201 = arith.constant 201 : index
    %796 = memref.load %arg3[%c201] : memref<288xf32, #tpu.memory_space<smem>>
    %797 = vector.broadcast %796 : f32 to vector<8x16xf32>
    %798 = arith.mulf %797, %775 : vector<8x16xf32>
    %799 = arith.addf %765, %798 : vector<8x16xf32>
    %c237 = arith.constant 237 : index
    %800 = memref.load %arg3[%c237] : memref<288xf32, #tpu.memory_space<smem>>
    %801 = vector.broadcast %800 : f32 to vector<8x16xf32>
    %802 = arith.mulf %801, %775 : vector<8x16xf32>
    %803 = arith.addf %769, %802 : vector<8x16xf32>
    %c273 = arith.constant 273 : index
    %804 = memref.load %arg3[%c273] : memref<288xf32, #tpu.memory_space<smem>>
    %805 = vector.broadcast %804 : f32 to vector<8x16xf32>
    %806 = arith.mulf %805, %775 : vector<8x16xf32>
    %807 = arith.addf %773, %806 : vector<8x16xf32>
    %808 = vector.extract_strided_slice %27 {offsets = [2, 1, 1], sizes = [1, 8, 16], strides = [1, 1, 1]} : vector<4x10x18xf32> to vector<1x8x16xf32>
    %809 = vector.shape_cast %808 : vector<1x8x16xf32> to vector<8x16xf32>
    %c22 = arith.constant 22 : index
    %810 = memref.load %arg3[%c22] : memref<288xf32, #tpu.memory_space<smem>>
    %811 = vector.broadcast %810 : f32 to vector<8x16xf32>
    %812 = arith.mulf %811, %809 : vector<8x16xf32>
    %813 = arith.addf %779, %812 : vector<8x16xf32>
    %c58 = arith.constant 58 : index
    %814 = memref.load %arg3[%c58] : memref<288xf32, #tpu.memory_space<smem>>
    %815 = vector.broadcast %814 : f32 to vector<8x16xf32>
    %816 = arith.mulf %815, %809 : vector<8x16xf32>
    %817 = arith.addf %783, %816 : vector<8x16xf32>
    %c94 = arith.constant 94 : index
    %818 = memref.load %arg3[%c94] : memref<288xf32, #tpu.memory_space<smem>>
    %819 = vector.broadcast %818 : f32 to vector<8x16xf32>
    %820 = arith.mulf %819, %809 : vector<8x16xf32>
    %821 = arith.addf %787, %820 : vector<8x16xf32>
    %c130 = arith.constant 130 : index
    %822 = memref.load %arg3[%c130] : memref<288xf32, #tpu.memory_space<smem>>
    %823 = vector.broadcast %822 : f32 to vector<8x16xf32>
    %824 = arith.mulf %823, %809 : vector<8x16xf32>
    %825 = arith.addf %791, %824 : vector<8x16xf32>
    %c166 = arith.constant 166 : index
    %826 = memref.load %arg3[%c166] : memref<288xf32, #tpu.memory_space<smem>>
    %827 = vector.broadcast %826 : f32 to vector<8x16xf32>
    %828 = arith.mulf %827, %809 : vector<8x16xf32>
    %829 = arith.addf %795, %828 : vector<8x16xf32>
    %c202 = arith.constant 202 : index
    %830 = memref.load %arg3[%c202] : memref<288xf32, #tpu.memory_space<smem>>
    %831 = vector.broadcast %830 : f32 to vector<8x16xf32>
    %832 = arith.mulf %831, %809 : vector<8x16xf32>
    %833 = arith.addf %799, %832 : vector<8x16xf32>
    %c238 = arith.constant 238 : index
    %834 = memref.load %arg3[%c238] : memref<288xf32, #tpu.memory_space<smem>>
    %835 = vector.broadcast %834 : f32 to vector<8x16xf32>
    %836 = arith.mulf %835, %809 : vector<8x16xf32>
    %837 = arith.addf %803, %836 : vector<8x16xf32>
    %c274 = arith.constant 274 : index
    %838 = memref.load %arg3[%c274] : memref<288xf32, #tpu.memory_space<smem>>
    %839 = vector.broadcast %838 : f32 to vector<8x16xf32>
    %840 = arith.mulf %839, %809 : vector<8x16xf32>
    %841 = arith.addf %807, %840 : vector<8x16xf32>
    %842 = vector.extract_strided_slice %27 {offsets = [2, 1, 2], sizes = [1, 8, 16], strides = [1, 1, 1]} : vector<4x10x18xf32> to vector<1x8x16xf32>
    %843 = vector.shape_cast %842 : vector<1x8x16xf32> to vector<8x16xf32>
    %c23 = arith.constant 23 : index
    %844 = memref.load %arg3[%c23] : memref<288xf32, #tpu.memory_space<smem>>
    %845 = vector.broadcast %844 : f32 to vector<8x16xf32>
    %846 = arith.mulf %845, %843 : vector<8x16xf32>
    %847 = arith.addf %813, %846 : vector<8x16xf32>
    %c59 = arith.constant 59 : index
    %848 = memref.load %arg3[%c59] : memref<288xf32, #tpu.memory_space<smem>>
    %849 = vector.broadcast %848 : f32 to vector<8x16xf32>
    %850 = arith.mulf %849, %843 : vector<8x16xf32>
    %851 = arith.addf %817, %850 : vector<8x16xf32>
    %c95 = arith.constant 95 : index
    %852 = memref.load %arg3[%c95] : memref<288xf32, #tpu.memory_space<smem>>
    %853 = vector.broadcast %852 : f32 to vector<8x16xf32>
    %854 = arith.mulf %853, %843 : vector<8x16xf32>
    %855 = arith.addf %821, %854 : vector<8x16xf32>
    %c131 = arith.constant 131 : index
    %856 = memref.load %arg3[%c131] : memref<288xf32, #tpu.memory_space<smem>>
    %857 = vector.broadcast %856 : f32 to vector<8x16xf32>
    %858 = arith.mulf %857, %843 : vector<8x16xf32>
    %859 = arith.addf %825, %858 : vector<8x16xf32>
    %c167 = arith.constant 167 : index
    %860 = memref.load %arg3[%c167] : memref<288xf32, #tpu.memory_space<smem>>
    %861 = vector.broadcast %860 : f32 to vector<8x16xf32>
    %862 = arith.mulf %861, %843 : vector<8x16xf32>
    %863 = arith.addf %829, %862 : vector<8x16xf32>
    %c203 = arith.constant 203 : index
    %864 = memref.load %arg3[%c203] : memref<288xf32, #tpu.memory_space<smem>>
    %865 = vector.broadcast %864 : f32 to vector<8x16xf32>
    %866 = arith.mulf %865, %843 : vector<8x16xf32>
    %867 = arith.addf %833, %866 : vector<8x16xf32>
    %c239 = arith.constant 239 : index
    %868 = memref.load %arg3[%c239] : memref<288xf32, #tpu.memory_space<smem>>
    %869 = vector.broadcast %868 : f32 to vector<8x16xf32>
    %870 = arith.mulf %869, %843 : vector<8x16xf32>
    %871 = arith.addf %837, %870 : vector<8x16xf32>
    %c275 = arith.constant 275 : index
    %872 = memref.load %arg3[%c275] : memref<288xf32, #tpu.memory_space<smem>>
    %873 = vector.broadcast %872 : f32 to vector<8x16xf32>
    %874 = arith.mulf %873, %843 : vector<8x16xf32>
    %875 = arith.addf %841, %874 : vector<8x16xf32>
    %876 = vector.extract_strided_slice %27 {offsets = [2, 2, 0], sizes = [1, 8, 16], strides = [1, 1, 1]} : vector<4x10x18xf32> to vector<1x8x16xf32>
    %877 = vector.shape_cast %876 : vector<1x8x16xf32> to vector<8x16xf32>
    %c24 = arith.constant 24 : index
    %878 = memref.load %arg3[%c24] : memref<288xf32, #tpu.memory_space<smem>>
    %879 = vector.broadcast %878 : f32 to vector<8x16xf32>
    %880 = arith.mulf %879, %877 : vector<8x16xf32>
    %881 = arith.addf %847, %880 : vector<8x16xf32>
    %c60 = arith.constant 60 : index
    %882 = memref.load %arg3[%c60] : memref<288xf32, #tpu.memory_space<smem>>
    %883 = vector.broadcast %882 : f32 to vector<8x16xf32>
    %884 = arith.mulf %883, %877 : vector<8x16xf32>
    %885 = arith.addf %851, %884 : vector<8x16xf32>
    %c96 = arith.constant 96 : index
    %886 = memref.load %arg3[%c96] : memref<288xf32, #tpu.memory_space<smem>>
    %887 = vector.broadcast %886 : f32 to vector<8x16xf32>
    %888 = arith.mulf %887, %877 : vector<8x16xf32>
    %889 = arith.addf %855, %888 : vector<8x16xf32>
    %c132 = arith.constant 132 : index
    %890 = memref.load %arg3[%c132] : memref<288xf32, #tpu.memory_space<smem>>
    %891 = vector.broadcast %890 : f32 to vector<8x16xf32>
    %892 = arith.mulf %891, %877 : vector<8x16xf32>
    %893 = arith.addf %859, %892 : vector<8x16xf32>
    %c168 = arith.constant 168 : index
    %894 = memref.load %arg3[%c168] : memref<288xf32, #tpu.memory_space<smem>>
    %895 = vector.broadcast %894 : f32 to vector<8x16xf32>
    %896 = arith.mulf %895, %877 : vector<8x16xf32>
    %897 = arith.addf %863, %896 : vector<8x16xf32>
    %c204 = arith.constant 204 : index
    %898 = memref.load %arg3[%c204] : memref<288xf32, #tpu.memory_space<smem>>
    %899 = vector.broadcast %898 : f32 to vector<8x16xf32>
    %900 = arith.mulf %899, %877 : vector<8x16xf32>
    %901 = arith.addf %867, %900 : vector<8x16xf32>
    %c240 = arith.constant 240 : index
    %902 = memref.load %arg3[%c240] : memref<288xf32, #tpu.memory_space<smem>>
    %903 = vector.broadcast %902 : f32 to vector<8x16xf32>
    %904 = arith.mulf %903, %877 : vector<8x16xf32>
    %905 = arith.addf %871, %904 : vector<8x16xf32>
    %c276 = arith.constant 276 : index
    %906 = memref.load %arg3[%c276] : memref<288xf32, #tpu.memory_space<smem>>
    %907 = vector.broadcast %906 : f32 to vector<8x16xf32>
    %908 = arith.mulf %907, %877 : vector<8x16xf32>
    %909 = arith.addf %875, %908 : vector<8x16xf32>
    %910 = vector.extract_strided_slice %27 {offsets = [2, 2, 1], sizes = [1, 8, 16], strides = [1, 1, 1]} : vector<4x10x18xf32> to vector<1x8x16xf32>
    %911 = vector.shape_cast %910 : vector<1x8x16xf32> to vector<8x16xf32>
    %c25 = arith.constant 25 : index
    %912 = memref.load %arg3[%c25] : memref<288xf32, #tpu.memory_space<smem>>
    %913 = vector.broadcast %912 : f32 to vector<8x16xf32>
    %914 = arith.mulf %913, %911 : vector<8x16xf32>
    %915 = arith.addf %881, %914 : vector<8x16xf32>
    %c61 = arith.constant 61 : index
    %916 = memref.load %arg3[%c61] : memref<288xf32, #tpu.memory_space<smem>>
    %917 = vector.broadcast %916 : f32 to vector<8x16xf32>
    %918 = arith.mulf %917, %911 : vector<8x16xf32>
    %919 = arith.addf %885, %918 : vector<8x16xf32>
    %c97 = arith.constant 97 : index
    %920 = memref.load %arg3[%c97] : memref<288xf32, #tpu.memory_space<smem>>
    %921 = vector.broadcast %920 : f32 to vector<8x16xf32>
    %922 = arith.mulf %921, %911 : vector<8x16xf32>
    %923 = arith.addf %889, %922 : vector<8x16xf32>
    %c133 = arith.constant 133 : index
    %924 = memref.load %arg3[%c133] : memref<288xf32, #tpu.memory_space<smem>>
    %925 = vector.broadcast %924 : f32 to vector<8x16xf32>
    %926 = arith.mulf %925, %911 : vector<8x16xf32>
    %927 = arith.addf %893, %926 : vector<8x16xf32>
    %c169 = arith.constant 169 : index
    %928 = memref.load %arg3[%c169] : memref<288xf32, #tpu.memory_space<smem>>
    %929 = vector.broadcast %928 : f32 to vector<8x16xf32>
    %930 = arith.mulf %929, %911 : vector<8x16xf32>
    %931 = arith.addf %897, %930 : vector<8x16xf32>
    %c205 = arith.constant 205 : index
    %932 = memref.load %arg3[%c205] : memref<288xf32, #tpu.memory_space<smem>>
    %933 = vector.broadcast %932 : f32 to vector<8x16xf32>
    %934 = arith.mulf %933, %911 : vector<8x16xf32>
    %935 = arith.addf %901, %934 : vector<8x16xf32>
    %c241 = arith.constant 241 : index
    %936 = memref.load %arg3[%c241] : memref<288xf32, #tpu.memory_space<smem>>
    %937 = vector.broadcast %936 : f32 to vector<8x16xf32>
    %938 = arith.mulf %937, %911 : vector<8x16xf32>
    %939 = arith.addf %905, %938 : vector<8x16xf32>
    %c277 = arith.constant 277 : index
    %940 = memref.load %arg3[%c277] : memref<288xf32, #tpu.memory_space<smem>>
    %941 = vector.broadcast %940 : f32 to vector<8x16xf32>
    %942 = arith.mulf %941, %911 : vector<8x16xf32>
    %943 = arith.addf %909, %942 : vector<8x16xf32>
    %944 = vector.extract_strided_slice %27 {offsets = [2, 2, 2], sizes = [1, 8, 16], strides = [1, 1, 1]} : vector<4x10x18xf32> to vector<1x8x16xf32>
    %945 = vector.shape_cast %944 : vector<1x8x16xf32> to vector<8x16xf32>
    %c26 = arith.constant 26 : index
    %946 = memref.load %arg3[%c26] : memref<288xf32, #tpu.memory_space<smem>>
    %947 = vector.broadcast %946 : f32 to vector<8x16xf32>
    %948 = arith.mulf %947, %945 : vector<8x16xf32>
    %949 = arith.addf %915, %948 : vector<8x16xf32>
    %c62 = arith.constant 62 : index
    %950 = memref.load %arg3[%c62] : memref<288xf32, #tpu.memory_space<smem>>
    %951 = vector.broadcast %950 : f32 to vector<8x16xf32>
    %952 = arith.mulf %951, %945 : vector<8x16xf32>
    %953 = arith.addf %919, %952 : vector<8x16xf32>
    %c98 = arith.constant 98 : index
    %954 = memref.load %arg3[%c98] : memref<288xf32, #tpu.memory_space<smem>>
    %955 = vector.broadcast %954 : f32 to vector<8x16xf32>
    %956 = arith.mulf %955, %945 : vector<8x16xf32>
    %957 = arith.addf %923, %956 : vector<8x16xf32>
    %c134 = arith.constant 134 : index
    %958 = memref.load %arg3[%c134] : memref<288xf32, #tpu.memory_space<smem>>
    %959 = vector.broadcast %958 : f32 to vector<8x16xf32>
    %960 = arith.mulf %959, %945 : vector<8x16xf32>
    %961 = arith.addf %927, %960 : vector<8x16xf32>
    %c170 = arith.constant 170 : index
    %962 = memref.load %arg3[%c170] : memref<288xf32, #tpu.memory_space<smem>>
    %963 = vector.broadcast %962 : f32 to vector<8x16xf32>
    %964 = arith.mulf %963, %945 : vector<8x16xf32>
    %965 = arith.addf %931, %964 : vector<8x16xf32>
    %c206 = arith.constant 206 : index
    %966 = memref.load %arg3[%c206] : memref<288xf32, #tpu.memory_space<smem>>
    %967 = vector.broadcast %966 : f32 to vector<8x16xf32>
    %968 = arith.mulf %967, %945 : vector<8x16xf32>
    %969 = arith.addf %935, %968 : vector<8x16xf32>
    %c242 = arith.constant 242 : index
    %970 = memref.load %arg3[%c242] : memref<288xf32, #tpu.memory_space<smem>>
    %971 = vector.broadcast %970 : f32 to vector<8x16xf32>
    %972 = arith.mulf %971, %945 : vector<8x16xf32>
    %973 = arith.addf %939, %972 : vector<8x16xf32>
    %c278 = arith.constant 278 : index
    %974 = memref.load %arg3[%c278] : memref<288xf32, #tpu.memory_space<smem>>
    %975 = vector.broadcast %974 : f32 to vector<8x16xf32>
    %976 = arith.mulf %975, %945 : vector<8x16xf32>
    %977 = arith.addf %943, %976 : vector<8x16xf32>
    %978 = vector.extract_strided_slice %27 {offsets = [3, 0, 0], sizes = [1, 8, 16], strides = [1, 1, 1]} : vector<4x10x18xf32> to vector<1x8x16xf32>
    %979 = vector.shape_cast %978 : vector<1x8x16xf32> to vector<8x16xf32>
    %c27 = arith.constant 27 : index
    %980 = memref.load %arg3[%c27] : memref<288xf32, #tpu.memory_space<smem>>
    %981 = vector.broadcast %980 : f32 to vector<8x16xf32>
    %982 = arith.mulf %981, %979 : vector<8x16xf32>
    %983 = arith.addf %949, %982 : vector<8x16xf32>
    %c63 = arith.constant 63 : index
    %984 = memref.load %arg3[%c63] : memref<288xf32, #tpu.memory_space<smem>>
    %985 = vector.broadcast %984 : f32 to vector<8x16xf32>
    %986 = arith.mulf %985, %979 : vector<8x16xf32>
    %987 = arith.addf %953, %986 : vector<8x16xf32>
    %c99 = arith.constant 99 : index
    %988 = memref.load %arg3[%c99] : memref<288xf32, #tpu.memory_space<smem>>
    %989 = vector.broadcast %988 : f32 to vector<8x16xf32>
    %990 = arith.mulf %989, %979 : vector<8x16xf32>
    %991 = arith.addf %957, %990 : vector<8x16xf32>
    %c135 = arith.constant 135 : index
    %992 = memref.load %arg3[%c135] : memref<288xf32, #tpu.memory_space<smem>>
    %993 = vector.broadcast %992 : f32 to vector<8x16xf32>
    %994 = arith.mulf %993, %979 : vector<8x16xf32>
    %995 = arith.addf %961, %994 : vector<8x16xf32>
    %c171 = arith.constant 171 : index
    %996 = memref.load %arg3[%c171] : memref<288xf32, #tpu.memory_space<smem>>
    %997 = vector.broadcast %996 : f32 to vector<8x16xf32>
    %998 = arith.mulf %997, %979 : vector<8x16xf32>
    %999 = arith.addf %965, %998 : vector<8x16xf32>
    %c207 = arith.constant 207 : index
    %1000 = memref.load %arg3[%c207] : memref<288xf32, #tpu.memory_space<smem>>
    %1001 = vector.broadcast %1000 : f32 to vector<8x16xf32>
    %1002 = arith.mulf %1001, %979 : vector<8x16xf32>
    %1003 = arith.addf %969, %1002 : vector<8x16xf32>
    %c243 = arith.constant 243 : index
    %1004 = memref.load %arg3[%c243] : memref<288xf32, #tpu.memory_space<smem>>
    %1005 = vector.broadcast %1004 : f32 to vector<8x16xf32>
    %1006 = arith.mulf %1005, %979 : vector<8x16xf32>
    %1007 = arith.addf %973, %1006 : vector<8x16xf32>
    %c279 = arith.constant 279 : index
    %1008 = memref.load %arg3[%c279] : memref<288xf32, #tpu.memory_space<smem>>
    %1009 = vector.broadcast %1008 : f32 to vector<8x16xf32>
    %1010 = arith.mulf %1009, %979 : vector<8x16xf32>
    %1011 = arith.addf %977, %1010 : vector<8x16xf32>
    %1012 = vector.extract_strided_slice %27 {offsets = [3, 0, 1], sizes = [1, 8, 16], strides = [1, 1, 1]} : vector<4x10x18xf32> to vector<1x8x16xf32>
    %1013 = vector.shape_cast %1012 : vector<1x8x16xf32> to vector<8x16xf32>
    %c28 = arith.constant 28 : index
    %1014 = memref.load %arg3[%c28] : memref<288xf32, #tpu.memory_space<smem>>
    %1015 = vector.broadcast %1014 : f32 to vector<8x16xf32>
    %1016 = arith.mulf %1015, %1013 : vector<8x16xf32>
    %1017 = arith.addf %983, %1016 : vector<8x16xf32>
    %c64 = arith.constant 64 : index
    %1018 = memref.load %arg3[%c64] : memref<288xf32, #tpu.memory_space<smem>>
    %1019 = vector.broadcast %1018 : f32 to vector<8x16xf32>
    %1020 = arith.mulf %1019, %1013 : vector<8x16xf32>
    %1021 = arith.addf %987, %1020 : vector<8x16xf32>
    %c100 = arith.constant 100 : index
    %1022 = memref.load %arg3[%c100] : memref<288xf32, #tpu.memory_space<smem>>
    %1023 = vector.broadcast %1022 : f32 to vector<8x16xf32>
    %1024 = arith.mulf %1023, %1013 : vector<8x16xf32>
    %1025 = arith.addf %991, %1024 : vector<8x16xf32>
    %c136 = arith.constant 136 : index
    %1026 = memref.load %arg3[%c136] : memref<288xf32, #tpu.memory_space<smem>>
    %1027 = vector.broadcast %1026 : f32 to vector<8x16xf32>
    %1028 = arith.mulf %1027, %1013 : vector<8x16xf32>
    %1029 = arith.addf %995, %1028 : vector<8x16xf32>
    %c172 = arith.constant 172 : index
    %1030 = memref.load %arg3[%c172] : memref<288xf32, #tpu.memory_space<smem>>
    %1031 = vector.broadcast %1030 : f32 to vector<8x16xf32>
    %1032 = arith.mulf %1031, %1013 : vector<8x16xf32>
    %1033 = arith.addf %999, %1032 : vector<8x16xf32>
    %c208 = arith.constant 208 : index
    %1034 = memref.load %arg3[%c208] : memref<288xf32, #tpu.memory_space<smem>>
    %1035 = vector.broadcast %1034 : f32 to vector<8x16xf32>
    %1036 = arith.mulf %1035, %1013 : vector<8x16xf32>
    %1037 = arith.addf %1003, %1036 : vector<8x16xf32>
    %c244 = arith.constant 244 : index
    %1038 = memref.load %arg3[%c244] : memref<288xf32, #tpu.memory_space<smem>>
    %1039 = vector.broadcast %1038 : f32 to vector<8x16xf32>
    %1040 = arith.mulf %1039, %1013 : vector<8x16xf32>
    %1041 = arith.addf %1007, %1040 : vector<8x16xf32>
    %c280 = arith.constant 280 : index
    %1042 = memref.load %arg3[%c280] : memref<288xf32, #tpu.memory_space<smem>>
    %1043 = vector.broadcast %1042 : f32 to vector<8x16xf32>
    %1044 = arith.mulf %1043, %1013 : vector<8x16xf32>
    %1045 = arith.addf %1011, %1044 : vector<8x16xf32>
    %1046 = vector.extract_strided_slice %27 {offsets = [3, 0, 2], sizes = [1, 8, 16], strides = [1, 1, 1]} : vector<4x10x18xf32> to vector<1x8x16xf32>
    %1047 = vector.shape_cast %1046 : vector<1x8x16xf32> to vector<8x16xf32>
    %c29 = arith.constant 29 : index
    %1048 = memref.load %arg3[%c29] : memref<288xf32, #tpu.memory_space<smem>>
    %1049 = vector.broadcast %1048 : f32 to vector<8x16xf32>
    %1050 = arith.mulf %1049, %1047 : vector<8x16xf32>
    %1051 = arith.addf %1017, %1050 : vector<8x16xf32>
    %c65 = arith.constant 65 : index
    %1052 = memref.load %arg3[%c65] : memref<288xf32, #tpu.memory_space<smem>>
    %1053 = vector.broadcast %1052 : f32 to vector<8x16xf32>
    %1054 = arith.mulf %1053, %1047 : vector<8x16xf32>
    %1055 = arith.addf %1021, %1054 : vector<8x16xf32>
    %c101 = arith.constant 101 : index
    %1056 = memref.load %arg3[%c101] : memref<288xf32, #tpu.memory_space<smem>>
    %1057 = vector.broadcast %1056 : f32 to vector<8x16xf32>
    %1058 = arith.mulf %1057, %1047 : vector<8x16xf32>
    %1059 = arith.addf %1025, %1058 : vector<8x16xf32>
    %c137 = arith.constant 137 : index
    %1060 = memref.load %arg3[%c137] : memref<288xf32, #tpu.memory_space<smem>>
    %1061 = vector.broadcast %1060 : f32 to vector<8x16xf32>
    %1062 = arith.mulf %1061, %1047 : vector<8x16xf32>
    %1063 = arith.addf %1029, %1062 : vector<8x16xf32>
    %c173 = arith.constant 173 : index
    %1064 = memref.load %arg3[%c173] : memref<288xf32, #tpu.memory_space<smem>>
    %1065 = vector.broadcast %1064 : f32 to vector<8x16xf32>
    %1066 = arith.mulf %1065, %1047 : vector<8x16xf32>
    %1067 = arith.addf %1033, %1066 : vector<8x16xf32>
    %c209 = arith.constant 209 : index
    %1068 = memref.load %arg3[%c209] : memref<288xf32, #tpu.memory_space<smem>>
    %1069 = vector.broadcast %1068 : f32 to vector<8x16xf32>
    %1070 = arith.mulf %1069, %1047 : vector<8x16xf32>
    %1071 = arith.addf %1037, %1070 : vector<8x16xf32>
    %c245 = arith.constant 245 : index
    %1072 = memref.load %arg3[%c245] : memref<288xf32, #tpu.memory_space<smem>>
    %1073 = vector.broadcast %1072 : f32 to vector<8x16xf32>
    %1074 = arith.mulf %1073, %1047 : vector<8x16xf32>
    %1075 = arith.addf %1041, %1074 : vector<8x16xf32>
    %c281 = arith.constant 281 : index
    %1076 = memref.load %arg3[%c281] : memref<288xf32, #tpu.memory_space<smem>>
    %1077 = vector.broadcast %1076 : f32 to vector<8x16xf32>
    %1078 = arith.mulf %1077, %1047 : vector<8x16xf32>
    %1079 = arith.addf %1045, %1078 : vector<8x16xf32>
    %1080 = vector.extract_strided_slice %27 {offsets = [3, 1, 0], sizes = [1, 8, 16], strides = [1, 1, 1]} : vector<4x10x18xf32> to vector<1x8x16xf32>
    %1081 = vector.shape_cast %1080 : vector<1x8x16xf32> to vector<8x16xf32>
    %c30 = arith.constant 30 : index
    %1082 = memref.load %arg3[%c30] : memref<288xf32, #tpu.memory_space<smem>>
    %1083 = vector.broadcast %1082 : f32 to vector<8x16xf32>
    %1084 = arith.mulf %1083, %1081 : vector<8x16xf32>
    %1085 = arith.addf %1051, %1084 : vector<8x16xf32>
    %c66 = arith.constant 66 : index
    %1086 = memref.load %arg3[%c66] : memref<288xf32, #tpu.memory_space<smem>>
    %1087 = vector.broadcast %1086 : f32 to vector<8x16xf32>
    %1088 = arith.mulf %1087, %1081 : vector<8x16xf32>
    %1089 = arith.addf %1055, %1088 : vector<8x16xf32>
    %c102 = arith.constant 102 : index
    %1090 = memref.load %arg3[%c102] : memref<288xf32, #tpu.memory_space<smem>>
    %1091 = vector.broadcast %1090 : f32 to vector<8x16xf32>
    %1092 = arith.mulf %1091, %1081 : vector<8x16xf32>
    %1093 = arith.addf %1059, %1092 : vector<8x16xf32>
    %c138 = arith.constant 138 : index
    %1094 = memref.load %arg3[%c138] : memref<288xf32, #tpu.memory_space<smem>>
    %1095 = vector.broadcast %1094 : f32 to vector<8x16xf32>
    %1096 = arith.mulf %1095, %1081 : vector<8x16xf32>
    %1097 = arith.addf %1063, %1096 : vector<8x16xf32>
    %c174 = arith.constant 174 : index
    %1098 = memref.load %arg3[%c174] : memref<288xf32, #tpu.memory_space<smem>>
    %1099 = vector.broadcast %1098 : f32 to vector<8x16xf32>
    %1100 = arith.mulf %1099, %1081 : vector<8x16xf32>
    %1101 = arith.addf %1067, %1100 : vector<8x16xf32>
    %c210 = arith.constant 210 : index
    %1102 = memref.load %arg3[%c210] : memref<288xf32, #tpu.memory_space<smem>>
    %1103 = vector.broadcast %1102 : f32 to vector<8x16xf32>
    %1104 = arith.mulf %1103, %1081 : vector<8x16xf32>
    %1105 = arith.addf %1071, %1104 : vector<8x16xf32>
    %c246 = arith.constant 246 : index
    %1106 = memref.load %arg3[%c246] : memref<288xf32, #tpu.memory_space<smem>>
    %1107 = vector.broadcast %1106 : f32 to vector<8x16xf32>
    %1108 = arith.mulf %1107, %1081 : vector<8x16xf32>
    %1109 = arith.addf %1075, %1108 : vector<8x16xf32>
    %c282 = arith.constant 282 : index
    %1110 = memref.load %arg3[%c282] : memref<288xf32, #tpu.memory_space<smem>>
    %1111 = vector.broadcast %1110 : f32 to vector<8x16xf32>
    %1112 = arith.mulf %1111, %1081 : vector<8x16xf32>
    %1113 = arith.addf %1079, %1112 : vector<8x16xf32>
    %1114 = vector.extract_strided_slice %27 {offsets = [3, 1, 1], sizes = [1, 8, 16], strides = [1, 1, 1]} : vector<4x10x18xf32> to vector<1x8x16xf32>
    %1115 = vector.shape_cast %1114 : vector<1x8x16xf32> to vector<8x16xf32>
    %c31 = arith.constant 31 : index
    %1116 = memref.load %arg3[%c31] : memref<288xf32, #tpu.memory_space<smem>>
    %1117 = vector.broadcast %1116 : f32 to vector<8x16xf32>
    %1118 = arith.mulf %1117, %1115 : vector<8x16xf32>
    %1119 = arith.addf %1085, %1118 : vector<8x16xf32>
    %c67 = arith.constant 67 : index
    %1120 = memref.load %arg3[%c67] : memref<288xf32, #tpu.memory_space<smem>>
    %1121 = vector.broadcast %1120 : f32 to vector<8x16xf32>
    %1122 = arith.mulf %1121, %1115 : vector<8x16xf32>
    %1123 = arith.addf %1089, %1122 : vector<8x16xf32>
    %c103 = arith.constant 103 : index
    %1124 = memref.load %arg3[%c103] : memref<288xf32, #tpu.memory_space<smem>>
    %1125 = vector.broadcast %1124 : f32 to vector<8x16xf32>
    %1126 = arith.mulf %1125, %1115 : vector<8x16xf32>
    %1127 = arith.addf %1093, %1126 : vector<8x16xf32>
    %c139 = arith.constant 139 : index
    %1128 = memref.load %arg3[%c139] : memref<288xf32, #tpu.memory_space<smem>>
    %1129 = vector.broadcast %1128 : f32 to vector<8x16xf32>
    %1130 = arith.mulf %1129, %1115 : vector<8x16xf32>
    %1131 = arith.addf %1097, %1130 : vector<8x16xf32>
    %c175 = arith.constant 175 : index
    %1132 = memref.load %arg3[%c175] : memref<288xf32, #tpu.memory_space<smem>>
    %1133 = vector.broadcast %1132 : f32 to vector<8x16xf32>
    %1134 = arith.mulf %1133, %1115 : vector<8x16xf32>
    %1135 = arith.addf %1101, %1134 : vector<8x16xf32>
    %c211 = arith.constant 211 : index
    %1136 = memref.load %arg3[%c211] : memref<288xf32, #tpu.memory_space<smem>>
    %1137 = vector.broadcast %1136 : f32 to vector<8x16xf32>
    %1138 = arith.mulf %1137, %1115 : vector<8x16xf32>
    %1139 = arith.addf %1105, %1138 : vector<8x16xf32>
    %c247 = arith.constant 247 : index
    %1140 = memref.load %arg3[%c247] : memref<288xf32, #tpu.memory_space<smem>>
    %1141 = vector.broadcast %1140 : f32 to vector<8x16xf32>
    %1142 = arith.mulf %1141, %1115 : vector<8x16xf32>
    %1143 = arith.addf %1109, %1142 : vector<8x16xf32>
    %c283 = arith.constant 283 : index
    %1144 = memref.load %arg3[%c283] : memref<288xf32, #tpu.memory_space<smem>>
    %1145 = vector.broadcast %1144 : f32 to vector<8x16xf32>
    %1146 = arith.mulf %1145, %1115 : vector<8x16xf32>
    %1147 = arith.addf %1113, %1146 : vector<8x16xf32>
    %1148 = vector.extract_strided_slice %27 {offsets = [3, 1, 2], sizes = [1, 8, 16], strides = [1, 1, 1]} : vector<4x10x18xf32> to vector<1x8x16xf32>
    %1149 = vector.shape_cast %1148 : vector<1x8x16xf32> to vector<8x16xf32>
    %c32 = arith.constant 32 : index
    %1150 = memref.load %arg3[%c32] : memref<288xf32, #tpu.memory_space<smem>>
    %1151 = vector.broadcast %1150 : f32 to vector<8x16xf32>
    %1152 = arith.mulf %1151, %1149 : vector<8x16xf32>
    %1153 = arith.addf %1119, %1152 : vector<8x16xf32>
    %c68 = arith.constant 68 : index
    %1154 = memref.load %arg3[%c68] : memref<288xf32, #tpu.memory_space<smem>>
    %1155 = vector.broadcast %1154 : f32 to vector<8x16xf32>
    %1156 = arith.mulf %1155, %1149 : vector<8x16xf32>
    %1157 = arith.addf %1123, %1156 : vector<8x16xf32>
    %c104 = arith.constant 104 : index
    %1158 = memref.load %arg3[%c104] : memref<288xf32, #tpu.memory_space<smem>>
    %1159 = vector.broadcast %1158 : f32 to vector<8x16xf32>
    %1160 = arith.mulf %1159, %1149 : vector<8x16xf32>
    %1161 = arith.addf %1127, %1160 : vector<8x16xf32>
    %c140 = arith.constant 140 : index
    %1162 = memref.load %arg3[%c140] : memref<288xf32, #tpu.memory_space<smem>>
    %1163 = vector.broadcast %1162 : f32 to vector<8x16xf32>
    %1164 = arith.mulf %1163, %1149 : vector<8x16xf32>
    %1165 = arith.addf %1131, %1164 : vector<8x16xf32>
    %c176 = arith.constant 176 : index
    %1166 = memref.load %arg3[%c176] : memref<288xf32, #tpu.memory_space<smem>>
    %1167 = vector.broadcast %1166 : f32 to vector<8x16xf32>
    %1168 = arith.mulf %1167, %1149 : vector<8x16xf32>
    %1169 = arith.addf %1135, %1168 : vector<8x16xf32>
    %c212 = arith.constant 212 : index
    %1170 = memref.load %arg3[%c212] : memref<288xf32, #tpu.memory_space<smem>>
    %1171 = vector.broadcast %1170 : f32 to vector<8x16xf32>
    %1172 = arith.mulf %1171, %1149 : vector<8x16xf32>
    %1173 = arith.addf %1139, %1172 : vector<8x16xf32>
    %c248 = arith.constant 248 : index
    %1174 = memref.load %arg3[%c248] : memref<288xf32, #tpu.memory_space<smem>>
    %1175 = vector.broadcast %1174 : f32 to vector<8x16xf32>
    %1176 = arith.mulf %1175, %1149 : vector<8x16xf32>
    %1177 = arith.addf %1143, %1176 : vector<8x16xf32>
    %c284 = arith.constant 284 : index
    %1178 = memref.load %arg3[%c284] : memref<288xf32, #tpu.memory_space<smem>>
    %1179 = vector.broadcast %1178 : f32 to vector<8x16xf32>
    %1180 = arith.mulf %1179, %1149 : vector<8x16xf32>
    %1181 = arith.addf %1147, %1180 : vector<8x16xf32>
    %1182 = vector.extract_strided_slice %27 {offsets = [3, 2, 0], sizes = [1, 8, 16], strides = [1, 1, 1]} : vector<4x10x18xf32> to vector<1x8x16xf32>
    %1183 = vector.shape_cast %1182 : vector<1x8x16xf32> to vector<8x16xf32>
    %c33 = arith.constant 33 : index
    %1184 = memref.load %arg3[%c33] : memref<288xf32, #tpu.memory_space<smem>>
    %1185 = vector.broadcast %1184 : f32 to vector<8x16xf32>
    %1186 = arith.mulf %1185, %1183 : vector<8x16xf32>
    %1187 = arith.addf %1153, %1186 : vector<8x16xf32>
    %c69 = arith.constant 69 : index
    %1188 = memref.load %arg3[%c69] : memref<288xf32, #tpu.memory_space<smem>>
    %1189 = vector.broadcast %1188 : f32 to vector<8x16xf32>
    %1190 = arith.mulf %1189, %1183 : vector<8x16xf32>
    %1191 = arith.addf %1157, %1190 : vector<8x16xf32>
    %c105 = arith.constant 105 : index
    %1192 = memref.load %arg3[%c105] : memref<288xf32, #tpu.memory_space<smem>>
    %1193 = vector.broadcast %1192 : f32 to vector<8x16xf32>
    %1194 = arith.mulf %1193, %1183 : vector<8x16xf32>
    %1195 = arith.addf %1161, %1194 : vector<8x16xf32>
    %c141 = arith.constant 141 : index
    %1196 = memref.load %arg3[%c141] : memref<288xf32, #tpu.memory_space<smem>>
    %1197 = vector.broadcast %1196 : f32 to vector<8x16xf32>
    %1198 = arith.mulf %1197, %1183 : vector<8x16xf32>
    %1199 = arith.addf %1165, %1198 : vector<8x16xf32>
    %c177 = arith.constant 177 : index
    %1200 = memref.load %arg3[%c177] : memref<288xf32, #tpu.memory_space<smem>>
    %1201 = vector.broadcast %1200 : f32 to vector<8x16xf32>
    %1202 = arith.mulf %1201, %1183 : vector<8x16xf32>
    %1203 = arith.addf %1169, %1202 : vector<8x16xf32>
    %c213 = arith.constant 213 : index
    %1204 = memref.load %arg3[%c213] : memref<288xf32, #tpu.memory_space<smem>>
    %1205 = vector.broadcast %1204 : f32 to vector<8x16xf32>
    %1206 = arith.mulf %1205, %1183 : vector<8x16xf32>
    %1207 = arith.addf %1173, %1206 : vector<8x16xf32>
    %c249 = arith.constant 249 : index
    %1208 = memref.load %arg3[%c249] : memref<288xf32, #tpu.memory_space<smem>>
    %1209 = vector.broadcast %1208 : f32 to vector<8x16xf32>
    %1210 = arith.mulf %1209, %1183 : vector<8x16xf32>
    %1211 = arith.addf %1177, %1210 : vector<8x16xf32>
    %c285 = arith.constant 285 : index
    %1212 = memref.load %arg3[%c285] : memref<288xf32, #tpu.memory_space<smem>>
    %1213 = vector.broadcast %1212 : f32 to vector<8x16xf32>
    %1214 = arith.mulf %1213, %1183 : vector<8x16xf32>
    %1215 = arith.addf %1181, %1214 : vector<8x16xf32>
    %1216 = vector.extract_strided_slice %27 {offsets = [3, 2, 1], sizes = [1, 8, 16], strides = [1, 1, 1]} : vector<4x10x18xf32> to vector<1x8x16xf32>
    %1217 = vector.shape_cast %1216 : vector<1x8x16xf32> to vector<8x16xf32>
    %c34 = arith.constant 34 : index
    %1218 = memref.load %arg3[%c34] : memref<288xf32, #tpu.memory_space<smem>>
    %1219 = vector.broadcast %1218 : f32 to vector<8x16xf32>
    %1220 = arith.mulf %1219, %1217 : vector<8x16xf32>
    %1221 = arith.addf %1187, %1220 : vector<8x16xf32>
    %c70 = arith.constant 70 : index
    %1222 = memref.load %arg3[%c70] : memref<288xf32, #tpu.memory_space<smem>>
    %1223 = vector.broadcast %1222 : f32 to vector<8x16xf32>
    %1224 = arith.mulf %1223, %1217 : vector<8x16xf32>
    %1225 = arith.addf %1191, %1224 : vector<8x16xf32>
    %c106 = arith.constant 106 : index
    %1226 = memref.load %arg3[%c106] : memref<288xf32, #tpu.memory_space<smem>>
    %1227 = vector.broadcast %1226 : f32 to vector<8x16xf32>
    %1228 = arith.mulf %1227, %1217 : vector<8x16xf32>
    %1229 = arith.addf %1195, %1228 : vector<8x16xf32>
    %c142 = arith.constant 142 : index
    %1230 = memref.load %arg3[%c142] : memref<288xf32, #tpu.memory_space<smem>>
    %1231 = vector.broadcast %1230 : f32 to vector<8x16xf32>
    %1232 = arith.mulf %1231, %1217 : vector<8x16xf32>
    %1233 = arith.addf %1199, %1232 : vector<8x16xf32>
    %c178 = arith.constant 178 : index
    %1234 = memref.load %arg3[%c178] : memref<288xf32, #tpu.memory_space<smem>>
    %1235 = vector.broadcast %1234 : f32 to vector<8x16xf32>
    %1236 = arith.mulf %1235, %1217 : vector<8x16xf32>
    %1237 = arith.addf %1203, %1236 : vector<8x16xf32>
    %c214 = arith.constant 214 : index
    %1238 = memref.load %arg3[%c214] : memref<288xf32, #tpu.memory_space<smem>>
    %1239 = vector.broadcast %1238 : f32 to vector<8x16xf32>
    %1240 = arith.mulf %1239, %1217 : vector<8x16xf32>
    %1241 = arith.addf %1207, %1240 : vector<8x16xf32>
    %c250 = arith.constant 250 : index
    %1242 = memref.load %arg3[%c250] : memref<288xf32, #tpu.memory_space<smem>>
    %1243 = vector.broadcast %1242 : f32 to vector<8x16xf32>
    %1244 = arith.mulf %1243, %1217 : vector<8x16xf32>
    %1245 = arith.addf %1211, %1244 : vector<8x16xf32>
    %c286 = arith.constant 286 : index
    %1246 = memref.load %arg3[%c286] : memref<288xf32, #tpu.memory_space<smem>>
    %1247 = vector.broadcast %1246 : f32 to vector<8x16xf32>
    %1248 = arith.mulf %1247, %1217 : vector<8x16xf32>
    %1249 = arith.addf %1215, %1248 : vector<8x16xf32>
    %1250 = vector.extract_strided_slice %27 {offsets = [3, 2, 2], sizes = [1, 8, 16], strides = [1, 1, 1]} : vector<4x10x18xf32> to vector<1x8x16xf32>
    %1251 = vector.shape_cast %1250 : vector<1x8x16xf32> to vector<8x16xf32>
    %c35 = arith.constant 35 : index
    %1252 = memref.load %arg3[%c35] : memref<288xf32, #tpu.memory_space<smem>>
    %1253 = vector.broadcast %1252 : f32 to vector<8x16xf32>
    %1254 = arith.mulf %1253, %1251 : vector<8x16xf32>
    %1255 = arith.addf %1221, %1254 : vector<8x16xf32>
    %c71 = arith.constant 71 : index
    %1256 = memref.load %arg3[%c71] : memref<288xf32, #tpu.memory_space<smem>>
    %1257 = vector.broadcast %1256 : f32 to vector<8x16xf32>
    %1258 = arith.mulf %1257, %1251 : vector<8x16xf32>
    %1259 = arith.addf %1225, %1258 : vector<8x16xf32>
    %c107 = arith.constant 107 : index
    %1260 = memref.load %arg3[%c107] : memref<288xf32, #tpu.memory_space<smem>>
    %1261 = vector.broadcast %1260 : f32 to vector<8x16xf32>
    %1262 = arith.mulf %1261, %1251 : vector<8x16xf32>
    %1263 = arith.addf %1229, %1262 : vector<8x16xf32>
    %c143 = arith.constant 143 : index
    %1264 = memref.load %arg3[%c143] : memref<288xf32, #tpu.memory_space<smem>>
    %1265 = vector.broadcast %1264 : f32 to vector<8x16xf32>
    %1266 = arith.mulf %1265, %1251 : vector<8x16xf32>
    %1267 = arith.addf %1233, %1266 : vector<8x16xf32>
    %c179 = arith.constant 179 : index
    %1268 = memref.load %arg3[%c179] : memref<288xf32, #tpu.memory_space<smem>>
    %1269 = vector.broadcast %1268 : f32 to vector<8x16xf32>
    %1270 = arith.mulf %1269, %1251 : vector<8x16xf32>
    %1271 = arith.addf %1237, %1270 : vector<8x16xf32>
    %c215 = arith.constant 215 : index
    %1272 = memref.load %arg3[%c215] : memref<288xf32, #tpu.memory_space<smem>>
    %1273 = vector.broadcast %1272 : f32 to vector<8x16xf32>
    %1274 = arith.mulf %1273, %1251 : vector<8x16xf32>
    %1275 = arith.addf %1241, %1274 : vector<8x16xf32>
    %c251 = arith.constant 251 : index
    %1276 = memref.load %arg3[%c251] : memref<288xf32, #tpu.memory_space<smem>>
    %1277 = vector.broadcast %1276 : f32 to vector<8x16xf32>
    %1278 = arith.mulf %1277, %1251 : vector<8x16xf32>
    %1279 = arith.addf %1245, %1278 : vector<8x16xf32>
    %c287 = arith.constant 287 : index
    %1280 = memref.load %arg3[%c287] : memref<288xf32, #tpu.memory_space<smem>>
    %1281 = vector.broadcast %1280 : f32 to vector<8x16xf32>
    %1282 = arith.mulf %1281, %1251 : vector<8x16xf32>
    %1283 = arith.addf %1249, %1282 : vector<8x16xf32>
    %c0_28 = arith.constant 0 : index
    %c0_29 = arith.constant 0 : index
    %c0_30 = arith.constant 0 : index
    %c0_31 = arith.constant 0 : index
    %1284 = vector.load %arg5[%c0_28, %c0_29, %c0_30, %c0_31] : memref<1x8x8x16xf32, #tpu.memory_space<vmem>>, vector<1x1x8x16xf32>
    %1285 = vector.shape_cast %1284 : vector<1x1x8x16xf32> to vector<8x16xf32>
    %1286 = vector.shape_cast %1255 : vector<8x16xf32> to vector<1x1x8x16xf32>
    tpu.vector_store %arg5[%c0_28, %c0_29, %c0_30, %c0_31], %1286 {strides = array<i32>} : memref<1x8x8x16xf32, #tpu.memory_space<vmem>>, vector<1x1x8x16xf32>,
    %c0_32 = arith.constant 0 : index
    %c1_33 = arith.constant 1 : index
    %c0_34 = arith.constant 0 : index
    %c0_35 = arith.constant 0 : index
    %1287 = vector.load %arg5[%c0_32, %c1_33, %c0_34, %c0_35] : memref<1x8x8x16xf32, #tpu.memory_space<vmem>>, vector<1x1x8x16xf32>
    %1288 = vector.shape_cast %1287 : vector<1x1x8x16xf32> to vector<8x16xf32>
    %1289 = vector.shape_cast %1259 : vector<8x16xf32> to vector<1x1x8x16xf32>
    tpu.vector_store %arg5[%c0_32, %c1_33, %c0_34, %c0_35], %1289 {strides = array<i32>} : memref<1x8x8x16xf32, #tpu.memory_space<vmem>>, vector<1x1x8x16xf32>,
    %c0_36 = arith.constant 0 : index
    %c2_37 = arith.constant 2 : index
    %c0_38 = arith.constant 0 : index
    %c0_39 = arith.constant 0 : index
    %1290 = vector.load %arg5[%c0_36, %c2_37, %c0_38, %c0_39] : memref<1x8x8x16xf32, #tpu.memory_space<vmem>>, vector<1x1x8x16xf32>
    %1291 = vector.shape_cast %1290 : vector<1x1x8x16xf32> to vector<8x16xf32>
    %1292 = vector.shape_cast %1263 : vector<8x16xf32> to vector<1x1x8x16xf32>
    tpu.vector_store %arg5[%c0_36, %c2_37, %c0_38, %c0_39], %1292 {strides = array<i32>} : memref<1x8x8x16xf32, #tpu.memory_space<vmem>>, vector<1x1x8x16xf32>,
    %c0_40 = arith.constant 0 : index
    %c3_41 = arith.constant 3 : index
    %c0_42 = arith.constant 0 : index
    %c0_43 = arith.constant 0 : index
    %1293 = vector.load %arg5[%c0_40, %c3_41, %c0_42, %c0_43] : memref<1x8x8x16xf32, #tpu.memory_space<vmem>>, vector<1x1x8x16xf32>
    %1294 = vector.shape_cast %1293 : vector<1x1x8x16xf32> to vector<8x16xf32>
    %1295 = vector.shape_cast %1267 : vector<8x16xf32> to vector<1x1x8x16xf32>
    tpu.vector_store %arg5[%c0_40, %c3_41, %c0_42, %c0_43], %1295 {strides = array<i32>} : memref<1x8x8x16xf32, #tpu.memory_space<vmem>>, vector<1x1x8x16xf32>,
    %c0_44 = arith.constant 0 : index
    %c4_45 = arith.constant 4 : index
    %c0_46 = arith.constant 0 : index
    %c0_47 = arith.constant 0 : index
    %1296 = vector.load %arg5[%c0_44, %c4_45, %c0_46, %c0_47] : memref<1x8x8x16xf32, #tpu.memory_space<vmem>>, vector<1x1x8x16xf32>
    %1297 = vector.shape_cast %1296 : vector<1x1x8x16xf32> to vector<8x16xf32>
    %1298 = vector.shape_cast %1271 : vector<8x16xf32> to vector<1x1x8x16xf32>
    tpu.vector_store %arg5[%c0_44, %c4_45, %c0_46, %c0_47], %1298 {strides = array<i32>} : memref<1x8x8x16xf32, #tpu.memory_space<vmem>>, vector<1x1x8x16xf32>,
    %c0_48 = arith.constant 0 : index
    %c5_49 = arith.constant 5 : index
    %c0_50 = arith.constant 0 : index
    %c0_51 = arith.constant 0 : index
    %1299 = vector.load %arg5[%c0_48, %c5_49, %c0_50, %c0_51] : memref<1x8x8x16xf32, #tpu.memory_space<vmem>>, vector<1x1x8x16xf32>
    %1300 = vector.shape_cast %1299 : vector<1x1x8x16xf32> to vector<8x16xf32>
    %1301 = vector.shape_cast %1275 : vector<8x16xf32> to vector<1x1x8x16xf32>
    tpu.vector_store %arg5[%c0_48, %c5_49, %c0_50, %c0_51], %1301 {strides = array<i32>} : memref<1x8x8x16xf32, #tpu.memory_space<vmem>>, vector<1x1x8x16xf32>,
    %c0_52 = arith.constant 0 : index
    %c6_53 = arith.constant 6 : index
    %c0_54 = arith.constant 0 : index
    %c0_55 = arith.constant 0 : index
    %1302 = vector.load %arg5[%c0_52, %c6_53, %c0_54, %c0_55] : memref<1x8x8x16xf32, #tpu.memory_space<vmem>>, vector<1x1x8x16xf32>
    %1303 = vector.shape_cast %1302 : vector<1x1x8x16xf32> to vector<8x16xf32>
    %1304 = vector.shape_cast %1279 : vector<8x16xf32> to vector<1x1x8x16xf32>
    tpu.vector_store %arg5[%c0_52, %c6_53, %c0_54, %c0_55], %1304 {strides = array<i32>} : memref<1x8x8x16xf32, #tpu.memory_space<vmem>>, vector<1x1x8x16xf32>,
    %c0_56 = arith.constant 0 : index
    %c7_57 = arith.constant 7 : index
    %c0_58 = arith.constant 0 : index
    %c0_59 = arith.constant 0 : index
    %1305 = vector.load %arg5[%c0_56, %c7_57, %c0_58, %c0_59] : memref<1x8x8x16xf32, #tpu.memory_space<vmem>>, vector<1x1x8x16xf32>
    %1306 = vector.shape_cast %1305 : vector<1x1x8x16xf32> to vector<8x16xf32>
    %1307 = vector.shape_cast %1283 : vector<8x16xf32> to vector<1x1x8x16xf32>
    tpu.vector_store %arg5[%c0_56, %c7_57, %c0_58, %c0_59], %1307 {strides = array<i32>} : memref<1x8x8x16xf32, #tpu.memory_space<vmem>>, vector<1x1x8x16xf32>,
    %cst_60 = arith.constant dense<0.000000e+00> : vector<8xf32>
    %1308 = vector.multi_reduction <add>, %1255, %cst_60 [1] : vector<8x16xf32> to vector<8xf32>
    %1309 = vector.shape_cast %1308 : vector<8xf32> to vector<8x1xf32>
    %cst_61 = arith.constant dense<0.000000e+00> : vector<1xf32>
    %1310 = vector.multi_reduction <add>, %1309, %cst_61 [0] : vector<8x1xf32> to vector<1xf32>
    %1311 = vector.shape_cast %1310 : vector<1xf32> to vector<1x1xf32>
    %cst_62 = arith.constant dense<0.000000e+00> : vector<8xf32>
    %1312 = vector.multi_reduction <add>, %1259, %cst_62 [1] : vector<8x16xf32> to vector<8xf32>
    %1313 = vector.shape_cast %1312 : vector<8xf32> to vector<8x1xf32>
    %cst_63 = arith.constant dense<0.000000e+00> : vector<1xf32>
    %1314 = vector.multi_reduction <add>, %1313, %cst_63 [0] : vector<8x1xf32> to vector<1xf32>
    %1315 = vector.shape_cast %1314 : vector<1xf32> to vector<1x1xf32>
    %cst_64 = arith.constant dense<0.000000e+00> : vector<8xf32>
    %1316 = vector.multi_reduction <add>, %1263, %cst_64 [1] : vector<8x16xf32> to vector<8xf32>
    %1317 = vector.shape_cast %1316 : vector<8xf32> to vector<8x1xf32>
    %cst_65 = arith.constant dense<0.000000e+00> : vector<1xf32>
    %1318 = vector.multi_reduction <add>, %1317, %cst_65 [0] : vector<8x1xf32> to vector<1xf32>
    %1319 = vector.shape_cast %1318 : vector<1xf32> to vector<1x1xf32>
    %cst_66 = arith.constant dense<0.000000e+00> : vector<8xf32>
    %1320 = vector.multi_reduction <add>, %1267, %cst_66 [1] : vector<8x16xf32> to vector<8xf32>
    %1321 = vector.shape_cast %1320 : vector<8xf32> to vector<8x1xf32>
    %cst_67 = arith.constant dense<0.000000e+00> : vector<1xf32>
    %1322 = vector.multi_reduction <add>, %1321, %cst_67 [0] : vector<8x1xf32> to vector<1xf32>
    %1323 = vector.shape_cast %1322 : vector<1xf32> to vector<1x1xf32>
    %cst_68 = arith.constant dense<0.000000e+00> : vector<8xf32>
    %1324 = vector.multi_reduction <add>, %1271, %cst_68 [1] : vector<8x16xf32> to vector<8xf32>
    %1325 = vector.shape_cast %1324 : vector<8xf32> to vector<8x1xf32>
    %cst_69 = arith.constant dense<0.000000e+00> : vector<1xf32>
    %1326 = vector.multi_reduction <add>, %1325, %cst_69 [0] : vector<8x1xf32> to vector<1xf32>
    %1327 = vector.shape_cast %1326 : vector<1xf32> to vector<1x1xf32>
    %cst_70 = arith.constant dense<0.000000e+00> : vector<8xf32>
    %1328 = vector.multi_reduction <add>, %1275, %cst_70 [1] : vector<8x16xf32> to vector<8xf32>
    %1329 = vector.shape_cast %1328 : vector<8xf32> to vector<8x1xf32>
    %cst_71 = arith.constant dense<0.000000e+00> : vector<1xf32>
    %1330 = vector.multi_reduction <add>, %1329, %cst_71 [0] : vector<8x1xf32> to vector<1xf32>
    %1331 = vector.shape_cast %1330 : vector<1xf32> to vector<1x1xf32>
    %cst_72 = arith.constant dense<0.000000e+00> : vector<8xf32>
    %1332 = vector.multi_reduction <add>, %1279, %cst_72 [1] : vector<8x16xf32> to vector<8xf32>
    %1333 = vector.shape_cast %1332 : vector<8xf32> to vector<8x1xf32>
    %cst_73 = arith.constant dense<0.000000e+00> : vector<1xf32>
    %1334 = vector.multi_reduction <add>, %1333, %cst_73 [0] : vector<8x1xf32> to vector<1xf32>
    %1335 = vector.shape_cast %1334 : vector<1xf32> to vector<1x1xf32>
    %cst_74 = arith.constant dense<0.000000e+00> : vector<8xf32>
    %1336 = vector.multi_reduction <add>, %1283, %cst_74 [1] : vector<8x16xf32> to vector<8xf32>
    %1337 = vector.shape_cast %1336 : vector<8xf32> to vector<8x1xf32>
    %cst_75 = arith.constant dense<0.000000e+00> : vector<1xf32>
    %1338 = vector.multi_reduction <add>, %1337, %cst_75 [0] : vector<8x1xf32> to vector<1xf32>
    %1339 = vector.shape_cast %1338 : vector<1xf32> to vector<1x1xf32>
    %1340 = tpu.concatenate %1311, %1315, %1319, %1323, %1327, %1331, %1335, %1339 in 0 : vector<1x1xf32>, vector<1x1xf32>, vector<1x1xf32>, vector<1x1xf32>, vector<1x1xf32>, vector<1x1xf32>, vector<1x1xf32>, vector<1x1xf32> -> vector<8x1xf32>
    %1341 = arith.mulf %1255, %1255 : vector<8x16xf32>
    %cst_76 = arith.constant dense<0.000000e+00> : vector<8xf32>
    %1342 = vector.multi_reduction <add>, %1341, %cst_76 [1] : vector<8x16xf32> to vector<8xf32>
    %1343 = vector.shape_cast %1342 : vector<8xf32> to vector<8x1xf32>
    %cst_77 = arith.constant dense<0.000000e+00> : vector<1xf32>
    %1344 = vector.multi_reduction <add>, %1343, %cst_77 [0] : vector<8x1xf32> to vector<1xf32>
    %1345 = vector.shape_cast %1344 : vector<1xf32> to vector<1x1xf32>
    %1346 = arith.mulf %1259, %1259 : vector<8x16xf32>
    %cst_78 = arith.constant dense<0.000000e+00> : vector<8xf32>
    %1347 = vector.multi_reduction <add>, %1346, %cst_78 [1] : vector<8x16xf32> to vector<8xf32>
    %1348 = vector.shape_cast %1347 : vector<8xf32> to vector<8x1xf32>
    %cst_79 = arith.constant dense<0.000000e+00> : vector<1xf32>
    %1349 = vector.multi_reduction <add>, %1348, %cst_79 [0] : vector<8x1xf32> to vector<1xf32>
    %1350 = vector.shape_cast %1349 : vector<1xf32> to vector<1x1xf32>
    %1351 = arith.mulf %1263, %1263 : vector<8x16xf32>
    %cst_80 = arith.constant dense<0.000000e+00> : vector<8xf32>
    %1352 = vector.multi_reduction <add>, %1351, %cst_80 [1] : vector<8x16xf32> to vector<8xf32>
    %1353 = vector.shape_cast %1352 : vector<8xf32> to vector<8x1xf32>
    %cst_81 = arith.constant dense<0.000000e+00> : vector<1xf32>
    %1354 = vector.multi_reduction <add>, %1353, %cst_81 [0] : vector<8x1xf32> to vector<1xf32>
    %1355 = vector.shape_cast %1354 : vector<1xf32> to vector<1x1xf32>
    %1356 = arith.mulf %1267, %1267 : vector<8x16xf32>
    %cst_82 = arith.constant dense<0.000000e+00> : vector<8xf32>
    %1357 = vector.multi_reduction <add>, %1356, %cst_82 [1] : vector<8x16xf32> to vector<8xf32>
    %1358 = vector.shape_cast %1357 : vector<8xf32> to vector<8x1xf32>
    %cst_83 = arith.constant dense<0.000000e+00> : vector<1xf32>
    %1359 = vector.multi_reduction <add>, %1358, %cst_83 [0] : vector<8x1xf32> to vector<1xf32>
    %1360 = vector.shape_cast %1359 : vector<1xf32> to vector<1x1xf32>
    %1361 = arith.mulf %1271, %1271 : vector<8x16xf32>
    %cst_84 = arith.constant dense<0.000000e+00> : vector<8xf32>
    %1362 = vector.multi_reduction <add>, %1361, %cst_84 [1] : vector<8x16xf32> to vector<8xf32>
    %1363 = vector.shape_cast %1362 : vector<8xf32> to vector<8x1xf32>
    %cst_85 = arith.constant dense<0.000000e+00> : vector<1xf32>
    %1364 = vector.multi_reduction <add>, %1363, %cst_85 [0] : vector<8x1xf32> to vector<1xf32>
    %1365 = vector.shape_cast %1364 : vector<1xf32> to vector<1x1xf32>
    %1366 = arith.mulf %1275, %1275 : vector<8x16xf32>
    %cst_86 = arith.constant dense<0.000000e+00> : vector<8xf32>
    %1367 = vector.multi_reduction <add>, %1366, %cst_86 [1] : vector<8x16xf32> to vector<8xf32>
    %1368 = vector.shape_cast %1367 : vector<8xf32> to vector<8x1xf32>
    %cst_87 = arith.constant dense<0.000000e+00> : vector<1xf32>
    %1369 = vector.multi_reduction <add>, %1368, %cst_87 [0] : vector<8x1xf32> to vector<1xf32>
    %1370 = vector.shape_cast %1369 : vector<1xf32> to vector<1x1xf32>
    %1371 = arith.mulf %1279, %1279 : vector<8x16xf32>
    %cst_88 = arith.constant dense<0.000000e+00> : vector<8xf32>
    %1372 = vector.multi_reduction <add>, %1371, %cst_88 [1] : vector<8x16xf32> to vector<8xf32>
    %1373 = vector.shape_cast %1372 : vector<8xf32> to vector<8x1xf32>
    %cst_89 = arith.constant dense<0.000000e+00> : vector<1xf32>
    %1374 = vector.multi_reduction <add>, %1373, %cst_89 [0] : vector<8x1xf32> to vector<1xf32>
    %1375 = vector.shape_cast %1374 : vector<1xf32> to vector<1x1xf32>
    %1376 = arith.mulf %1283, %1283 : vector<8x16xf32>
    %cst_90 = arith.constant dense<0.000000e+00> : vector<8xf32>
    %1377 = vector.multi_reduction <add>, %1376, %cst_90 [1] : vector<8x16xf32> to vector<8xf32>
    %1378 = vector.shape_cast %1377 : vector<8xf32> to vector<8x1xf32>
    %cst_91 = arith.constant dense<0.000000e+00> : vector<1xf32>
    %1379 = vector.multi_reduction <add>, %1378, %cst_91 [0] : vector<8x1xf32> to vector<1xf32>
    %1380 = vector.shape_cast %1379 : vector<1xf32> to vector<1x1xf32>
    %1381 = tpu.concatenate %1345, %1350, %1355, %1360, %1365, %1370, %1375, %1380 in 0 : vector<1x1xf32>, vector<1x1xf32>, vector<1x1xf32>, vector<1x1xf32>, vector<1x1xf32>, vector<1x1xf32>, vector<1x1xf32>, vector<1x1xf32> -> vector<8x1xf32>
    %1382 = tpu.concatenate %1340, %1381 in 1 : vector<8x1xf32>, vector<8x1xf32> -> vector<8x2xf32>
    %c0_92 = arith.constant 0 : index
    %c0_93 = arith.constant 0 : index
    %c0_94 = arith.constant 0 : index
    %c0_95 = arith.constant 0 : index
    %1383 = vector.load %arg6[%c0_92, %c0_93, %c0_94, %c0_95] : memref<1x1x8x2xf32, #tpu.memory_space<vmem>>, vector<1x1x8x2xf32>
    %1384 = vector.shape_cast %1383 : vector<1x1x8x2xf32> to vector<8x2xf32>
    %1385 = vector.shape_cast %1382 : vector<8x2xf32> to vector<1x1x8x2xf32>
    tpu.vector_store %arg6[%c0_92, %c0_93, %c0_94, %c0_95], %1385 {strides = array<i32>} : memref<1x1x8x2xf32, #tpu.memory_space<vmem>>, vector<1x1x8x2xf32>,
    return
  }
  func.func @transform_0(%arg0: i32, %arg1: i32) -> (i32, i32, i32, i32) {
    %c0_i32 = arith.constant 0 : i32
    %c0_i32_0 = arith.constant 0 : i32
    %c0_i32_1 = arith.constant 0 : i32
    %c0_i32_2 = arith.constant 0 : i32
    return %arg0, %c0_i32, %c0_i32_0, %c0_i32_1 : i32, i32, i32, i32
  }
  func.func @transform_1(%arg0: i32, %arg1: i32) -> i32 {
    %c0_i32 = arith.constant 0 : i32
    %c0_i32_0 = arith.constant 0 : i32
    return %c0_i32 : i32
  }
  func.func @transform_2(%arg0: i32, %arg1: i32) -> i32 {
    %c0_i32 = arith.constant 0 : i32
    %c0_i32_0 = arith.constant 0 : i32
    return %c0_i32 : i32
  }
  func.func @transform_3(%arg0: i32, %arg1: i32) -> (i32, i32, i32, i32) {
    %c0_i32 = arith.constant 0 : i32
    %c0_i32_0 = arith.constant 0 : i32
    %c0_i32_1 = arith.constant 0 : i32
    return %arg0, %c0_i32, %arg1, %c0_i32_0 : i32, i32, i32, i32
  }
  func.func @transform_4(%arg0: i32, %arg1: i32) -> (i32, i32, i32, i32) {
    %c0_i32 = arith.constant 0 : i32
    %c0_i32_0 = arith.constant 0 : i32
    %c0_i32_1 = arith.constant 0 : i32
    return %arg0, %arg1, %c0_i32, %c0_i32_0 : i32, i32, i32, i32
  }
}

</mosaic_0001>

<llo_original>
// kernel: tpu_custom_call.1
$region0: #{tpu_custom_call.1}
  #allocation0 [shape = 'u32[]', space=smem, size = 0x4, offset = 0x4, fixed_abs, tag = 'smem constant byte address 0x4 - core index']
  #allocation1 [shape = 'u32[144,128]{1,0:T(1,128)}', space=vmem, size = 0x12000, scoped, tag = 'internal scratch']
  %s0 = inlined_call_operand.hbm [shape: f32[2,4,16,16], index: 0, kind: input, shape index: {}]
  %s1 = inlined_call_operand.hbm [shape: f32[288], index: 1, kind: input, shape index: {}]
  %s2 = inlined_call_operand.vmem [shape: f32[8], index: 2, kind: input, shape index: {}]
  %s3 = inlined_call_operand.hbm [shape: f32[2,8,16,16], index: 3, kind: output, shape index: {0}]
  %s4 = inlined_call_operand.vmem [shape: f32[2,2,8,2], index: 4, kind: output, shape index: {1}]
  %5 = xla_tuple %s3, %s4
  %s6 = sld [smem:[#allocation0]]
  $region65: #{tpu_custom_call.1} parent=0
    _
  %s8 = ssub.s32 1, %s6
  %s9 = scalar_select 0, %s8, %s6
  $region1: #{tpu_custom_call.1} parent=0
    #allocation2 [shape = 'u8[65536]{0}', space=vmem, size = 0x10000, scoped, tag = 'input window, operand 0']
    #allocation3 [shape = 's32[2]{0}', space=sflag, size = 0x8, scoped, tag = 'scoped memory for tpu_custom_call.1']
    #allocation4 [shape = 's32[2]{0}', space=sflag, size = 0x8, scoped, tag = 'scoped memory for tpu_custom_call.1']
    #allocation5 [shape = 's32[2]{0}', space=sflag, size = 0x8, scoped, tag = 'scoped memory for tpu_custom_call.1']
    #allocation6 [shape = 's32[2]{0}', space=sflag, size = 0x8, scoped, tag = 'scoped memory for tpu_custom_call.1']
    #allocation7 [shape = 'u8[1536]{0}', space=smem, size = 0x600, scoped, tag = 'input window, operand 1, single buffered']
    #allocation8 [shape = 'u8[512]{0}', space=smem, size = 0x200, scoped, tag = 'input window, operand 2, single buffered']
    #allocation9 [shape = 'u8[65536]{0}', space=vmem, size = 0x10000, scoped, tag = 'output window, operand 0']
    %10 = vsyncpa [#allocation3], 0
    %s11 = scalar_lea.sflag [#allocation3], 1
    %12 = vsyncpa %s11, 0
    %13 = vsyncpa [#allocation5], 0
    %14 = vsyncpa [#allocation6], 0
    %15 = vsyncpa [#allocation4], 0
    %s16 = scalar_lea.sflag [#allocation4], 1
    %17 = vsyncpa %s16, 0
    loop: start=0, step=1, limit=6
    $region2: #{tpu_custom_call.1} parent=1 // loop_pre_header
      _
    $region3: #{tpu_custom_call.1} parent=1 // loop_header
      %s19 = sphi 0, %s23
      %p20 = scmp.ge.s32.totalorder %s19, 6
      %s26 = sphi 0, %s38
      %s27 = sphi 0, %s34
      %s28 = sphi 0, %s26
      %s29 = sphi 0, %s27
      %s30 = sphi 0, %s28
      %s31 = sphi 0, %s29
      %s41 = sphi 0, %s43
      %s44 = sphi 0, %s41
      %s45 = sphi 0, %s44
      %s61 = sphi 0, %s45
      %s65 = sphi 0, %s65
      %s67 = sphi 0, %s65
      %s68 = sphi 0, %s67
      %s82 = sphi 0, %s68
      %s86 = sphi 0, %s86
      %s88 = sphi 0, %s86
      %s89 = sphi 0, %s88
      %s103 = sphi 0, %s89
      %s111 = sphi 0, %s113
      %s114 = sphi 0, %s111
      %s115 = sphi 0, %s114
      %s131 = sphi 0, %s115
      %s139 = sphi 0, %s141
      %s142 = sphi 0, %s139
      %s143 = sphi 0, %s142
      %s159 = sphi 0, %s143
    $region4: #{tpu_custom_call.1} parent=1 // loop_header_branch
      %22 = sbr.rel (%p20) target = $region8
    $region5: #{tpu_custom_call.1} parent=1 // loop_body
      %s24 = ssub.s32 %s19, 1
      %s25 = ssub.s32 %s19, 2
      %s32 = sadd.s32 1, %s27
      %p33 = scmp.ge.s32.totalorder %s32, 2
      %s34 = scalar_select %p33, 0, %s32
      %s35 = sadd.s32 1, %s26
      %s36 = scalar_select %p33, %s35, %s26
      %p37 = scmp.ge.s32.totalorder %s36, 2
      %s38 = scalar_select %p37, 0, %s36
      %s39 = ssub.s32 %s26, %s38
      %p40 = scmp.eq.s32.totalorder %s39, 0
      %s42 = sadd.s32 %s41, 1
      %s43 = scalar_select %p40, %s41, %s42
      %p46 = pneg %p40
      %p47 = scmp.eq.s32.totalorder %s19, 3
      %p48 = por %p46, %p47
      %p49 = scmp.ne.s32.totalorder %s41, %s44
      %p50 = scmp.eq.s32.totalorder %s19, 0
      %p51 = por %p49, %p50
      %p52 = scmp.ne.s32.totalorder %s41, %s44
      %p53 = scmp.eq.s32.totalorder %s24, 3
      %p54 = por %p52, %p53
      %p55 = scmp.ne.s32.totalorder %s44, %s45
      %p56 = scmp.eq.s32.totalorder %s24, 0
      %p57 = por %p55, %p56
      %p58 = scmp.ne.s32.totalorder %s44, %s45
      %p59 = scmp.eq.s32.totalorder %s25, 3
      %p60 = por %p58, %p59
      %p62 = scmp.ne.s32.totalorder %s45, %s61
      %p63 = scmp.eq.s32.totalorder %s25, 0
      %p64 = por %p62, %p63
      %s66 = sadd.s32 %s65, 1
      %p69 = scmp.eq.s32.totalorder %s19, 3
      %p70 = scmp.ne.s32.totalorder %s65, %s67
      %p71 = scmp.eq.s32.totalorder %s19, 0
      %p72 = por %p70, %p71
      %p73 = scmp.ne.s32.totalorder %s65, %s67
      %p74 = scmp.eq.s32.totalorder %s24, 3
      %p75 = por %p73, %p74
      %p76 = scmp.ne.s32.totalorder %s67, %s68
      %p77 = scmp.eq.s32.totalorder %s24, 0
      %p78 = por %p76, %p77
      %p79 = scmp.ne.s32.totalorder %s67, %s68
      %p80 = scmp.eq.s32.totalorder %s25, 3
      %p81 = por %p79, %p80
      %p83 = scmp.ne.s32.totalorder %s68, %s82
      %p84 = scmp.eq.s32.totalorder %s25, 0
      %p85 = por %p83, %p84
      %s87 = sadd.s32 %s86, 1
      %p90 = scmp.eq.s32.totalorder %s19, 3
      %p91 = scmp.ne.s32.totalorder %s86, %s88
      %p92 = scmp.eq.s32.totalorder %s19, 0
      %p93 = por %p91, %p92
      %p94 = scmp.ne.s32.totalorder %s86, %s88
      %p95 = scmp.eq.s32.totalorder %s24, 3
      %p96 = por %p94, %p95
      %p97 = scmp.ne.s32.totalorder %s88, %s89
      %p98 = scmp.eq.s32.totalorder %s24, 0
      %p99 = por %p97, %p98
      %p100 = scmp.ne.s32.totalorder %s88, %s89
      %p101 = scmp.eq.s32.totalorder %s25, 3
      %p102 = por %p100, %p101
      %p104 = scmp.ne.s32.totalorder %s89, %s103
      %p105 = scmp.eq.s32.totalorder %s25, 0
      %p106 = por %p104, %p105
      %s107 = ssub.s32 %s26, %s38
      %s108 = ssub.s32 %s27, %s34
      %s109 = sor.u32 %s107, %s108
      %p110 = scmp.eq.s32.totalorder %s109, 0
      %s112 = sadd.s32 %s111, 1
      %s113 = scalar_select %p110, %s111, %s112
      %p116 = pneg %p110
      %p117 = scmp.eq.s32.totalorder %s19, 3
      %p118 = por %p116, %p117
      %p119 = scmp.ne.s32.totalorder %s111, %s114
      %p120 = scmp.eq.s32.totalorder %s19, 0
      %p121 = por %p119, %p120
      %p122 = scmp.ne.s32.totalorder %s111, %s114
      %p123 = scmp.eq.s32.totalorder %s24, 3
      %p124 = por %p122, %p123
      %p125 = scmp.ne.s32.totalorder %s114, %s115
      %p126 = scmp.eq.s32.totalorder %s24, 0
      %p127 = por %p125, %p126
      %p128 = scmp.ne.s32.totalorder %s114, %s115
      %p129 = scmp.eq.s32.totalorder %s25, 3
      %p130 = por %p128, %p129
      %p132 = scmp.ne.s32.totalorder %s115, %s131
      %p133 = scmp.eq.s32.totalorder %s25, 0
      %p134 = por %p132, %p133
      %s135 = ssub.s32 %s26, %s38
      %s136 = ssub.s32 %s27, %s34
      %s137 = sor.u32 %s135, %s136
      %p138 = scmp.eq.s32.totalorder %s137, 0
      %s140 = sadd.s32 %s139, 1
      %s141 = scalar_select %p138, %s139, %s140
      %p144 = pneg %p138
      %p145 = scmp.eq.s32.totalorder %s19, 3
      %p146 = por %p144, %p145
      %p147 = scmp.ne.s32.totalorder %s139, %s142
      %p148 = scmp.eq.s32.totalorder %s19, 0
      %p149 = por %p147, %p148
      %p150 = scmp.ne.s32.totalorder %s139, %s142
      %p151 = scmp.eq.s32.totalorder %s24, 3
      %p152 = por %p150, %p151
      %p153 = scmp.ne.s32.totalorder %s142, %s143
      %p154 = scmp.eq.s32.totalorder %s24, 0
      %p155 = por %p153, %p154
      %p156 = scmp.ne.s32.totalorder %s142, %s143
      %p157 = scmp.eq.s32.totalorder %s25, 3
      %p158 = por %p156, %p157
      %p160 = scmp.ne.s32.totalorder %s143, %s159
      %p161 = scmp.eq.s32.totalorder %s25, 0
      %p162 = por %p160, %p161
      %p163 = scmp.le.s32.totalorder 1, %s19
      %p164 = scmp.lt.s32.totalorder %s19, 5
      %p165 = pnand %p163, %p164
      %p166 = pneg %p165
      // Predicated region
      $region9: #{tpu_custom_call.1} parent=5 // pred_check
        _
      $region10: #{tpu_custom_call.1} parent=5 // pred_check_branch
        %168 = sbr.rel (%p165) target = $region12
      $region11: #{tpu_custom_call.1} parent=5 // pred_region
        %s169 = ssub.s32 %s19, 1
        // Predicated region
        $region13: #{tpu_custom_call.1} parent=11 // pred_check
          %p170 = pneg %p78
        $region14: #{tpu_custom_call.1} parent=11 // pred_check_branch
          %172 = sbr.rel (%p170) target = $region16
        $region15: #{tpu_custom_call.1} parent=11 // pred_region
          %s174 = ssub.s32 48, 48
          %175 = vsyncadd [#allocation5], %s174
          %178 = dma.hbm_to_smem %s1, 48, [#allocation7], [#allocation5]
        $region16: #{tpu_custom_call.1} parent=11 // pred_fallthru
          _
        // Predicated region
        $region17: #{tpu_custom_call.1} parent=11 // pred_check
          %p179 = pneg %p99
        $region18: #{tpu_custom_call.1} parent=11 // pred_check_branch
          %181 = sbr.rel (%p179) target = $region20
        $region19: #{tpu_custom_call.1} parent=11 // pred_region
          %s183 = ssub.s32 16, 16
          %184 = vsyncadd [#allocation6], %s183
          %s186 = sshll.u32 %s2, 4
          %s187 = int_to_ptr.vmem [resolvable:$true] %s186
          %189 = dma.vmem_to_smem %s187, 16, [#allocation8], [#allocation6]
        $region20: #{tpu_custom_call.1} parent=11 // pred_fallthru
          _
      $region12: #{tpu_custom_call.1} parent=5 // pred_fallthru
        _
      %p190 = scmp.lt.s32.totalorder %s19, 4
      // Predicated region
      $region21: #{tpu_custom_call.1} parent=5 // pred_check
        %p191 = pneg %p190
      $region22: #{tpu_custom_call.1} parent=5 // pred_check_branch
        %193 = sbr.rel (%p191) target = $region24
      $region23: #{tpu_custom_call.1} parent=5 // pred_region
        // Predicated region
        $region25: #{tpu_custom_call.1} parent=23 // pred_check
          %p194 = pneg %p51
        $region26: #{tpu_custom_call.1} parent=23 // pred_check_branch
          %196 = sbr.rel (%p194) target = $region28
        $region27: #{tpu_custom_call.1} parent=23 // pred_region
          %s197 = sand.u32 %s41, 1
          %s198 = scalar_lea.sflag [#allocation3], %s197
          %s199 = sand.u32 %s41, 1
          %s200 = smul.addr %s199, 64
          %s201 = scalar_lea.vmem [#allocation2], %s200
          %s203 = ssub.s32 1024, 1024
          %204 = vsyncadd %s198, %s203
          %s205 = smul.addr %s26, 8
          %s206 = smul.addr %s205, 128
          %s207 = scalar_lea.hbm %s0, %s206
          %s208 = sshll.u32 %s201, 4
          %s209 = int_to_ptr.vmem [resolvable:$true] %s208
          %214 = dma.hbm_to_vmem [thread:$0]  %s207, 1024, %s209, %s198, 128, 128, 8
        $region28: #{tpu_custom_call.1} parent=23 // pred_fallthru
          _
      $region24: #{tpu_custom_call.1} parent=5 // pred_fallthru
        _
      %p215 = scmp.le.s32.totalorder 1, %s19
      %p216 = scmp.lt.s32.totalorder %s19, 5
      %p217 = pnand %p215, %p216
      %p218 = pneg %p217
      // Predicated region
      $region29: #{tpu_custom_call.1} parent=5 // pred_check
        _
      $region30: #{tpu_custom_call.1} parent=5 // pred_check_branch
        %220 = sbr.rel (%p217) target = $region32
      $region31: #{tpu_custom_call.1} parent=5 // pred_region
        %s221 = ssub.s32 %s19, 1
        %s222 = sand.u32 %s44, 1
        %s223 = scalar_lea.sflag [#allocation3], %s222
        %s224 = sand.u32 %s44, 1
        %s225 = smul.addr %s224, 64
        %s226 = scalar_lea.vmem [#allocation2], %s225
        // Predicated region
        $region33: #{tpu_custom_call.1} parent=31 // pred_check
          %p227 = pneg %p57
        $region34: #{tpu_custom_call.1} parent=31 // pred_check_branch
          %229 = sbr.rel (%p227) target = $region36
        $region35: #{tpu_custom_call.1} parent=31 // pred_region
          %230 = dma.done %s223, 1024
        $region36: #{tpu_custom_call.1} parent=31 // pred_fallthru
          _
        // Predicated region
        $region37: #{tpu_custom_call.1} parent=31 // pred_check
          %p231 = pneg %p78
        $region38: #{tpu_custom_call.1} parent=31 // pred_check_branch
          %233 = sbr.rel (%p231) target = $region40
        $region39: #{tpu_custom_call.1} parent=31 // pred_region
          %234 = dma.done [#allocation5], 48
        $region40: #{tpu_custom_call.1} parent=31 // pred_fallthru
          _
        // Predicated region
        $region41: #{tpu_custom_call.1} parent=31 // pred_check
          %p235 = pneg %p99
        $region42: #{tpu_custom_call.1} parent=31 // pred_check_branch
          %237 = sbr.rel (%p235) target = $region44
        $region43: #{tpu_custom_call.1} parent=31 // pred_region
          %238 = dma.done [#allocation6], 16
        $region44: #{tpu_custom_call.1} parent=31 // pred_fallthru
          _
        %239 = sfence
        %s240 = sand.u32 %s44, 1
        %s241 = scalar_lea.sflag [#allocation3], %s240
        %s242 = sand.u32 %s44, 1
        %s243 = smul.addr %s242, 64
        %s244 = scalar_lea.vmem [#allocation2], %s243
        %p245 = pneg %p57
        %p246 = pneg %p54
        %p247 = pneg %p78
        %p248 = pneg %p75
        %p249 = pneg %p99
        %p250 = pneg %p96
        %p251 = pneg %p127
        %p252 = pneg %p124
        %s253 = sand.u32 %s114, 1
        %s254 = scalar_lea.sflag [#allocation4], %s253
        %s255 = sand.u32 %s114, 1
        %s256 = smul.addr %s255, 64
        %s257 = scalar_lea.vmem [#allocation9], %s256
        %p258 = pneg %p155
        %p259 = pneg %p152
        %p260 = scmp.lt.s32.totalorder %s28, 1
        %s261 = scalar_select %p260, %s28, 1
        %p262 = scmp.lt.s32.totalorder %s29, 1
        %s263 = scalar_select %p262, %s29, 1
        %s264 = smul.addr %s261, 2
        %s265 = sadd.s32 %s263, %s264
        %s266 = smul.addr %s265, 8
        %s267 = scalar_lea.vmem %s4, %s266
        %p268 = scmp.lt.s32.totalorder %s28, 1
        %s269 = scalar_select %p268, %s28, 1
        %p270 = scmp.lt.s32.totalorder %s29, 1
        %s271 = scalar_select %p270, %s29, 1
        %s272 = smul.addr %s269, 2
        %s273 = sadd.s32 %s271, %s272
        %s274 = smul.addr %s273, 8
        %s275 = scalar_lea.vmem %s4, %s274
        %s276 = smul.u32 %s29, 8
        %s277 = scalar_lea.vmem %s226, %s276 [#allocation2]
        %v278 = vld [vmem:[%s277] sm:$0xff]
        %v279 = vld [vmem:[%s277 + $0x10] sm:$0xff]
        %v280 = vld [vmem:[%s277 + $0x20] sm:$0xff]
        %v281 = vld [vmem:[%s277 + $0x30] sm:$0xff]
        %s282 = ssub.s32 %s276, 1
        %p283 = scmp.gt.s32.totalorder %s282, 0
        %s284 = scalar_select %p283, %s282, 0
        %s285 = scalar_lea.vmem %s226, %s284 [#allocation2]
        %v286 = vld [vmem:[%s285] sm:$0x1]
        %v287 = vld [vmem:[%s285 + $0x10] sm:$0x1]
        %v288 = vld [vmem:[%s285 + $0x20] sm:$0x1]
        %v289 = vld [vmem:[%s285 + $0x30] sm:$0x1]
        %s290 = sadd.s32 %s276, 8
        %p291 = scmp.lt.s32.totalorder %s290, 15
        %s292 = scalar_select %p291, %s290, 15
        %s293 = scalar_lea.vmem %s226, %s292 [#allocation2]
        %v294 = vld [vmem:[%s293] sm:$0x1]
        %v295 = vld [vmem:[%s293 + $0x10] sm:$0x1]
        %v296 = vld [vmem:[%s293 + $0x20] sm:$0x1]
        %v297 = vld [vmem:[%s293 + $0x30] sm:$0x1]
        %p298 = scmp.gt.s32.totalorder %s29, 0
        %s299 = scalar_select %p298, 1, 0
        %s300 = scvt.s32.f32 %s299
        %v301 = vstv %s300
        %v302 = vmul.f32 %v286, %v301
        %v303 = vmul.f32 %v287, %v301
        %v304 = vmul.f32 %v288, %v301
        %v305 = vmul.f32 %v289, %v301
        %p306 = scmp.lt.s32.totalorder %s29, 1
        %s307 = scalar_select %p306, 1, 0
        %s308 = scvt.s32.f32 %s307
        %v309 = vstv %s308
        %v310 = vmul.f32 %v294, %v309
        %v311 = vmul.f32 %v295, %v309
        %v312 = vmul.f32 %v296, %v309
        %v313 = vmul.f32 %v297, %v309
        %v318 = vrot.slane %v278, 7
        %v319 = vrot.slane %v279, 7
        %v320 = vrot.slane %v280, 7
        %v321 = vrot.slane %v281, 7
        %v330 = vrot.slane %v310, 7
        %v331 = vrot.slane %v311, 7
        %v332 = vrot.slane %v312, 7
        %v333 = vrot.slane %v313, 7
        %vm338 = vcmask 1040384
        %v339 = vsel %vm338, %v302, %v318
        %v340 = vsel %vm338, %v303, %v319
        %v341 = vsel %vm338, %v304, %v320
        %v342 = vsel %vm338, %v305, %v321
        %v343 = vsel %vm338, %v318, %v330
        %v344 = vsel %vm338, %v319, %v331
        %v345 = vsel %vm338, %v320, %v332
        %v346 = vsel %vm338, %v321, %v333
        %355 = vrot.lane.b32.xlu0 %v339, 1
        %v356 = vpop.permute.xlu0 %355
        %357 = vrot.lane.b32.xlu0 %v343, 1
        %v358 = vpop.permute.xlu0 %357
        %359 = vrot.lane.b32.xlu0 %v340, 1
        %v360 = vpop.permute.xlu0 %359
        %361 = vrot.lane.b32.xlu0 %v344, 1
        %v362 = vpop.permute.xlu0 %361
        %363 = vrot.lane.b32.xlu0 %v341, 1
        %v364 = vpop.permute.xlu0 %363
        %365 = vrot.lane.b32.xlu0 %v345, 1
        %v366 = vpop.permute.xlu0 %365
        %367 = vrot.lane.b32.xlu0 %v342, 1
        %v368 = vpop.permute.xlu0 %367
        %369 = vrot.lane.b32.xlu0 %v346, 1
        %v370 = vpop.permute.xlu0 %369
        %vm379 = vcmask 7168
        %v380 = vsel %vm379, 0.0, %v356
        %v381 = vsel %vm379, 0.0, %v358
        %v382 = vsel %vm379, 0.0, %v360
        %v383 = vsel %vm379, 0.0, %v362
        %v384 = vsel %vm379, 0.0, %v364
        %v385 = vsel %vm379, 0.0, %v366
        %v386 = vsel %vm379, 0.0, %v368
        %v387 = vsel %vm379, 0.0, %v370
        %vm388 = vcmask 138240
        %v389 = vsel %vm388, %v380, 0.0
        %v390 = vsel %vm388, %v381, 0.0
        %v391 = vsel %vm388, %v382, 0.0
        %v392 = vsel %vm388, %v383, 0.0
        %v393 = vsel %vm388, %v384, 0.0
        %v394 = vsel %vm388, %v385, 0.0
        %v395 = vsel %vm388, %v386, 0.0
        %v396 = vsel %vm388, %v387, 0.0
        %s397 = sld [smem:[#allocation8]]
        %v398 = vstv %s397
        %v399 = vadd.f32 %v398, 0.0
        %s400 = sld [smem:[#allocation8 + $0x1]]
        %v401 = vstv %s400
        %v402 = vadd.f32 %v401, 0.0
        %s403 = sld [smem:[#allocation8 + $0x2]]
        %v404 = vstv %s403
        %v405 = vadd.f32 %v404, 0.0
        %s406 = sld [smem:[#allocation8 + $0x3]]
        %v407 = vstv %s406
        %v408 = vadd.f32 %v407, 0.0
        %s409 = sld [smem:[#allocation8 + $0x4]]
        %v410 = vstv %s409
        %v411 = vadd.f32 %v410, 0.0
        %s412 = sld [smem:[#allocation8 + $0x5]]
        %v413 = vstv %s412
        %v414 = vadd.f32 %v413, 0.0
        %s415 = sld [smem:[#allocation8 + $0x6]]
        %v416 = vstv %s415
        %v417 = vadd.f32 %v416, 0.0
        %s418 = sld [smem:[#allocation8 + $0x7]]
        %v419 = vstv %s418
        %v420 = vadd.f32 %v419, 0.0
        %s421 = sld [smem:[#allocation7]]
        %v422 = vstv %s421
        %v423 = vmul.f32 %v422, %v389
        %v424 = vadd.f32 %v399, %v423
        %s425 = sld [smem:[#allocation7 + $0x24]]
        %v426 = vstv %s425
        %v427 = vmul.f32 %v426, %v389
        %v428 = vadd.f32 %v402, %v427
        %s429 = sld [smem:[#allocation7 + $0x48]]
        %v430 = vstv %s429
        %v431 = vmul.f32 %v430, %v389
        %v432 = vadd.f32 %v405, %v431
        %s433 = sld [smem:[#allocation7 + $0x6c]]
        %v434 = vstv %s433
        %v435 = vmul.f32 %v434, %v389
        %v436 = vadd.f32 %v408, %v435
        %s437 = sld [smem:[#allocation7 + $0x90]]
        %v438 = vstv %s437
        %v439 = vmul.f32 %v438, %v389
        %v440 = vadd.f32 %v411, %v439
        %s441 = sld [smem:[#allocation7 + $0xb4]]
        %v442 = vstv %s441
        %v443 = vmul.f32 %v442, %v389
        %v444 = vadd.f32 %v414, %v443
        %s445 = sld [smem:[#allocation7 + $0xd8]]
        %v446 = vstv %s445
        %v447 = vmul.f32 %v446, %v389
        %v448 = vadd.f32 %v417, %v447
        %s449 = sld [smem:[#allocation7 + $0xfc]]
        %v450 = vstv %s449
        %v451 = vmul.f32 %v450, %v389
        %v452 = vadd.f32 %v420, %v451
        %s453 = sld [smem:[#allocation7 + $0x1]]
        %v454 = vstv %s453
        %v455 = vmul.f32 %v454, %v389
        %457 = vrot.lane.b32.xlu0 %v455, 127
        %v458 = vpop.permute.xlu0 %457
        %v460 = vadd.f32 %v424, %v458
        %s461 = sld [smem:[#allocation7 + $0x25]]
        %v462 = vstv %s461
        %v463 = vmul.f32 %v462, %v389
        %465 = vrot.lane.b32.xlu0 %v463, 127
        %v466 = vpop.permute.xlu0 %465
        %v468 = vadd.f32 %v428, %v466
        %s469 = sld [smem:[#allocation7 + $0x49]]
        %v470 = vstv %s469
        %v471 = vmul.f32 %v470, %v389
        %473 = vrot.lane.b32.xlu0 %v471, 127
        %v474 = vpop.permute.xlu0 %473
        %v476 = vadd.f32 %v432, %v474
        %s477 = sld [smem:[#allocation7 + $0x6d]]
        %v478 = vstv %s477
        %v479 = vmul.f32 %v478, %v389
        %481 = vrot.lane.b32.xlu0 %v479, 127
        %v482 = vpop.permute.xlu0 %481
        %v484 = vadd.f32 %v436, %v482
        %s485 = sld [smem:[#allocation7 + $0x91]]
        %v486 = vstv %s485
        %v487 = vmul.f32 %v486, %v389
        %489 = vrot.lane.b32.xlu0 %v487, 127
        %v490 = vpop.permute.xlu0 %489
        %v492 = vadd.f32 %v440, %v490
        %s493 = sld [smem:[#allocation7 + $0xb5]]
        %v494 = vstv %s493
        %v495 = vmul.f32 %v494, %v389
        %497 = vrot.lane.b32.xlu0 %v495, 127
        %v498 = vpop.permute.xlu0 %497
        %v500 = vadd.f32 %v444, %v498
        %s501 = sld [smem:[#allocation7 + $0xd9]]
        %v502 = vstv %s501
        %v503 = vmul.f32 %v502, %v389
        %505 = vrot.lane.b32.xlu0 %v503, 127
        %v506 = vpop.permute.xlu0 %505
        %v508 = vadd.f32 %v448, %v506
        %s509 = sld [smem:[#allocation7 + $0xfd]]
        %v510 = vstv %s509
        %v511 = vmul.f32 %v510, %v389
        %513 = vrot.lane.b32.xlu0 %v511, 127
        %v514 = vpop.permute.xlu0 %513
        %v516 = vadd.f32 %v452, %v514
        %s517 = sld [smem:[#allocation7 + $0x2]]
        %v518 = vstv %s517
        %v519 = vmul.f32 %v518, %v389
        %521 = vrot.lane.b32.xlu0 %v519, 126
        %v522 = vpop.permute.xlu0 %521
        %v524 = vadd.f32 %v460, %v522
        %s525 = sld [smem:[#allocation7 + $0x26]]
        %v526 = vstv %s525
        %v527 = vmul.f32 %v526, %v389
        %529 = vrot.lane.b32.xlu0 %v527, 126
        %v530 = vpop.permute.xlu0 %529
        %v532 = vadd.f32 %v468, %v530
        %s533 = sld [smem:[#allocation7 + $0x4a]]
        %v534 = vstv %s533
        %v535 = vmul.f32 %v534, %v389
        %537 = vrot.lane.b32.xlu0 %v535, 126
        %v538 = vpop.permute.xlu0 %537
        %v540 = vadd.f32 %v476, %v538
        %s541 = sld [smem:[#allocation7 + $0x6e]]
        %v542 = vstv %s541
        %v543 = vmul.f32 %v542, %v389
        %545 = vrot.lane.b32.xlu0 %v543, 126
        %v546 = vpop.permute.xlu0 %545
        %v548 = vadd.f32 %v484, %v546
        %s549 = sld [smem:[#allocation7 + $0x92]]
        %v550 = vstv %s549
        %v551 = vmul.f32 %v550, %v389
        %553 = vrot.lane.b32.xlu0 %v551, 126
        %v554 = vpop.permute.xlu0 %553
        %v556 = vadd.f32 %v492, %v554
        %s557 = sld [smem:[#allocation7 + $0xb6]]
        %v558 = vstv %s557
        %v559 = vmul.f32 %v558, %v389
        %561 = vrot.lane.b32.xlu0 %v559, 126
        %v562 = vpop.permute.xlu0 %561
        %v564 = vadd.f32 %v500, %v562
        %s565 = sld [smem:[#allocation7 + $0xda]]
        %v566 = vstv %s565
        %v567 = vmul.f32 %v566, %v389
        %569 = vrot.lane.b32.xlu0 %v567, 126
        %v570 = vpop.permute.xlu0 %569
        %v572 = vadd.f32 %v508, %v570
        %s573 = sld [smem:[#allocation7 + $0xfe]]
        %v574 = vstv %s573
        %v575 = vmul.f32 %v574, %v389
        %577 = vrot.lane.b32.xlu0 %v575, 126
        %v578 = vpop.permute.xlu0 %577
        %v580 = vadd.f32 %v516, %v578
        %s581 = sld [smem:[#allocation7 + $0x3]]
        %v582 = vstv %s581
        %v583 = vmul.f32 %v582, %v389
        %v584 = vmul.f32 %v582, %v390
        %vm587 = vcmask 1046528
        %v588 = vrot.slane %v583, 1
        %v589 = vrot.slane %v584, 1
        %v590 = vsel %vm587, %v588, %v589
        %v592 = vadd.f32 %v524, %v590
        %s593 = sld [smem:[#allocation7 + $0x27]]
        %v594 = vstv %s593
        %v595 = vmul.f32 %v594, %v389
        %v596 = vmul.f32 %v594, %v390
        %v599 = vrot.slane %v595, 1
        %v600 = vrot.slane %v596, 1
        %v601 = vsel %vm587, %v599, %v600
        %v603 = vadd.f32 %v532, %v601
        %s604 = sld [smem:[#allocation7 + $0x4b]]
        %v605 = vstv %s604
        %v606 = vmul.f32 %v605, %v389
        %v607 = vmul.f32 %v605, %v390
        %v610 = vrot.slane %v606, 1
        %v611 = vrot.slane %v607, 1
        %v612 = vsel %vm587, %v610, %v611
        %v614 = vadd.f32 %v540, %v612
        %s615 = sld [smem:[#allocation7 + $0x6f]]
        %v616 = vstv %s615
        %v617 = vmul.f32 %v616, %v389
        %v618 = vmul.f32 %v616, %v390
        %v621 = vrot.slane %v617, 1
        %v622 = vrot.slane %v618, 1
        %v623 = vsel %vm587, %v621, %v622
        %v625 = vadd.f32 %v548, %v623
        %s626 = sld [smem:[#allocation7 + $0x93]]
        %v627 = vstv %s626
        %v628 = vmul.f32 %v627, %v389
        %v629 = vmul.f32 %v627, %v390
        %v632 = vrot.slane %v628, 1
        %v633 = vrot.slane %v629, 1
        %v634 = vsel %vm587, %v632, %v633
        %v636 = vadd.f32 %v556, %v634
        %s637 = sld [smem:[#allocation7 + $0xb7]]
        %v638 = vstv %s637
        %v639 = vmul.f32 %v638, %v389
        %v640 = vmul.f32 %v638, %v390
        %v643 = vrot.slane %v639, 1
        %v644 = vrot.slane %v640, 1
        %v645 = vsel %vm587, %v643, %v644
        %v647 = vadd.f32 %v564, %v645
        %s648 = sld [smem:[#allocation7 + $0xdb]]
        %v649 = vstv %s648
        %v650 = vmul.f32 %v649, %v389
        %v651 = vmul.f32 %v649, %v390
        %v654 = vrot.slane %v650, 1
        %v655 = vrot.slane %v651, 1
        %v656 = vsel %vm587, %v654, %v655
        %v658 = vadd.f32 %v572, %v656
        %s659 = sld [smem:[#allocation7 + $0xff]]
        %v660 = vstv %s659
        %v661 = vmul.f32 %v660, %v389
        %v662 = vmul.f32 %v660, %v390
        %v665 = vrot.slane %v661, 1
        %v666 = vrot.slane %v662, 1
        %v667 = vsel %vm587, %v665, %v666
        %v669 = vadd.f32 %v580, %v667
        %s670 = sld [smem:[#allocation7 + $0x4]]
        %v671 = vstv %s670
        %v672 = vmul.f32 %v671, %v389
        %v673 = vmul.f32 %v671, %v390
        %v676 = vrot.slane %v672, 1
        %v677 = vrot.slane %v673, 1
        %v678 = vsel %vm587, %v676, %v677
        %679 = vrot.lane.b32.xlu0 %v678, 127
        %v680 = vpop.permute.xlu0 %679
        %v682 = vadd.f32 %v592, %v680
        %s683 = sld [smem:[#allocation7 + $0x28]]
        %v684 = vstv %s683
        %v685 = vmul.f32 %v684, %v389
        %v686 = vmul.f32 %v684, %v390
        %v689 = vrot.slane %v685, 1
        %v690 = vrot.slane %v686, 1
        %v691 = vsel %vm587, %v689, %v690
        %692 = vrot.lane.b32.xlu0 %v691, 127
        %v693 = vpop.permute.xlu0 %692
        %v695 = vadd.f32 %v603, %v693
        %s696 = sld [smem:[#allocation7 + $0x4c]]
        %v697 = vstv %s696
        %v698 = vmul.f32 %v697, %v389
        %v699 = vmul.f32 %v697, %v390
        %v702 = vrot.slane %v698, 1
        %v703 = vrot.slane %v699, 1
        %v704 = vsel %vm587, %v702, %v703
        %705 = vrot.lane.b32.xlu0 %v704, 127
        %v706 = vpop.permute.xlu0 %705
        %v708 = vadd.f32 %v614, %v706
        %s709 = sld [smem:[#allocation7 + $0x70]]
        %v710 = vstv %s709
        %v711 = vmul.f32 %v710, %v389
        %v712 = vmul.f32 %v710, %v390
        %v715 = vrot.slane %v711, 1
        %v716 = vrot.slane %v712, 1
        %v717 = vsel %vm587, %v715, %v716
        %718 = vrot.lane.b32.xlu0 %v717, 127
        %v719 = vpop.permute.xlu0 %718
        %v721 = vadd.f32 %v625, %v719
        %s722 = sld [smem:[#allocation7 + $0x94]]
        %v723 = vstv %s722
        %v724 = vmul.f32 %v723, %v389
        %v725 = vmul.f32 %v723, %v390
        %v728 = vrot.slane %v724, 1
        %v729 = vrot.slane %v725, 1
        %v730 = vsel %vm587, %v728, %v729
        %731 = vrot.lane.b32.xlu0 %v730, 127
        %v732 = vpop.permute.xlu0 %731
        %v734 = vadd.f32 %v636, %v732
        %s735 = sld [smem:[#allocation7 + $0xb8]]
        %v736 = vstv %s735
        %v737 = vmul.f32 %v736, %v389
        %v738 = vmul.f32 %v736, %v390
        %v741 = vrot.slane %v737, 1
        %v742 = vrot.slane %v738, 1
        %v743 = vsel %vm587, %v741, %v742
        %744 = vrot.lane.b32.xlu0 %v743, 127
        %v745 = vpop.permute.xlu0 %744
        %v747 = vadd.f32 %v647, %v745
        %s748 = sld [smem:[#allocation7 + $0xdc]]
        %v749 = vstv %s748
        %v750 = vmul.f32 %v749, %v389
        %v751 = vmul.f32 %v749, %v390
        %v754 = vrot.slane %v750, 1
        %v755 = vrot.slane %v751, 1
        %v756 = vsel %vm587, %v754, %v755
        %757 = vrot.lane.b32.xlu0 %v756, 127
        %v758 = vpop.permute.xlu0 %757
        %v760 = vadd.f32 %v658, %v758
        %s761 = sld [smem:[#allocation7 + $0x100]]
        %v762 = vstv %s761
        %v763 = vmul.f32 %v762, %v389
        %v764 = vmul.f32 %v762, %v390
        %v767 = vrot.slane %v763, 1
        %v768 = vrot.slane %v764, 1
        %v769 = vsel %vm587, %v767, %v768
        %770 = vrot.lane.b32.xlu0 %v769, 127
        %v771 = vpop.permute.xlu0 %770
        %v773 = vadd.f32 %v669, %v771
        %s774 = sld [smem:[#allocation7 + $0x5]]
        %v775 = vstv %s774
        %v776 = vmul.f32 %v775, %v389
        %v777 = vmul.f32 %v775, %v390
        %v780 = vrot.slane %v776, 1
        %v781 = vrot.slane %v777, 1
        %v782 = vsel %vm587, %v780, %v781
        %783 = vrot.lane.b32.xlu0 %v782, 126
        %v784 = vpop.permute.xlu0 %783
        %v786 = vadd.f32 %v682, %v784
        %s787 = sld [smem:[#allocation7 + $0x29]]
        %v788 = vstv %s787
        %v789 = vmul.f32 %v788, %v389
        %v790 = vmul.f32 %v788, %v390
        %v793 = vrot.slane %v789, 1
        %v794 = vrot.slane %v790, 1
        %v795 = vsel %vm587, %v793, %v794
        %796 = vrot.lane.b32.xlu0 %v795, 126
        %v797 = vpop.permute.xlu0 %796
        %v799 = vadd.f32 %v695, %v797
        %s800 = sld [smem:[#allocation7 + $0x4d]]
        %v801 = vstv %s800
        %v802 = vmul.f32 %v801, %v389
        %v803 = vmul.f32 %v801, %v390
        %v806 = vrot.slane %v802, 1
        %v807 = vrot.slane %v803, 1
        %v808 = vsel %vm587, %v806, %v807
        %809 = vrot.lane.b32.xlu0 %v808, 126
        %v810 = vpop.permute.xlu0 %809
        %v812 = vadd.f32 %v708, %v810
        %s813 = sld [smem:[#allocation7 + $0x71]]
        %v814 = vstv %s813
        %v815 = vmul.f32 %v814, %v389
        %v816 = vmul.f32 %v814, %v390
        %v819 = vrot.slane %v815, 1
        %v820 = vrot.slane %v816, 1
        %v821 = vsel %vm587, %v819, %v820
        %822 = vrot.lane.b32.xlu0 %v821, 126
        %v823 = vpop.permute.xlu0 %822
        %v825 = vadd.f32 %v721, %v823
        %s826 = sld [smem:[#allocation7 + $0x95]]
        %v827 = vstv %s826
        %v828 = vmul.f32 %v827, %v389
        %v829 = vmul.f32 %v827, %v390
        %v832 = vrot.slane %v828, 1
        %v833 = vrot.slane %v829, 1
        %v834 = vsel %vm587, %v832, %v833
        %835 = vrot.lane.b32.xlu0 %v834, 126
        %v836 = vpop.permute.xlu0 %835
        %v838 = vadd.f32 %v734, %v836
        %s839 = sld [smem:[#allocation7 + $0xb9]]
        %v840 = vstv %s839
        %v841 = vmul.f32 %v840, %v389
        %v842 = vmul.f32 %v840, %v390
        %v845 = vrot.slane %v841, 1
        %v846 = vrot.slane %v842, 1
        %v847 = vsel %vm587, %v845, %v846
        %848 = vrot.lane.b32.xlu0 %v847, 126
        %v849 = vpop.permute.xlu0 %848
        %v851 = vadd.f32 %v747, %v849
        %s852 = sld [smem:[#allocation7 + $0xdd]]
        %v853 = vstv %s852
        %v854 = vmul.f32 %v853, %v389
        %v855 = vmul.f32 %v853, %v390
        %v858 = vrot.slane %v854, 1
        %v859 = vrot.slane %v855, 1
        %v860 = vsel %vm587, %v858, %v859
        %861 = vrot.lane.b32.xlu0 %v860, 126
        %v862 = vpop.permute.xlu0 %861
        %v864 = vadd.f32 %v760, %v862
        %s865 = sld [smem:[#allocation7 + $0x101]]
        %v866 = vstv %s865
        %v867 = vmul.f32 %v866, %v389
        %v868 = vmul.f32 %v866, %v390
        %v871 = vrot.slane %v867, 1
        %v872 = vrot.slane %v868, 1
        %v873 = vsel %vm587, %v871, %v872
        %874 = vrot.lane.b32.xlu0 %v873, 126
        %v875 = vpop.permute.xlu0 %874
        %v877 = vadd.f32 %v773, %v875
        %s878 = sld [smem:[#allocation7 + $0x6]]
        %v879 = vstv %s878
        %v880 = vmul.f32 %v879, %v389
        %v881 = vmul.f32 %v879, %v390
        %vm884 = vcmask 1045504
        %v885 = vrot.slane %v880, 2
        %v886 = vrot.slane %v881, 2
        %v887 = vsel %vm884, %v885, %v886
        %v889 = vadd.f32 %v786, %v887
        %s890 = sld [smem:[#allocation7 + $0x2a]]
        %v891 = vstv %s890
        %v892 = vmul.f32 %v891, %v389
        %v893 = vmul.f32 %v891, %v390
        %v896 = vrot.slane %v892, 2
        %v897 = vrot.slane %v893, 2
        %v898 = vsel %vm884, %v896, %v897
        %v900 = vadd.f32 %v799, %v898
        %s901 = sld [smem:[#allocation7 + $0x4e]]
        %v902 = vstv %s901
        %v903 = vmul.f32 %v902, %v389
        %v904 = vmul.f32 %v902, %v390
        %v907 = vrot.slane %v903, 2
        %v908 = vrot.slane %v904, 2
        %v909 = vsel %vm884, %v907, %v908
        %v911 = vadd.f32 %v812, %v909
        %s912 = sld [smem:[#allocation7 + $0x72]]
        %v913 = vstv %s912
        %v914 = vmul.f32 %v913, %v389
        %v915 = vmul.f32 %v913, %v390
        %v918 = vrot.slane %v914, 2
        %v919 = vrot.slane %v915, 2
        %v920 = vsel %vm884, %v918, %v919
        %v922 = vadd.f32 %v825, %v920
        %s923 = sld [smem:[#allocation7 + $0x96]]
        %v924 = vstv %s923
        %v925 = vmul.f32 %v924, %v389
        %v926 = vmul.f32 %v924, %v390
        %v929 = vrot.slane %v925, 2
        %v930 = vrot.slane %v926, 2
        %v931 = vsel %vm884, %v929, %v930
        %v933 = vadd.f32 %v838, %v931
        %s934 = sld [smem:[#allocation7 + $0xba]]
        %v935 = vstv %s934
        %v936 = vmul.f32 %v935, %v389
        %v937 = vmul.f32 %v935, %v390
        %v940 = vrot.slane %v936, 2
        %v941 = vrot.slane %v937, 2
        %v942 = vsel %vm884, %v940, %v941
        %v944 = vadd.f32 %v851, %v942
        %s945 = sld [smem:[#allocation7 + $0xde]]
        %v946 = vstv %s945
        %v947 = vmul.f32 %v946, %v389
        %v948 = vmul.f32 %v946, %v390
        %v951 = vrot.slane %v947, 2
        %v952 = vrot.slane %v948, 2
        %v953 = vsel %vm884, %v951, %v952
        %v955 = vadd.f32 %v864, %v953
        %s956 = sld [smem:[#allocation7 + $0x102]]
        %v957 = vstv %s956
        %v958 = vmul.f32 %v957, %v389
        %v959 = vmul.f32 %v957, %v390
        %v962 = vrot.slane %v958, 2
        %v963 = vrot.slane %v959, 2
        %v964 = vsel %vm884, %v962, %v963
        %v966 = vadd.f32 %v877, %v964
        %s967 = sld [smem:[#allocation7 + $0x7]]
        %v968 = vstv %s967
        %v969 = vmul.f32 %v968, %v389
        %v970 = vmul.f32 %v968, %v390
        %v973 = vrot.slane %v969, 2
        %v974 = vrot.slane %v970, 2
        %v975 = vsel %vm884, %v973, %v974
        %976 = vrot.lane.b32.xlu0 %v975, 127
        %v977 = vpop.permute.xlu0 %976
        %v979 = vadd.f32 %v889, %v977
        %s980 = sld [smem:[#allocation7 + $0x2b]]
        %v981 = vstv %s980
        %v982 = vmul.f32 %v981, %v389
        %v983 = vmul.f32 %v981, %v390
        %v986 = vrot.slane %v982, 2
        %v987 = vrot.slane %v983, 2
        %v988 = vsel %vm884, %v986, %v987
        %989 = vrot.lane.b32.xlu0 %v988, 127
        %v990 = vpop.permute.xlu0 %989
        %v992 = vadd.f32 %v900, %v990
        %s993 = sld [smem:[#allocation7 + $0x4f]]
        %v994 = vstv %s993
        %v995 = vmul.f32 %v994, %v389
        %v996 = vmul.f32 %v994, %v390
        %v999 = vrot.slane %v995, 2
        %v1000 = vrot.slane %v996, 2
        %v1001 = vsel %vm884, %v999, %v1000
        %1002 = vrot.lane.b32.xlu0 %v1001, 127
        %v1003 = vpop.permute.xlu0 %1002
        %v1005 = vadd.f32 %v911, %v1003
        %s1006 = sld [smem:[#allocation7 + $0x73]]
        %v1007 = vstv %s1006
        %v1008 = vmul.f32 %v1007, %v389
        %v1009 = vmul.f32 %v1007, %v390
        %v1012 = vrot.slane %v1008, 2
        %v1013 = vrot.slane %v1009, 2
        %v1014 = vsel %vm884, %v1012, %v1013
        %1015 = vrot.lane.b32.xlu0 %v1014, 127
        %v1016 = vpop.permute.xlu0 %1015
        %v1018 = vadd.f32 %v922, %v1016
        %s1019 = sld [smem:[#allocation7 + $0x97]]
        %v1020 = vstv %s1019
        %v1021 = vmul.f32 %v1020, %v389
        %v1022 = vmul.f32 %v1020, %v390
        %v1025 = vrot.slane %v1021, 2
        %v1026 = vrot.slane %v1022, 2
        %v1027 = vsel %vm884, %v1025, %v1026
        %1028 = vrot.lane.b32.xlu0 %v1027, 127
        %v1029 = vpop.permute.xlu0 %1028
        %v1031 = vadd.f32 %v933, %v1029
        %s1032 = sld [smem:[#allocation7 + $0xbb]]
        %v1033 = vstv %s1032
        %v1034 = vmul.f32 %v1033, %v389
        %v1035 = vmul.f32 %v1033, %v390
        %v1038 = vrot.slane %v1034, 2
        %v1039 = vrot.slane %v1035, 2
        %v1040 = vsel %vm884, %v1038, %v1039
        %1041 = vrot.lane.b32.xlu0 %v1040, 127
        %v1042 = vpop.permute.xlu0 %1041
        %v1044 = vadd.f32 %v944, %v1042
        %s1045 = sld [smem:[#allocation7 + $0xdf]]
        %v1046 = vstv %s1045
        %v1047 = vmul.f32 %v1046, %v389
        %v1048 = vmul.f32 %v1046, %v390
        %v1051 = vrot.slane %v1047, 2
        %v1052 = vrot.slane %v1048, 2
        %v1053 = vsel %vm884, %v1051, %v1052
        %1054 = vrot.lane.b32.xlu0 %v1053, 127
        %v1055 = vpop.permute.xlu0 %1054
        %v1057 = vadd.f32 %v955, %v1055
        %s1058 = sld [smem:[#allocation7 + $0x103]]
        %v1059 = vstv %s1058
        %v1060 = vmul.f32 %v1059, %v389
        %v1061 = vmul.f32 %v1059, %v390
        %v1064 = vrot.slane %v1060, 2
        %v1065 = vrot.slane %v1061, 2
        %v1066 = vsel %vm884, %v1064, %v1065
        %1067 = vrot.lane.b32.xlu0 %v1066, 127
        %v1068 = vpop.permute.xlu0 %1067
        %v1070 = vadd.f32 %v966, %v1068
        %s1071 = sld [smem:[#allocation7 + $0x8]]
        %v1072 = vstv %s1071
        %v1073 = vmul.f32 %v1072, %v389
        %v1074 = vmul.f32 %v1072, %v390
        %v1077 = vrot.slane %v1073, 2
        %v1078 = vrot.slane %v1074, 2
        %v1079 = vsel %vm884, %v1077, %v1078
        %1080 = vrot.lane.b32.xlu0 %v1079, 126
        %v1081 = vpop.permute.xlu0 %1080
        %v1083 = vadd.f32 %v979, %v1081
        %s1084 = sld [smem:[#allocation7 + $0x2c]]
        %v1085 = vstv %s1084
        %v1086 = vmul.f32 %v1085, %v389
        %v1087 = vmul.f32 %v1085, %v390
        %v1090 = vrot.slane %v1086, 2
        %v1091 = vrot.slane %v1087, 2
        %v1092 = vsel %vm884, %v1090, %v1091
        %1093 = vrot.lane.b32.xlu0 %v1092, 126
        %v1094 = vpop.permute.xlu0 %1093
        %v1096 = vadd.f32 %v992, %v1094
        %s1097 = sld [smem:[#allocation7 + $0x50]]
        %v1098 = vstv %s1097
        %v1099 = vmul.f32 %v1098, %v389
        %v1100 = vmul.f32 %v1098, %v390
        %v1103 = vrot.slane %v1099, 2
        %v1104 = vrot.slane %v1100, 2
        %v1105 = vsel %vm884, %v1103, %v1104
        %1106 = vrot.lane.b32.xlu0 %v1105, 126
        %v1107 = vpop.permute.xlu0 %1106
        %v1109 = vadd.f32 %v1005, %v1107
        %s1110 = sld [smem:[#allocation7 + $0x74]]
        %v1111 = vstv %s1110
        %v1112 = vmul.f32 %v1111, %v389
        %v1113 = vmul.f32 %v1111, %v390
        %v1116 = vrot.slane %v1112, 2
        %v1117 = vrot.slane %v1113, 2
        %v1118 = vsel %vm884, %v1116, %v1117
        %1119 = vrot.lane.b32.xlu0 %v1118, 126
        %v1120 = vpop.permute.xlu0 %1119
        %v1122 = vadd.f32 %v1018, %v1120
        %s1123 = sld [smem:[#allocation7 + $0x98]]
        %v1124 = vstv %s1123
        %v1125 = vmul.f32 %v1124, %v389
        %v1126 = vmul.f32 %v1124, %v390
        %v1129 = vrot.slane %v1125, 2
        %v1130 = vrot.slane %v1126, 2
        %v1131 = vsel %vm884, %v1129, %v1130
        %1132 = vrot.lane.b32.xlu0 %v1131, 126
        %v1133 = vpop.permute.xlu0 %1132
        %v1135 = vadd.f32 %v1031, %v1133
        %s1136 = sld [smem:[#allocation7 + $0xbc]]
        %v1137 = vstv %s1136
        %v1138 = vmul.f32 %v1137, %v389
        %v1139 = vmul.f32 %v1137, %v390
        %v1142 = vrot.slane %v1138, 2
        %v1143 = vrot.slane %v1139, 2
        %v1144 = vsel %vm884, %v1142, %v1143
        %1145 = vrot.lane.b32.xlu0 %v1144, 126
        %v1146 = vpop.permute.xlu0 %1145
        %v1148 = vadd.f32 %v1044, %v1146
        %s1149 = sld [smem:[#allocation7 + $0xe0]]
        %v1150 = vstv %s1149
        %v1151 = vmul.f32 %v1150, %v389
        %v1152 = vmul.f32 %v1150, %v390
        %v1155 = vrot.slane %v1151, 2
        %v1156 = vrot.slane %v1152, 2
        %v1157 = vsel %vm884, %v1155, %v1156
        %1158 = vrot.lane.b32.xlu0 %v1157, 126
        %v1159 = vpop.permute.xlu0 %1158
        %v1161 = vadd.f32 %v1057, %v1159
        %s1162 = sld [smem:[#allocation7 + $0x104]]
        %v1163 = vstv %s1162
        %v1164 = vmul.f32 %v1163, %v389
        %v1165 = vmul.f32 %v1163, %v390
        %v1168 = vrot.slane %v1164, 2
        %v1169 = vrot.slane %v1165, 2
        %v1170 = vsel %vm884, %v1168, %v1169
        %1171 = vrot.lane.b32.xlu0 %v1170, 126
        %v1172 = vpop.permute.xlu0 %1171
        %v1174 = vadd.f32 %v1070, %v1172
        %s1175 = sld [smem:[#allocation7 + $0x9]]
        %v1176 = vstv %s1175
        %v1177 = vmul.f32 %v1176, %v391
        %v1178 = vadd.f32 %v1083, %v1177
        %s1179 = sld [smem:[#allocation7 + $0x2d]]
        %v1180 = vstv %s1179
        %v1181 = vmul.f32 %v1180, %v391
        %v1182 = vadd.f32 %v1096, %v1181
        %s1183 = sld [smem:[#allocation7 + $0x51]]
        %v1184 = vstv %s1183
        %v1185 = vmul.f32 %v1184, %v391
        %v1186 = vadd.f32 %v1109, %v1185
        %s1187 = sld [smem:[#allocation7 + $0x75]]
        %v1188 = vstv %s1187
        %v1189 = vmul.f32 %v1188, %v391
        %v1190 = vadd.f32 %v1122, %v1189
        %s1191 = sld [smem:[#allocation7 + $0x99]]
        %v1192 = vstv %s1191
        %v1193 = vmul.f32 %v1192, %v391
        %v1194 = vadd.f32 %v1135, %v1193
        %s1195 = sld [smem:[#allocation7 + $0xbd]]
        %v1196 = vstv %s1195
        %v1197 = vmul.f32 %v1196, %v391
        %v1198 = vadd.f32 %v1148, %v1197
        %s1199 = sld [smem:[#allocation7 + $0xe1]]
        %v1200 = vstv %s1199
        %v1201 = vmul.f32 %v1200, %v391
        %v1202 = vadd.f32 %v1161, %v1201
        %s1203 = sld [smem:[#allocation7 + $0x105]]
        %v1204 = vstv %s1203
        %v1205 = vmul.f32 %v1204, %v391
        %v1206 = vadd.f32 %v1174, %v1205
        %s1207 = sld [smem:[#allocation7 + $0xa]]
        %v1208 = vstv %s1207
        %v1209 = vmul.f32 %v1208, %v391
        %1211 = vrot.lane.b32.xlu0 %v1209, 127
        %v1212 = vpop.permute.xlu0 %1211
        %v1214 = vadd.f32 %v1178, %v1212
        %s1215 = sld [smem:[#allocation7 + $0x2e]]
        %v1216 = vstv %s1215
        %v1217 = vmul.f32 %v1216, %v391
        %1219 = vrot.lane.b32.xlu0 %v1217, 127
        %v1220 = vpop.permute.xlu0 %1219
        %v1222 = vadd.f32 %v1182, %v1220
        %s1223 = sld [smem:[#allocation7 + $0x52]]
        %v1224 = vstv %s1223
        %v1225 = vmul.f32 %v1224, %v391
        %1227 = vrot.lane.b32.xlu0 %v1225, 127
        %v1228 = vpop.permute.xlu0 %1227
        %v1230 = vadd.f32 %v1186, %v1228
        %s1231 = sld [smem:[#allocation7 + $0x76]]
        %v1232 = vstv %s1231
        %v1233 = vmul.f32 %v1232, %v391
        %1235 = vrot.lane.b32.xlu0 %v1233, 127
        %v1236 = vpop.permute.xlu0 %1235
        %v1238 = vadd.f32 %v1190, %v1236
        %s1239 = sld [smem:[#allocation7 + $0x9a]]
        %v1240 = vstv %s1239
        %v1241 = vmul.f32 %v1240, %v391
        %1243 = vrot.lane.b32.xlu0 %v1241, 127
        %v1244 = vpop.permute.xlu0 %1243
        %v1246 = vadd.f32 %v1194, %v1244
        %s1247 = sld [smem:[#allocation7 + $0xbe]]
        %v1248 = vstv %s1247
        %v1249 = vmul.f32 %v1248, %v391
        %1251 = vrot.lane.b32.xlu0 %v1249, 127
        %v1252 = vpop.permute.xlu0 %1251
        %v1254 = vadd.f32 %v1198, %v1252
        %s1255 = sld [smem:[#allocation7 + $0xe2]]
        %v1256 = vstv %s1255
        %v1257 = vmul.f32 %v1256, %v391
        %1259 = vrot.lane.b32.xlu0 %v1257, 127
        %v1260 = vpop.permute.xlu0 %1259
        %v1262 = vadd.f32 %v1202, %v1260
        %s1263 = sld [smem:[#allocation7 + $0x106]]
        %v1264 = vstv %s1263
        %v1265 = vmul.f32 %v1264, %v391
        %1267 = vrot.lane.b32.xlu0 %v1265, 127
        %v1268 = vpop.permute.xlu0 %1267
        %v1270 = vadd.f32 %v1206, %v1268
        %s1271 = sld [smem:[#allocation7 + $0xb]]
        %v1272 = vstv %s1271
        %v1273 = vmul.f32 %v1272, %v391
        %1275 = vrot.lane.b32.xlu0 %v1273, 126
        %v1276 = vpop.permute.xlu0 %1275
        %v1278 = vadd.f32 %v1214, %v1276
        %s1279 = sld [smem:[#allocation7 + $0x2f]]
        %v1280 = vstv %s1279
        %v1281 = vmul.f32 %v1280, %v391
        %1283 = vrot.lane.b32.xlu0 %v1281, 126
        %v1284 = vpop.permute.xlu0 %1283
        %v1286 = vadd.f32 %v1222, %v1284
        %s1287 = sld [smem:[#allocation7 + $0x53]]
        %v1288 = vstv %s1287
        %v1289 = vmul.f32 %v1288, %v391
        %1291 = vrot.lane.b32.xlu0 %v1289, 126
        %v1292 = vpop.permute.xlu0 %1291
        %v1294 = vadd.f32 %v1230, %v1292
        %s1295 = sld [smem:[#allocation7 + $0x77]]
        %v1296 = vstv %s1295
        %v1297 = vmul.f32 %v1296, %v391
        %1299 = vrot.lane.b32.xlu0 %v1297, 126
        %v1300 = vpop.permute.xlu0 %1299
        %v1302 = vadd.f32 %v1238, %v1300
        %s1303 = sld [smem:[#allocation7 + $0x9b]]
        %v1304 = vstv %s1303
        %v1305 = vmul.f32 %v1304, %v391
        %1307 = vrot.lane.b32.xlu0 %v1305, 126
        %v1308 = vpop.permute.xlu0 %1307
        %v1310 = vadd.f32 %v1246, %v1308
        %s1311 = sld [smem:[#allocation7 + $0xbf]]
        %v1312 = vstv %s1311
        %v1313 = vmul.f32 %v1312, %v391
        %1315 = vrot.lane.b32.xlu0 %v1313, 126
        %v1316 = vpop.permute.xlu0 %1315
        %v1318 = vadd.f32 %v1254, %v1316
        %s1319 = sld [smem:[#allocation7 + $0xe3]]
        %v1320 = vstv %s1319
        %v1321 = vmul.f32 %v1320, %v391
        %1323 = vrot.lane.b32.xlu0 %v1321, 126
        %v1324 = vpop.permute.xlu0 %1323
        %v1326 = vadd.f32 %v1262, %v1324
        %s1327 = sld [smem:[#allocation7 + $0x107]]
        %v1328 = vstv %s1327
        %v1329 = vmul.f32 %v1328, %v391
        %1331 = vrot.lane.b32.xlu0 %v1329, 126
        %v1332 = vpop.permute.xlu0 %1331
        %v1334 = vadd.f32 %v1270, %v1332
        %s1335 = sld [smem:[#allocation7 + $0xc]]
        %v1336 = vstv %s1335
        %v1337 = vmul.f32 %v1336, %v391
        %v1338 = vmul.f32 %v1336, %v392
        %v1341 = vrot.slane %v1337, 1
        %v1342 = vrot.slane %v1338, 1
        %v1343 = vsel %vm587, %v1341, %v1342
        %v1345 = vadd.f32 %v1278, %v1343
        %s1346 = sld [smem:[#allocation7 + $0x30]]
        %v1347 = vstv %s1346
        %v1348 = vmul.f32 %v1347, %v391
        %v1349 = vmul.f32 %v1347, %v392
        %v1352 = vrot.slane %v1348, 1
        %v1353 = vrot.slane %v1349, 1
        %v1354 = vsel %vm587, %v1352, %v1353
        %v1356 = vadd.f32 %v1286, %v1354
        %s1357 = sld [smem:[#allocation7 + $0x54]]
        %v1358 = vstv %s1357
        %v1359 = vmul.f32 %v1358, %v391
        %v1360 = vmul.f32 %v1358, %v392
        %v1363 = vrot.slane %v1359, 1
        %v1364 = vrot.slane %v1360, 1
        %v1365 = vsel %vm587, %v1363, %v1364
        %v1367 = vadd.f32 %v1294, %v1365
        %s1368 = sld [smem:[#allocation7 + $0x78]]
        %v1369 = vstv %s1368
        %v1370 = vmul.f32 %v1369, %v391
        %v1371 = vmul.f32 %v1369, %v392
        %v1374 = vrot.slane %v1370, 1
        %v1375 = vrot.slane %v1371, 1
        %v1376 = vsel %vm587, %v1374, %v1375
        %v1378 = vadd.f32 %v1302, %v1376
        %s1379 = sld [smem:[#allocation7 + $0x9c]]
        %v1380 = vstv %s1379
        %v1381 = vmul.f32 %v1380, %v391
        %v1382 = vmul.f32 %v1380, %v392
        %v1385 = vrot.slane %v1381, 1
        %v1386 = vrot.slane %v1382, 1
        %v1387 = vsel %vm587, %v1385, %v1386
        %v1389 = vadd.f32 %v1310, %v1387
        %s1390 = sld [smem:[#allocation7 + $0xc0]]
        %v1391 = vstv %s1390
        %v1392 = vmul.f32 %v1391, %v391
        %v1393 = vmul.f32 %v1391, %v392
        %v1396 = vrot.slane %v1392, 1
        %v1397 = vrot.slane %v1393, 1
        %v1398 = vsel %vm587, %v1396, %v1397
        %v1400 = vadd.f32 %v1318, %v1398
        %s1401 = sld [smem:[#allocation7 + $0xe4]]
        %v1402 = vstv %s1401
        %v1403 = vmul.f32 %v1402, %v391
        %v1404 = vmul.f32 %v1402, %v392
        %v1407 = vrot.slane %v1403, 1
        %v1408 = vrot.slane %v1404, 1
        %v1409 = vsel %vm587, %v1407, %v1408
        %v1411 = vadd.f32 %v1326, %v1409
        %s1412 = sld [smem:[#allocation7 + $0x108]]
        %v1413 = vstv %s1412
        %v1414 = vmul.f32 %v1413, %v391
        %v1415 = vmul.f32 %v1413, %v392
        %v1418 = vrot.slane %v1414, 1
        %v1419 = vrot.slane %v1415, 1
        %v1420 = vsel %vm587, %v1418, %v1419
        %v1422 = vadd.f32 %v1334, %v1420
        %s1423 = sld [smem:[#allocation7 + $0xd]]
        %v1424 = vstv %s1423
        %v1425 = vmul.f32 %v1424, %v391
        %v1426 = vmul.f32 %v1424, %v392
        %v1429 = vrot.slane %v1425, 1
        %v1430 = vrot.slane %v1426, 1
        %v1431 = vsel %vm587, %v1429, %v1430
        %1432 = vrot.lane.b32.xlu0 %v1431, 127
        %v1433 = vpop.permute.xlu0 %1432
        %v1435 = vadd.f32 %v1345, %v1433
        %s1436 = sld [smem:[#allocation7 + $0x31]]
        %v1437 = vstv %s1436
        %v1438 = vmul.f32 %v1437, %v391
        %v1439 = vmul.f32 %v1437, %v392
        %v1442 = vrot.slane %v1438, 1
        %v1443 = vrot.slane %v1439, 1
        %v1444 = vsel %vm587, %v1442, %v1443
        %1445 = vrot.lane.b32.xlu0 %v1444, 127
        %v1446 = vpop.permute.xlu0 %1445
        %v1448 = vadd.f32 %v1356, %v1446
        %s1449 = sld [smem:[#allocation7 + $0x55]]
        %v1450 = vstv %s1449
        %v1451 = vmul.f32 %v1450, %v391
        %v1452 = vmul.f32 %v1450, %v392
        %v1455 = vrot.slane %v1451, 1
        %v1456 = vrot.slane %v1452, 1
        %v1457 = vsel %vm587, %v1455, %v1456
        %1458 = vrot.lane.b32.xlu0 %v1457, 127
        %v1459 = vpop.permute.xlu0 %1458
        %v1461 = vadd.f32 %v1367, %v1459
        %s1462 = sld [smem:[#allocation7 + $0x79]]
        %v1463 = vstv %s1462
        %v1464 = vmul.f32 %v1463, %v391
        %v1465 = vmul.f32 %v1463, %v392
        %v1468 = vrot.slane %v1464, 1
        %v1469 = vrot.slane %v1465, 1
        %v1470 = vsel %vm587, %v1468, %v1469
        %1471 = vrot.lane.b32.xlu0 %v1470, 127
        %v1472 = vpop.permute.xlu0 %1471
        %v1474 = vadd.f32 %v1378, %v1472
        %s1475 = sld [smem:[#allocation7 + $0x9d]]
        %v1476 = vstv %s1475
        %v1477 = vmul.f32 %v1476, %v391
        %v1478 = vmul.f32 %v1476, %v392
        %v1481 = vrot.slane %v1477, 1
        %v1482 = vrot.slane %v1478, 1
        %v1483 = vsel %vm587, %v1481, %v1482
        %1484 = vrot.lane.b32.xlu0 %v1483, 127
        %v1485 = vpop.permute.xlu0 %1484
        %v1487 = vadd.f32 %v1389, %v1485
        %s1488 = sld [smem:[#allocation7 + $0xc1]]
        %v1489 = vstv %s1488
        %v1490 = vmul.f32 %v1489, %v391
        %v1491 = vmul.f32 %v1489, %v392
        %v1494 = vrot.slane %v1490, 1
        %v1495 = vrot.slane %v1491, 1
        %v1496 = vsel %vm587, %v1494, %v1495
        %1497 = vrot.lane.b32.xlu0 %v1496, 127
        %v1498 = vpop.permute.xlu0 %1497
        %v1500 = vadd.f32 %v1400, %v1498
        %s1501 = sld [smem:[#allocation7 + $0xe5]]
        %v1502 = vstv %s1501
        %v1503 = vmul.f32 %v1502, %v391
        %v1504 = vmul.f32 %v1502, %v392
        %v1507 = vrot.slane %v1503, 1
        %v1508 = vrot.slane %v1504, 1
        %v1509 = vsel %vm587, %v1507, %v1508
        %1510 = vrot.lane.b32.xlu0 %v1509, 127
        %v1511 = vpop.permute.xlu0 %1510
        %v1513 = vadd.f32 %v1411, %v1511
        %s1514 = sld [smem:[#allocation7 + $0x109]]
        %v1515 = vstv %s1514
        %v1516 = vmul.f32 %v1515, %v391
        %v1517 = vmul.f32 %v1515, %v392
        %v1520 = vrot.slane %v1516, 1
        %v1521 = vrot.slane %v1517, 1
        %v1522 = vsel %vm587, %v1520, %v1521
        %1523 = vrot.lane.b32.xlu0 %v1522, 127
        %v1524 = vpop.permute.xlu0 %1523
        %v1526 = vadd.f32 %v1422, %v1524
        %s1527 = sld [smem:[#allocation7 + $0xe]]
        %v1528 = vstv %s1527
        %v1529 = vmul.f32 %v1528, %v391
        %v1530 = vmul.f32 %v1528, %v392
        %v1533 = vrot.slane %v1529, 1
        %v1534 = vrot.slane %v1530, 1
        %v1535 = vsel %vm587, %v1533, %v1534
        %1536 = vrot.lane.b32.xlu0 %v1535, 126
        %v1537 = vpop.permute.xlu0 %1536
        %v1539 = vadd.f32 %v1435, %v1537
        %s1540 = sld [smem:[#allocation7 + $0x32]]
        %v1541 = vstv %s1540
        %v1542 = vmul.f32 %v1541, %v391
        %v1543 = vmul.f32 %v1541, %v392
        %v1546 = vrot.slane %v1542, 1
        %v1547 = vrot.slane %v1543, 1
        %v1548 = vsel %vm587, %v1546, %v1547
        %1549 = vrot.lane.b32.xlu0 %v1548, 126
        %v1550 = vpop.permute.xlu0 %1549
        %v1552 = vadd.f32 %v1448, %v1550
        %s1553 = sld [smem:[#allocation7 + $0x56]]
        %v1554 = vstv %s1553
        %v1555 = vmul.f32 %v1554, %v391
        %v1556 = vmul.f32 %v1554, %v392
        %v1559 = vrot.slane %v1555, 1
        %v1560 = vrot.slane %v1556, 1
        %v1561 = vsel %vm587, %v1559, %v1560
        %1562 = vrot.lane.b32.xlu0 %v1561, 126
        %v1563 = vpop.permute.xlu0 %1562
        %v1565 = vadd.f32 %v1461, %v1563
        %s1566 = sld [smem:[#allocation7 + $0x7a]]
        %v1567 = vstv %s1566
        %v1568 = vmul.f32 %v1567, %v391
        %v1569 = vmul.f32 %v1567, %v392
        %v1572 = vrot.slane %v1568, 1
        %v1573 = vrot.slane %v1569, 1
        %v1574 = vsel %vm587, %v1572, %v1573
        %1575 = vrot.lane.b32.xlu0 %v1574, 126
        %v1576 = vpop.permute.xlu0 %1575
        %v1578 = vadd.f32 %v1474, %v1576
        %s1579 = sld [smem:[#allocation7 + $0x9e]]
        %v1580 = vstv %s1579
        %v1581 = vmul.f32 %v1580, %v391
        %v1582 = vmul.f32 %v1580, %v392
        %v1585 = vrot.slane %v1581, 1
        %v1586 = vrot.slane %v1582, 1
        %v1587 = vsel %vm587, %v1585, %v1586
        %1588 = vrot.lane.b32.xlu0 %v1587, 126
        %v1589 = vpop.permute.xlu0 %1588
        %v1591 = vadd.f32 %v1487, %v1589
        %s1592 = sld [smem:[#allocation7 + $0xc2]]
        %v1593 = vstv %s1592
        %v1594 = vmul.f32 %v1593, %v391
        %v1595 = vmul.f32 %v1593, %v392
        %v1598 = vrot.slane %v1594, 1
        %v1599 = vrot.slane %v1595, 1
        %v1600 = vsel %vm587, %v1598, %v1599
        %1601 = vrot.lane.b32.xlu0 %v1600, 126
        %v1602 = vpop.permute.xlu0 %1601
        %v1604 = vadd.f32 %v1500, %v1602
        %s1605 = sld [smem:[#allocation7 + $0xe6]]
        %v1606 = vstv %s1605
        %v1607 = vmul.f32 %v1606, %v391
        %v1608 = vmul.f32 %v1606, %v392
        %v1611 = vrot.slane %v1607, 1
        %v1612 = vrot.slane %v1608, 1
        %v1613 = vsel %vm587, %v1611, %v1612
        %1614 = vrot.lane.b32.xlu0 %v1613, 126
        %v1615 = vpop.permute.xlu0 %1614
        %v1617 = vadd.f32 %v1513, %v1615
        %s1618 = sld [smem:[#allocation7 + $0x10a]]
        %v1619 = vstv %s1618
        %v1620 = vmul.f32 %v1619, %v391
        %v1621 = vmul.f32 %v1619, %v392
        %v1624 = vrot.slane %v1620, 1
        %v1625 = vrot.slane %v1621, 1
        %v1626 = vsel %vm587, %v1624, %v1625
        %1627 = vrot.lane.b32.xlu0 %v1626, 126
        %v1628 = vpop.permute.xlu0 %1627
        %v1630 = vadd.f32 %v1526, %v1628
        %s1631 = sld [smem:[#allocation7 + $0xf]]
        %v1632 = vstv %s1631
        %v1633 = vmul.f32 %v1632, %v391
        %v1634 = vmul.f32 %v1632, %v392
        %v1637 = vrot.slane %v1633, 2
        %v1638 = vrot.slane %v1634, 2
        %v1639 = vsel %vm884, %v1637, %v1638
        %v1641 = vadd.f32 %v1539, %v1639
        %s1642 = sld [smem:[#allocation7 + $0x33]]
        %v1643 = vstv %s1642
        %v1644 = vmul.f32 %v1643, %v391
        %v1645 = vmul.f32 %v1643, %v392
        %v1648 = vrot.slane %v1644, 2
        %v1649 = vrot.slane %v1645, 2
        %v1650 = vsel %vm884, %v1648, %v1649
        %v1652 = vadd.f32 %v1552, %v1650
        %s1653 = sld [smem:[#allocation7 + $0x57]]
        %v1654 = vstv %s1653
        %v1655 = vmul.f32 %v1654, %v391
        %v1656 = vmul.f32 %v1654, %v392
        %v1659 = vrot.slane %v1655, 2
        %v1660 = vrot.slane %v1656, 2
        %v1661 = vsel %vm884, %v1659, %v1660
        %v1663 = vadd.f32 %v1565, %v1661
        %s1664 = sld [smem:[#allocation7 + $0x7b]]
        %v1665 = vstv %s1664
        %v1666 = vmul.f32 %v1665, %v391
        %v1667 = vmul.f32 %v1665, %v392
        %v1670 = vrot.slane %v1666, 2
        %v1671 = vrot.slane %v1667, 2
        %v1672 = vsel %vm884, %v1670, %v1671
        %v1674 = vadd.f32 %v1578, %v1672
        %s1675 = sld [smem:[#allocation7 + $0x9f]]
        %v1676 = vstv %s1675
        %v1677 = vmul.f32 %v1676, %v391
        %v1678 = vmul.f32 %v1676, %v392
        %v1681 = vrot.slane %v1677, 2
        %v1682 = vrot.slane %v1678, 2
        %v1683 = vsel %vm884, %v1681, %v1682
        %v1685 = vadd.f32 %v1591, %v1683
        %s1686 = sld [smem:[#allocation7 + $0xc3]]
        %v1687 = vstv %s1686
        %v1688 = vmul.f32 %v1687, %v391
        %v1689 = vmul.f32 %v1687, %v392
        %v1692 = vrot.slane %v1688, 2
        %v1693 = vrot.slane %v1689, 2
        %v1694 = vsel %vm884, %v1692, %v1693
        %v1696 = vadd.f32 %v1604, %v1694
        %s1697 = sld [smem:[#allocation7 + $0xe7]]
        %v1698 = vstv %s1697
        %v1699 = vmul.f32 %v1698, %v391
        %v1700 = vmul.f32 %v1698, %v392
        %v1703 = vrot.slane %v1699, 2
        %v1704 = vrot.slane %v1700, 2
        %v1705 = vsel %vm884, %v1703, %v1704
        %v1707 = vadd.f32 %v1617, %v1705
        %s1708 = sld [smem:[#allocation7 + $0x10b]]
        %v1709 = vstv %s1708
        %v1710 = vmul.f32 %v1709, %v391
        %v1711 = vmul.f32 %v1709, %v392
        %v1714 = vrot.slane %v1710, 2
        %v1715 = vrot.slane %v1711, 2
        %v1716 = vsel %vm884, %v1714, %v1715
        %v1718 = vadd.f32 %v1630, %v1716
        %s1719 = sld [smem:[#allocation7 + $0x10]]
        %v1720 = vstv %s1719
        %v1721 = vmul.f32 %v1720, %v391
        %v1722 = vmul.f32 %v1720, %v392
        %v1725 = vrot.slane %v1721, 2
        %v1726 = vrot.slane %v1722, 2
        %v1727 = vsel %vm884, %v1725, %v1726
        %1728 = vrot.lane.b32.xlu0 %v1727, 127
        %v1729 = vpop.permute.xlu0 %1728
        %v1731 = vadd.f32 %v1641, %v1729
        %s1732 = sld [smem:[#allocation7 + $0x34]]
        %v1733 = vstv %s1732
        %v1734 = vmul.f32 %v1733, %v391
        %v1735 = vmul.f32 %v1733, %v392
        %v1738 = vrot.slane %v1734, 2
        %v1739 = vrot.slane %v1735, 2
        %v1740 = vsel %vm884, %v1738, %v1739
        %1741 = vrot.lane.b32.xlu0 %v1740, 127
        %v1742 = vpop.permute.xlu0 %1741
        %v1744 = vadd.f32 %v1652, %v1742
        %s1745 = sld [smem:[#allocation7 + $0x58]]
        %v1746 = vstv %s1745
        %v1747 = vmul.f32 %v1746, %v391
        %v1748 = vmul.f32 %v1746, %v392
        %v1751 = vrot.slane %v1747, 2
        %v1752 = vrot.slane %v1748, 2
        %v1753 = vsel %vm884, %v1751, %v1752
        %1754 = vrot.lane.b32.xlu0 %v1753, 127
        %v1755 = vpop.permute.xlu0 %1754
        %v1757 = vadd.f32 %v1663, %v1755
        %s1758 = sld [smem:[#allocation7 + $0x7c]]
        %v1759 = vstv %s1758
        %v1760 = vmul.f32 %v1759, %v391
        %v1761 = vmul.f32 %v1759, %v392
        %v1764 = vrot.slane %v1760, 2
        %v1765 = vrot.slane %v1761, 2
        %v1766 = vsel %vm884, %v1764, %v1765
        %1767 = vrot.lane.b32.xlu0 %v1766, 127
        %v1768 = vpop.permute.xlu0 %1767
        %v1770 = vadd.f32 %v1674, %v1768
        %s1771 = sld [smem:[#allocation7 + $0xa0]]
        %v1772 = vstv %s1771
        %v1773 = vmul.f32 %v1772, %v391
        %v1774 = vmul.f32 %v1772, %v392
        %v1777 = vrot.slane %v1773, 2
        %v1778 = vrot.slane %v1774, 2
        %v1779 = vsel %vm884, %v1777, %v1778
        %1780 = vrot.lane.b32.xlu0 %v1779, 127
        %v1781 = vpop.permute.xlu0 %1780
        %v1783 = vadd.f32 %v1685, %v1781
        %s1784 = sld [smem:[#allocation7 + $0xc4]]
        %v1785 = vstv %s1784
        %v1786 = vmul.f32 %v1785, %v391
        %v1787 = vmul.f32 %v1785, %v392
        %v1790 = vrot.slane %v1786, 2
        %v1791 = vrot.slane %v1787, 2
        %v1792 = vsel %vm884, %v1790, %v1791
        %1793 = vrot.lane.b32.xlu0 %v1792, 127
        %v1794 = vpop.permute.xlu0 %1793
        %v1796 = vadd.f32 %v1696, %v1794
        %s1797 = sld [smem:[#allocation7 + $0xe8]]
        %v1798 = vstv %s1797
        %v1799 = vmul.f32 %v1798, %v391
        %v1800 = vmul.f32 %v1798, %v392
        %v1803 = vrot.slane %v1799, 2
        %v1804 = vrot.slane %v1800, 2
        %v1805 = vsel %vm884, %v1803, %v1804
        %1806 = vrot.lane.b32.xlu0 %v1805, 127
        %v1807 = vpop.permute.xlu0 %1806
        %v1809 = vadd.f32 %v1707, %v1807
        %s1810 = sld [smem:[#allocation7 + $0x10c]]
        %v1811 = vstv %s1810
        %v1812 = vmul.f32 %v1811, %v391
        %v1813 = vmul.f32 %v1811, %v392
        %v1816 = vrot.slane %v1812, 2
        %v1817 = vrot.slane %v1813, 2
        %v1818 = vsel %vm884, %v1816, %v1817
        %1819 = vrot.lane.b32.xlu0 %v1818, 127
        %v1820 = vpop.permute.xlu0 %1819
        %v1822 = vadd.f32 %v1718, %v1820
        %s1823 = sld [smem:[#allocation7 + $0x11]]
        %v1824 = vstv %s1823
        %v1825 = vmul.f32 %v1824, %v391
        %v1826 = vmul.f32 %v1824, %v392
        %v1829 = vrot.slane %v1825, 2
        %v1830 = vrot.slane %v1826, 2
        %v1831 = vsel %vm884, %v1829, %v1830
        %1832 = vrot.lane.b32.xlu0 %v1831, 126
        %v1833 = vpop.permute.xlu0 %1832
        %v1835 = vadd.f32 %v1731, %v1833
        %s1836 = sld [smem:[#allocation7 + $0x35]]
        %v1837 = vstv %s1836
        %v1838 = vmul.f32 %v1837, %v391
        %v1839 = vmul.f32 %v1837, %v392
        %v1842 = vrot.slane %v1838, 2
        %v1843 = vrot.slane %v1839, 2
        %v1844 = vsel %vm884, %v1842, %v1843
        %1845 = vrot.lane.b32.xlu0 %v1844, 126
        %v1846 = vpop.permute.xlu0 %1845
        %v1848 = vadd.f32 %v1744, %v1846
        %s1849 = sld [smem:[#allocation7 + $0x59]]
        %v1850 = vstv %s1849
        %v1851 = vmul.f32 %v1850, %v391
        %v1852 = vmul.f32 %v1850, %v392
        %v1855 = vrot.slane %v1851, 2
        %v1856 = vrot.slane %v1852, 2
        %v1857 = vsel %vm884, %v1855, %v1856
        %1858 = vrot.lane.b32.xlu0 %v1857, 126
        %v1859 = vpop.permute.xlu0 %1858
        %v1861 = vadd.f32 %v1757, %v1859
        %s1862 = sld [smem:[#allocation7 + $0x7d]]
        %v1863 = vstv %s1862
        %v1864 = vmul.f32 %v1863, %v391
        %v1865 = vmul.f32 %v1863, %v392
        %v1868 = vrot.slane %v1864, 2
        %v1869 = vrot.slane %v1865, 2
        %v1870 = vsel %vm884, %v1868, %v1869
        %1871 = vrot.lane.b32.xlu0 %v1870, 126
        %v1872 = vpop.permute.xlu0 %1871
        %v1874 = vadd.f32 %v1770, %v1872
        %s1875 = sld [smem:[#allocation7 + $0xa1]]
        %v1876 = vstv %s1875
        %v1877 = vmul.f32 %v1876, %v391
        %v1878 = vmul.f32 %v1876, %v392
        %v1881 = vrot.slane %v1877, 2
        %v1882 = vrot.slane %v1878, 2
        %v1883 = vsel %vm884, %v1881, %v1882
        %1884 = vrot.lane.b32.xlu0 %v1883, 126
        %v1885 = vpop.permute.xlu0 %1884
        %v1887 = vadd.f32 %v1783, %v1885
        %s1888 = sld [smem:[#allocation7 + $0xc5]]
        %v1889 = vstv %s1888
        %v1890 = vmul.f32 %v1889, %v391
        %v1891 = vmul.f32 %v1889, %v392
        %v1894 = vrot.slane %v1890, 2
        %v1895 = vrot.slane %v1891, 2
        %v1896 = vsel %vm884, %v1894, %v1895
        %1897 = vrot.lane.b32.xlu0 %v1896, 126
        %v1898 = vpop.permute.xlu0 %1897
        %v1900 = vadd.f32 %v1796, %v1898
        %s1901 = sld [smem:[#allocation7 + $0xe9]]
        %v1902 = vstv %s1901
        %v1903 = vmul.f32 %v1902, %v391
        %v1904 = vmul.f32 %v1902, %v392
        %v1907 = vrot.slane %v1903, 2
        %v1908 = vrot.slane %v1904, 2
        %v1909 = vsel %vm884, %v1907, %v1908
        %1910 = vrot.lane.b32.xlu0 %v1909, 126
        %v1911 = vpop.permute.xlu0 %1910
        %v1913 = vadd.f32 %v1809, %v1911
        %s1914 = sld [smem:[#allocation7 + $0x10d]]
        %v1915 = vstv %s1914
        %v1916 = vmul.f32 %v1915, %v391
        %v1917 = vmul.f32 %v1915, %v392
        %v1920 = vrot.slane %v1916, 2
        %v1921 = vrot.slane %v1917, 2
        %v1922 = vsel %vm884, %v1920, %v1921
        %1923 = vrot.lane.b32.xlu0 %v1922, 126
        %v1924 = vpop.permute.xlu0 %1923
        %v1926 = vadd.f32 %v1822, %v1924
        %s1927 = sld [smem:[#allocation7 + $0x12]]
        %v1928 = vstv %s1927
        %v1929 = vmul.f32 %v1928, %v393
        %v1930 = vadd.f32 %v1835, %v1929
        %s1931 = sld [smem:[#allocation7 + $0x36]]
        %v1932 = vstv %s1931
        %v1933 = vmul.f32 %v1932, %v393
        %v1934 = vadd.f32 %v1848, %v1933
        %s1935 = sld [smem:[#allocation7 + $0x5a]]
        %v1936 = vstv %s1935
        %v1937 = vmul.f32 %v1936, %v393
        %v1938 = vadd.f32 %v1861, %v1937
        %s1939 = sld [smem:[#allocation7 + $0x7e]]
        %v1940 = vstv %s1939
        %v1941 = vmul.f32 %v1940, %v393
        %v1942 = vadd.f32 %v1874, %v1941
        %s1943 = sld [smem:[#allocation7 + $0xa2]]
        %v1944 = vstv %s1943
        %v1945 = vmul.f32 %v1944, %v393
        %v1946 = vadd.f32 %v1887, %v1945
        %s1947 = sld [smem:[#allocation7 + $0xc6]]
        %v1948 = vstv %s1947
        %v1949 = vmul.f32 %v1948, %v393
        %v1950 = vadd.f32 %v1900, %v1949
        %s1951 = sld [smem:[#allocation7 + $0xea]]
        %v1952 = vstv %s1951
        %v1953 = vmul.f32 %v1952, %v393
        %v1954 = vadd.f32 %v1913, %v1953
        %s1955 = sld [smem:[#allocation7 + $0x10e]]
        %v1956 = vstv %s1955
        %v1957 = vmul.f32 %v1956, %v393
        %v1958 = vadd.f32 %v1926, %v1957
        %s1959 = sld [smem:[#allocation7 + $0x13]]
        %v1960 = vstv %s1959
        %v1961 = vmul.f32 %v1960, %v393
        %1963 = vrot.lane.b32.xlu0 %v1961, 127
        %v1964 = vpop.permute.xlu0 %1963
        %v1966 = vadd.f32 %v1930, %v1964
        %s1967 = sld [smem:[#allocation7 + $0x37]]
        %v1968 = vstv %s1967
        %v1969 = vmul.f32 %v1968, %v393
        %1971 = vrot.lane.b32.xlu0 %v1969, 127
        %v1972 = vpop.permute.xlu0 %1971
        %v1974 = vadd.f32 %v1934, %v1972
        %s1975 = sld [smem:[#allocation7 + $0x5b]]
        %v1976 = vstv %s1975
        %v1977 = vmul.f32 %v1976, %v393
        %1979 = vrot.lane.b32.xlu0 %v1977, 127
        %v1980 = vpop.permute.xlu0 %1979
        %v1982 = vadd.f32 %v1938, %v1980
        %s1983 = sld [smem:[#allocation7 + $0x7f]]
        %v1984 = vstv %s1983
        %v1985 = vmul.f32 %v1984, %v393
        %1987 = vrot.lane.b32.xlu0 %v1985, 127
        %v1988 = vpop.permute.xlu0 %1987
        %v1990 = vadd.f32 %v1942, %v1988
        %s1991 = sld [smem:[#allocation7 + $0xa3]]
        %v1992 = vstv %s1991
        %v1993 = vmul.f32 %v1992, %v393
        %1995 = vrot.lane.b32.xlu0 %v1993, 127
        %v1996 = vpop.permute.xlu0 %1995
        %v1998 = vadd.f32 %v1946, %v1996
        %s1999 = sld [smem:[#allocation7 + $0xc7]]
        %v2000 = vstv %s1999
        %v2001 = vmul.f32 %v2000, %v393
        %2003 = vrot.lane.b32.xlu0 %v2001, 127
        %v2004 = vpop.permute.xlu0 %2003
        %v2006 = vadd.f32 %v1950, %v2004
        %s2007 = sld [smem:[#allocation7 + $0xeb]]
        %v2008 = vstv %s2007
        %v2009 = vmul.f32 %v2008, %v393
        %2011 = vrot.lane.b32.xlu0 %v2009, 127
        %v2012 = vpop.permute.xlu0 %2011
        %v2014 = vadd.f32 %v1954, %v2012
        %s2015 = sld [smem:[#allocation7 + $0x10f]]
        %v2016 = vstv %s2015
        %v2017 = vmul.f32 %v2016, %v393
        %2019 = vrot.lane.b32.xlu0 %v2017, 127
        %v2020 = vpop.permute.xlu0 %2019
        %v2022 = vadd.f32 %v1958, %v2020
        %s2023 = sld [smem:[#allocation7 + $0x14]]
        %v2024 = vstv %s2023
        %v2025 = vmul.f32 %v2024, %v393
        %2027 = vrot.lane.b32.xlu0 %v2025, 126
        %v2028 = vpop.permute.xlu0 %2027
        %v2030 = vadd.f32 %v1966, %v2028
        %s2031 = sld [smem:[#allocation7 + $0x38]]
        %v2032 = vstv %s2031
        %v2033 = vmul.f32 %v2032, %v393
        %2035 = vrot.lane.b32.xlu0 %v2033, 126
        %v2036 = vpop.permute.xlu0 %2035
        %v2038 = vadd.f32 %v1974, %v2036
        %s2039 = sld [smem:[#allocation7 + $0x5c]]
        %v2040 = vstv %s2039
        %v2041 = vmul.f32 %v2040, %v393
        %2043 = vrot.lane.b32.xlu0 %v2041, 126
        %v2044 = vpop.permute.xlu0 %2043
        %v2046 = vadd.f32 %v1982, %v2044
        %s2047 = sld [smem:[#allocation7 + $0x80]]
        %v2048 = vstv %s2047
        %v2049 = vmul.f32 %v2048, %v393
        %2051 = vrot.lane.b32.xlu0 %v2049, 126
        %v2052 = vpop.permute.xlu0 %2051
        %v2054 = vadd.f32 %v1990, %v2052
        %s2055 = sld [smem:[#allocation7 + $0xa4]]
        %v2056 = vstv %s2055
        %v2057 = vmul.f32 %v2056, %v393
        %2059 = vrot.lane.b32.xlu0 %v2057, 126
        %v2060 = vpop.permute.xlu0 %2059
        %v2062 = vadd.f32 %v1998, %v2060
        %s2063 = sld [smem:[#allocation7 + $0xc8]]
        %v2064 = vstv %s2063
        %v2065 = vmul.f32 %v2064, %v393
        %2067 = vrot.lane.b32.xlu0 %v2065, 126
        %v2068 = vpop.permute.xlu0 %2067
        %v2070 = vadd.f32 %v2006, %v2068
        %s2071 = sld [smem:[#allocation7 + $0xec]]
        %v2072 = vstv %s2071
        %v2073 = vmul.f32 %v2072, %v393
        %2075 = vrot.lane.b32.xlu0 %v2073, 126
        %v2076 = vpop.permute.xlu0 %2075
        %v2078 = vadd.f32 %v2014, %v2076
        %s2079 = sld [smem:[#allocation7 + $0x110]]
        %v2080 = vstv %s2079
        %v2081 = vmul.f32 %v2080, %v393
        %2083 = vrot.lane.b32.xlu0 %v2081, 126
        %v2084 = vpop.permute.xlu0 %2083
        %v2086 = vadd.f32 %v2022, %v2084
        %s2087 = sld [smem:[#allocation7 + $0x15]]
        %v2088 = vstv %s2087
        %v2089 = vmul.f32 %v2088, %v393
        %v2090 = vmul.f32 %v2088, %v394
        %v2093 = vrot.slane %v2089, 1
        %v2094 = vrot.slane %v2090, 1
        %v2095 = vsel %vm587, %v2093, %v2094
        %v2097 = vadd.f32 %v2030, %v2095
        %s2098 = sld [smem:[#allocation7 + $0x39]]
        %v2099 = vstv %s2098
        %v2100 = vmul.f32 %v2099, %v393
        %v2101 = vmul.f32 %v2099, %v394
        %v2104 = vrot.slane %v2100, 1
        %v2105 = vrot.slane %v2101, 1
        %v2106 = vsel %vm587, %v2104, %v2105
        %v2108 = vadd.f32 %v2038, %v2106
        %s2109 = sld [smem:[#allocation7 + $0x5d]]
        %v2110 = vstv %s2109
        %v2111 = vmul.f32 %v2110, %v393
        %v2112 = vmul.f32 %v2110, %v394
        %v2115 = vrot.slane %v2111, 1
        %v2116 = vrot.slane %v2112, 1
        %v2117 = vsel %vm587, %v2115, %v2116
        %v2119 = vadd.f32 %v2046, %v2117
        %s2120 = sld [smem:[#allocation7 + $0x81]]
        %v2121 = vstv %s2120
        %v2122 = vmul.f32 %v2121, %v393
        %v2123 = vmul.f32 %v2121, %v394
        %v2126 = vrot.slane %v2122, 1
        %v2127 = vrot.slane %v2123, 1
        %v2128 = vsel %vm587, %v2126, %v2127
        %v2130 = vadd.f32 %v2054, %v2128
        %s2131 = sld [smem:[#allocation7 + $0xa5]]
        %v2132 = vstv %s2131
        %v2133 = vmul.f32 %v2132, %v393
        %v2134 = vmul.f32 %v2132, %v394
        %v2137 = vrot.slane %v2133, 1
        %v2138 = vrot.slane %v2134, 1
        %v2139 = vsel %vm587, %v2137, %v2138
        %v2141 = vadd.f32 %v2062, %v2139
        %s2142 = sld [smem:[#allocation7 + $0xc9]]
        %v2143 = vstv %s2142
        %v2144 = vmul.f32 %v2143, %v393
        %v2145 = vmul.f32 %v2143, %v394
        %v2148 = vrot.slane %v2144, 1
        %v2149 = vrot.slane %v2145, 1
        %v2150 = vsel %vm587, %v2148, %v2149
        %v2152 = vadd.f32 %v2070, %v2150
        %s2153 = sld [smem:[#allocation7 + $0xed]]
        %v2154 = vstv %s2153
        %v2155 = vmul.f32 %v2154, %v393
        %v2156 = vmul.f32 %v2154, %v394
        %v2159 = vrot.slane %v2155, 1
        %v2160 = vrot.slane %v2156, 1
        %v2161 = vsel %vm587, %v2159, %v2160
        %v2163 = vadd.f32 %v2078, %v2161
        %s2164 = sld [smem:[#allocation7 + $0x111]]
        %v2165 = vstv %s2164
        %v2166 = vmul.f32 %v2165, %v393
        %v2167 = vmul.f32 %v2165, %v394
        %v2170 = vrot.slane %v2166, 1
        %v2171 = vrot.slane %v2167, 1
        %v2172 = vsel %vm587, %v2170, %v2171
        %v2174 = vadd.f32 %v2086, %v2172
        %s2175 = sld [smem:[#allocation7 + $0x16]]
        %v2176 = vstv %s2175
        %v2177 = vmul.f32 %v2176, %v393
        %v2178 = vmul.f32 %v2176, %v394
        %v2181 = vrot.slane %v2177, 1
        %v2182 = vrot.slane %v2178, 1
        %v2183 = vsel %vm587, %v2181, %v2182
        %2184 = vrot.lane.b32.xlu0 %v2183, 127
        %v2185 = vpop.permute.xlu0 %2184
        %v2187 = vadd.f32 %v2097, %v2185
        %s2188 = sld [smem:[#allocation7 + $0x3a]]
        %v2189 = vstv %s2188
        %v2190 = vmul.f32 %v2189, %v393
        %v2191 = vmul.f32 %v2189, %v394
        %v2194 = vrot.slane %v2190, 1
        %v2195 = vrot.slane %v2191, 1
        %v2196 = vsel %vm587, %v2194, %v2195
        %2197 = vrot.lane.b32.xlu0 %v2196, 127
        %v2198 = vpop.permute.xlu0 %2197
        %v2200 = vadd.f32 %v2108, %v2198
        %s2201 = sld [smem:[#allocation7 + $0x5e]]
        %v2202 = vstv %s2201
        %v2203 = vmul.f32 %v2202, %v393
        %v2204 = vmul.f32 %v2202, %v394
        %v2207 = vrot.slane %v2203, 1
        %v2208 = vrot.slane %v2204, 1
        %v2209 = vsel %vm587, %v2207, %v2208
        %2210 = vrot.lane.b32.xlu0 %v2209, 127
        %v2211 = vpop.permute.xlu0 %2210
        %v2213 = vadd.f32 %v2119, %v2211
        %s2214 = sld [smem:[#allocation7 + $0x82]]
        %v2215 = vstv %s2214
        %v2216 = vmul.f32 %v2215, %v393
        %v2217 = vmul.f32 %v2215, %v394
        %v2220 = vrot.slane %v2216, 1
        %v2221 = vrot.slane %v2217, 1
        %v2222 = vsel %vm587, %v2220, %v2221
        %2223 = vrot.lane.b32.xlu0 %v2222, 127
        %v2224 = vpop.permute.xlu0 %2223
        %v2226 = vadd.f32 %v2130, %v2224
        %s2227 = sld [smem:[#allocation7 + $0xa6]]
        %v2228 = vstv %s2227
        %v2229 = vmul.f32 %v2228, %v393
        %v2230 = vmul.f32 %v2228, %v394
        %v2233 = vrot.slane %v2229, 1
        %v2234 = vrot.slane %v2230, 1
        %v2235 = vsel %vm587, %v2233, %v2234
        %2236 = vrot.lane.b32.xlu0 %v2235, 127
        %v2237 = vpop.permute.xlu0 %2236
        %v2239 = vadd.f32 %v2141, %v2237
        %s2240 = sld [smem:[#allocation7 + $0xca]]
        %v2241 = vstv %s2240
        %v2242 = vmul.f32 %v2241, %v393
        %v2243 = vmul.f32 %v2241, %v394
        %v2246 = vrot.slane %v2242, 1
        %v2247 = vrot.slane %v2243, 1
        %v2248 = vsel %vm587, %v2246, %v2247
        %2249 = vrot.lane.b32.xlu0 %v2248, 127
        %v2250 = vpop.permute.xlu0 %2249
        %v2252 = vadd.f32 %v2152, %v2250
        %s2253 = sld [smem:[#allocation7 + $0xee]]
        %v2254 = vstv %s2253
        %v2255 = vmul.f32 %v2254, %v393
        %v2256 = vmul.f32 %v2254, %v394
        %v2259 = vrot.slane %v2255, 1
        %v2260 = vrot.slane %v2256, 1
        %v2261 = vsel %vm587, %v2259, %v2260
        %2262 = vrot.lane.b32.xlu0 %v2261, 127
        %v2263 = vpop.permute.xlu0 %2262
        %v2265 = vadd.f32 %v2163, %v2263
        %s2266 = sld [smem:[#allocation7 + $0x112]]
        %v2267 = vstv %s2266
        %v2268 = vmul.f32 %v2267, %v393
        %v2269 = vmul.f32 %v2267, %v394
        %v2272 = vrot.slane %v2268, 1
        %v2273 = vrot.slane %v2269, 1
        %v2274 = vsel %vm587, %v2272, %v2273
        %2275 = vrot.lane.b32.xlu0 %v2274, 127
        %v2276 = vpop.permute.xlu0 %2275
        %v2278 = vadd.f32 %v2174, %v2276
        %s2279 = sld [smem:[#allocation7 + $0x17]]
        %v2280 = vstv %s2279
        %v2281 = vmul.f32 %v2280, %v393
        %v2282 = vmul.f32 %v2280, %v394
        %v2285 = vrot.slane %v2281, 1
        %v2286 = vrot.slane %v2282, 1
        %v2287 = vsel %vm587, %v2285, %v2286
        %2288 = vrot.lane.b32.xlu0 %v2287, 126
        %v2289 = vpop.permute.xlu0 %2288
        %v2291 = vadd.f32 %v2187, %v2289
        %s2292 = sld [smem:[#allocation7 + $0x3b]]
        %v2293 = vstv %s2292
        %v2294 = vmul.f32 %v2293, %v393
        %v2295 = vmul.f32 %v2293, %v394
        %v2298 = vrot.slane %v2294, 1
        %v2299 = vrot.slane %v2295, 1
        %v2300 = vsel %vm587, %v2298, %v2299
        %2301 = vrot.lane.b32.xlu0 %v2300, 126
        %v2302 = vpop.permute.xlu0 %2301
        %v2304 = vadd.f32 %v2200, %v2302
        %s2305 = sld [smem:[#allocation7 + $0x5f]]
        %v2306 = vstv %s2305
        %v2307 = vmul.f32 %v2306, %v393
        %v2308 = vmul.f32 %v2306, %v394
        %v2311 = vrot.slane %v2307, 1
        %v2312 = vrot.slane %v2308, 1
        %v2313 = vsel %vm587, %v2311, %v2312
        %2314 = vrot.lane.b32.xlu0 %v2313, 126
        %v2315 = vpop.permute.xlu0 %2314
        %v2317 = vadd.f32 %v2213, %v2315
        %s2318 = sld [smem:[#allocation7 + $0x83]]
        %v2319 = vstv %s2318
        %v2320 = vmul.f32 %v2319, %v393
        %v2321 = vmul.f32 %v2319, %v394
        %v2324 = vrot.slane %v2320, 1
        %v2325 = vrot.slane %v2321, 1
        %v2326 = vsel %vm587, %v2324, %v2325
        %2327 = vrot.lane.b32.xlu0 %v2326, 126
        %v2328 = vpop.permute.xlu0 %2327
        %v2330 = vadd.f32 %v2226, %v2328
        %s2331 = sld [smem:[#allocation7 + $0xa7]]
        %v2332 = vstv %s2331
        %v2333 = vmul.f32 %v2332, %v393
        %v2334 = vmul.f32 %v2332, %v394
        %v2337 = vrot.slane %v2333, 1
        %v2338 = vrot.slane %v2334, 1
        %v2339 = vsel %vm587, %v2337, %v2338
        %2340 = vrot.lane.b32.xlu0 %v2339, 126
        %v2341 = vpop.permute.xlu0 %2340
        %v2343 = vadd.f32 %v2239, %v2341
        %s2344 = sld [smem:[#allocation7 + $0xcb]]
        %v2345 = vstv %s2344
        %v2346 = vmul.f32 %v2345, %v393
        %v2347 = vmul.f32 %v2345, %v394
        %v2350 = vrot.slane %v2346, 1
        %v2351 = vrot.slane %v2347, 1
        %v2352 = vsel %vm587, %v2350, %v2351
        %2353 = vrot.lane.b32.xlu0 %v2352, 126
        %v2354 = vpop.permute.xlu0 %2353
        %v2356 = vadd.f32 %v2252, %v2354
        %s2357 = sld [smem:[#allocation7 + $0xef]]
        %v2358 = vstv %s2357
        %v2359 = vmul.f32 %v2358, %v393
        %v2360 = vmul.f32 %v2358, %v394
        %v2363 = vrot.slane %v2359, 1
        %v2364 = vrot.slane %v2360, 1
        %v2365 = vsel %vm587, %v2363, %v2364
        %2366 = vrot.lane.b32.xlu0 %v2365, 126
        %v2367 = vpop.permute.xlu0 %2366
        %v2369 = vadd.f32 %v2265, %v2367
        %s2370 = sld [smem:[#allocation7 + $0x113]]
        %v2371 = vstv %s2370
        %v2372 = vmul.f32 %v2371, %v393
        %v2373 = vmul.f32 %v2371, %v394
        %v2376 = vrot.slane %v2372, 1
        %v2377 = vrot.slane %v2373, 1
        %v2378 = vsel %vm587, %v2376, %v2377
        %2379 = vrot.lane.b32.xlu0 %v2378, 126
        %v2380 = vpop.permute.xlu0 %2379
        %v2382 = vadd.f32 %v2278, %v2380
        %s2383 = sld [smem:[#allocation7 + $0x18]]
        %v2384 = vstv %s2383
        %v2385 = vmul.f32 %v2384, %v393
        %v2386 = vmul.f32 %v2384, %v394
        %v2389 = vrot.slane %v2385, 2
        %v2390 = vrot.slane %v2386, 2
        %v2391 = vsel %vm884, %v2389, %v2390
        %v2393 = vadd.f32 %v2291, %v2391
        %s2394 = sld [smem:[#allocation7 + $0x3c]]
        %v2395 = vstv %s2394
        %v2396 = vmul.f32 %v2395, %v393
        %v2397 = vmul.f32 %v2395, %v394
        %v2400 = vrot.slane %v2396, 2
        %v2401 = vrot.slane %v2397, 2
        %v2402 = vsel %vm884, %v2400, %v2401
        %v2404 = vadd.f32 %v2304, %v2402
        %s2405 = sld [smem:[#allocation7 + $0x60]]
        %v2406 = vstv %s2405
        %v2407 = vmul.f32 %v2406, %v393
        %v2408 = vmul.f32 %v2406, %v394
        %v2411 = vrot.slane %v2407, 2
        %v2412 = vrot.slane %v2408, 2
        %v2413 = vsel %vm884, %v2411, %v2412
        %v2415 = vadd.f32 %v2317, %v2413
        %s2416 = sld [smem:[#allocation7 + $0x84]]
        %v2417 = vstv %s2416
        %v2418 = vmul.f32 %v2417, %v393
        %v2419 = vmul.f32 %v2417, %v394
        %v2422 = vrot.slane %v2418, 2
        %v2423 = vrot.slane %v2419, 2
        %v2424 = vsel %vm884, %v2422, %v2423
        %v2426 = vadd.f32 %v2330, %v2424
        %s2427 = sld [smem:[#allocation7 + $0xa8]]
        %v2428 = vstv %s2427
        %v2429 = vmul.f32 %v2428, %v393
        %v2430 = vmul.f32 %v2428, %v394
        %v2433 = vrot.slane %v2429, 2
        %v2434 = vrot.slane %v2430, 2
        %v2435 = vsel %vm884, %v2433, %v2434
        %v2437 = vadd.f32 %v2343, %v2435
        %s2438 = sld [smem:[#allocation7 + $0xcc]]
        %v2439 = vstv %s2438
        %v2440 = vmul.f32 %v2439, %v393
        %v2441 = vmul.f32 %v2439, %v394
        %v2444 = vrot.slane %v2440, 2
        %v2445 = vrot.slane %v2441, 2
        %v2446 = vsel %vm884, %v2444, %v2445
        %v2448 = vadd.f32 %v2356, %v2446
        %s2449 = sld [smem:[#allocation7 + $0xf0]]
        %v2450 = vstv %s2449
        %v2451 = vmul.f32 %v2450, %v393
        %v2452 = vmul.f32 %v2450, %v394
        %v2455 = vrot.slane %v2451, 2
        %v2456 = vrot.slane %v2452, 2
        %v2457 = vsel %vm884, %v2455, %v2456
        %v2459 = vadd.f32 %v2369, %v2457
        %s2460 = sld [smem:[#allocation7 + $0x114]]
        %v2461 = vstv %s2460
        %v2462 = vmul.f32 %v2461, %v393
        %v2463 = vmul.f32 %v2461, %v394
        %v2466 = vrot.slane %v2462, 2
        %v2467 = vrot.slane %v2463, 2
        %v2468 = vsel %vm884, %v2466, %v2467
        %v2470 = vadd.f32 %v2382, %v2468
        %s2471 = sld [smem:[#allocation7 + $0x19]]
        %v2472 = vstv %s2471
        %v2473 = vmul.f32 %v2472, %v393
        %v2474 = vmul.f32 %v2472, %v394
        %v2477 = vrot.slane %v2473, 2
        %v2478 = vrot.slane %v2474, 2
        %v2479 = vsel %vm884, %v2477, %v2478
        %2480 = vrot.lane.b32.xlu0 %v2479, 127
        %v2481 = vpop.permute.xlu0 %2480
        %v2483 = vadd.f32 %v2393, %v2481
        %s2484 = sld [smem:[#allocation7 + $0x3d]]
        %v2485 = vstv %s2484
        %v2486 = vmul.f32 %v2485, %v393
        %v2487 = vmul.f32 %v2485, %v394
        %v2490 = vrot.slane %v2486, 2
        %v2491 = vrot.slane %v2487, 2
        %v2492 = vsel %vm884, %v2490, %v2491
        %2493 = vrot.lane.b32.xlu0 %v2492, 127
        %v2494 = vpop.permute.xlu0 %2493
        %v2496 = vadd.f32 %v2404, %v2494
        %s2497 = sld [smem:[#allocation7 + $0x61]]
        %v2498 = vstv %s2497
        %v2499 = vmul.f32 %v2498, %v393
        %v2500 = vmul.f32 %v2498, %v394
        %v2503 = vrot.slane %v2499, 2
        %v2504 = vrot.slane %v2500, 2
        %v2505 = vsel %vm884, %v2503, %v2504
        %2506 = vrot.lane.b32.xlu0 %v2505, 127
        %v2507 = vpop.permute.xlu0 %2506
        %v2509 = vadd.f32 %v2415, %v2507
        %s2510 = sld [smem:[#allocation7 + $0x85]]
        %v2511 = vstv %s2510
        %v2512 = vmul.f32 %v2511, %v393
        %v2513 = vmul.f32 %v2511, %v394
        %v2516 = vrot.slane %v2512, 2
        %v2517 = vrot.slane %v2513, 2
        %v2518 = vsel %vm884, %v2516, %v2517
        %2519 = vrot.lane.b32.xlu0 %v2518, 127
        %v2520 = vpop.permute.xlu0 %2519
        %v2522 = vadd.f32 %v2426, %v2520
        %s2523 = sld [smem:[#allocation7 + $0xa9]]
        %v2524 = vstv %s2523
        %v2525 = vmul.f32 %v2524, %v393
        %v2526 = vmul.f32 %v2524, %v394
        %v2529 = vrot.slane %v2525, 2
        %v2530 = vrot.slane %v2526, 2
        %v2531 = vsel %vm884, %v2529, %v2530
        %2532 = vrot.lane.b32.xlu0 %v2531, 127
        %v2533 = vpop.permute.xlu0 %2532
        %v2535 = vadd.f32 %v2437, %v2533
        %s2536 = sld [smem:[#allocation7 + $0xcd]]
        %v2537 = vstv %s2536
        %v2538 = vmul.f32 %v2537, %v393
        %v2539 = vmul.f32 %v2537, %v394
        %v2542 = vrot.slane %v2538, 2
        %v2543 = vrot.slane %v2539, 2
        %v2544 = vsel %vm884, %v2542, %v2543
        %2545 = vrot.lane.b32.xlu0 %v2544, 127
        %v2546 = vpop.permute.xlu0 %2545
        %v2548 = vadd.f32 %v2448, %v2546
        %s2549 = sld [smem:[#allocation7 + $0xf1]]
        %v2550 = vstv %s2549
        %v2551 = vmul.f32 %v2550, %v393
        %v2552 = vmul.f32 %v2550, %v394
        %v2555 = vrot.slane %v2551, 2
        %v2556 = vrot.slane %v2552, 2
        %v2557 = vsel %vm884, %v2555, %v2556
        %2558 = vrot.lane.b32.xlu0 %v2557, 127
        %v2559 = vpop.permute.xlu0 %2558
        %v2561 = vadd.f32 %v2459, %v2559
        %s2562 = sld [smem:[#allocation7 + $0x115]]
        %v2563 = vstv %s2562
        %v2564 = vmul.f32 %v2563, %v393
        %v2565 = vmul.f32 %v2563, %v394
        %v2568 = vrot.slane %v2564, 2
        %v2569 = vrot.slane %v2565, 2
        %v2570 = vsel %vm884, %v2568, %v2569
        %2571 = vrot.lane.b32.xlu0 %v2570, 127
        %v2572 = vpop.permute.xlu0 %2571
        %v2574 = vadd.f32 %v2470, %v2572
        %s2575 = sld [smem:[#allocation7 + $0x1a]]
        %v2576 = vstv %s2575
        %v2577 = vmul.f32 %v2576, %v393
        %v2578 = vmul.f32 %v2576, %v394
        %v2581 = vrot.slane %v2577, 2
        %v2582 = vrot.slane %v2578, 2
        %v2583 = vsel %vm884, %v2581, %v2582
        %2584 = vrot.lane.b32.xlu0 %v2583, 126
        %v2585 = vpop.permute.xlu0 %2584
        %v2587 = vadd.f32 %v2483, %v2585
        %s2588 = sld [smem:[#allocation7 + $0x3e]]
        %v2589 = vstv %s2588
        %v2590 = vmul.f32 %v2589, %v393
        %v2591 = vmul.f32 %v2589, %v394
        %v2594 = vrot.slane %v2590, 2
        %v2595 = vrot.slane %v2591, 2
        %v2596 = vsel %vm884, %v2594, %v2595
        %2597 = vrot.lane.b32.xlu0 %v2596, 126
        %v2598 = vpop.permute.xlu0 %2597
        %v2600 = vadd.f32 %v2496, %v2598
        %s2601 = sld [smem:[#allocation7 + $0x62]]
        %v2602 = vstv %s2601
        %v2603 = vmul.f32 %v2602, %v393
        %v2604 = vmul.f32 %v2602, %v394
        %v2607 = vrot.slane %v2603, 2
        %v2608 = vrot.slane %v2604, 2
        %v2609 = vsel %vm884, %v2607, %v2608
        %2610 = vrot.lane.b32.xlu0 %v2609, 126
        %v2611 = vpop.permute.xlu0 %2610
        %v2613 = vadd.f32 %v2509, %v2611
        %s2614 = sld [smem:[#allocation7 + $0x86]]
        %v2615 = vstv %s2614
        %v2616 = vmul.f32 %v2615, %v393
        %v2617 = vmul.f32 %v2615, %v394
        %v2620 = vrot.slane %v2616, 2
        %v2621 = vrot.slane %v2617, 2
        %v2622 = vsel %vm884, %v2620, %v2621
        %2623 = vrot.lane.b32.xlu0 %v2622, 126
        %v2624 = vpop.permute.xlu0 %2623
        %v2626 = vadd.f32 %v2522, %v2624
        %s2627 = sld [smem:[#allocation7 + $0xaa]]
        %v2628 = vstv %s2627
        %v2629 = vmul.f32 %v2628, %v393
        %v2630 = vmul.f32 %v2628, %v394
        %v2633 = vrot.slane %v2629, 2
        %v2634 = vrot.slane %v2630, 2
        %v2635 = vsel %vm884, %v2633, %v2634
        %2636 = vrot.lane.b32.xlu0 %v2635, 126
        %v2637 = vpop.permute.xlu0 %2636
        %v2639 = vadd.f32 %v2535, %v2637
        %s2640 = sld [smem:[#allocation7 + $0xce]]
        %v2641 = vstv %s2640
        %v2642 = vmul.f32 %v2641, %v393
        %v2643 = vmul.f32 %v2641, %v394
        %v2646 = vrot.slane %v2642, 2
        %v2647 = vrot.slane %v2643, 2
        %v2648 = vsel %vm884, %v2646, %v2647
        %2649 = vrot.lane.b32.xlu0 %v2648, 126
        %v2650 = vpop.permute.xlu0 %2649
        %v2652 = vadd.f32 %v2548, %v2650
        %s2653 = sld [smem:[#allocation7 + $0xf2]]
        %v2654 = vstv %s2653
        %v2655 = vmul.f32 %v2654, %v393
        %v2656 = vmul.f32 %v2654, %v394
        %v2659 = vrot.slane %v2655, 2
        %v2660 = vrot.slane %v2656, 2
        %v2661 = vsel %vm884, %v2659, %v2660
        %2662 = vrot.lane.b32.xlu0 %v2661, 126
        %v2663 = vpop.permute.xlu0 %2662
        %v2665 = vadd.f32 %v2561, %v2663
        %s2666 = sld [smem:[#allocation7 + $0x116]]
        %v2667 = vstv %s2666
        %v2668 = vmul.f32 %v2667, %v393
        %v2669 = vmul.f32 %v2667, %v394
        %v2672 = vrot.slane %v2668, 2
        %v2673 = vrot.slane %v2669, 2
        %v2674 = vsel %vm884, %v2672, %v2673
        %2675 = vrot.lane.b32.xlu0 %v2674, 126
        %v2676 = vpop.permute.xlu0 %2675
        %v2678 = vadd.f32 %v2574, %v2676
        %s2679 = sld [smem:[#allocation7 + $0x1b]]
        %v2680 = vstv %s2679
        %v2681 = vmul.f32 %v2680, %v395
        %v2682 = vadd.f32 %v2587, %v2681
        %s2683 = sld [smem:[#allocation7 + $0x3f]]
        %v2684 = vstv %s2683
        %v2685 = vmul.f32 %v2684, %v395
        %v2686 = vadd.f32 %v2600, %v2685
        %s2687 = sld [smem:[#allocation7 + $0x63]]
        %v2688 = vstv %s2687
        %v2689 = vmul.f32 %v2688, %v395
        %v2690 = vadd.f32 %v2613, %v2689
        %s2691 = sld [smem:[#allocation7 + $0x87]]
        %v2692 = vstv %s2691
        %v2693 = vmul.f32 %v2692, %v395
        %v2694 = vadd.f32 %v2626, %v2693
        %s2695 = sld [smem:[#allocation7 + $0xab]]
        %v2696 = vstv %s2695
        %v2697 = vmul.f32 %v2696, %v395
        %v2698 = vadd.f32 %v2639, %v2697
        %s2699 = sld [smem:[#allocation7 + $0xcf]]
        %v2700 = vstv %s2699
        %v2701 = vmul.f32 %v2700, %v395
        %v2702 = vadd.f32 %v2652, %v2701
        %s2703 = sld [smem:[#allocation7 + $0xf3]]
        %v2704 = vstv %s2703
        %v2705 = vmul.f32 %v2704, %v395
        %v2706 = vadd.f32 %v2665, %v2705
        %s2707 = sld [smem:[#allocation7 + $0x117]]
        %v2708 = vstv %s2707
        %v2709 = vmul.f32 %v2708, %v395
        %v2710 = vadd.f32 %v2678, %v2709
        %s2711 = sld [smem:[#allocation7 + $0x1c]]
        %v2712 = vstv %s2711
        %v2713 = vmul.f32 %v2712, %v395
        %2715 = vrot.lane.b32.xlu0 %v2713, 127
        %v2716 = vpop.permute.xlu0 %2715
        %v2718 = vadd.f32 %v2682, %v2716
        %s2719 = sld [smem:[#allocation7 + $0x40]]
        %v2720 = vstv %s2719
        %v2721 = vmul.f32 %v2720, %v395
        %2723 = vrot.lane.b32.xlu0 %v2721, 127
        %v2724 = vpop.permute.xlu0 %2723
        %v2726 = vadd.f32 %v2686, %v2724
        %s2727 = sld [smem:[#allocation7 + $0x64]]
        %v2728 = vstv %s2727
        %v2729 = vmul.f32 %v2728, %v395
        %2731 = vrot.lane.b32.xlu0 %v2729, 127
        %v2732 = vpop.permute.xlu0 %2731
        %v2734 = vadd.f32 %v2690, %v2732
        %s2735 = sld [smem:[#allocation7 + $0x88]]
        %v2736 = vstv %s2735
        %v2737 = vmul.f32 %v2736, %v395
        %2739 = vrot.lane.b32.xlu0 %v2737, 127
        %v2740 = vpop.permute.xlu0 %2739
        %v2742 = vadd.f32 %v2694, %v2740
        %s2743 = sld [smem:[#allocation7 + $0xac]]
        %v2744 = vstv %s2743
        %v2745 = vmul.f32 %v2744, %v395
        %2747 = vrot.lane.b32.xlu0 %v2745, 127
        %v2748 = vpop.permute.xlu0 %2747
        %v2750 = vadd.f32 %v2698, %v2748
        %s2751 = sld [smem:[#allocation7 + $0xd0]]
        %v2752 = vstv %s2751
        %v2753 = vmul.f32 %v2752, %v395
        %2755 = vrot.lane.b32.xlu0 %v2753, 127
        %v2756 = vpop.permute.xlu0 %2755
        %v2758 = vadd.f32 %v2702, %v2756
        %s2759 = sld [smem:[#allocation7 + $0xf4]]
        %v2760 = vstv %s2759
        %v2761 = vmul.f32 %v2760, %v395
        %2763 = vrot.lane.b32.xlu0 %v2761, 127
        %v2764 = vpop.permute.xlu0 %2763
        %v2766 = vadd.f32 %v2706, %v2764
        %s2767 = sld [smem:[#allocation7 + $0x118]]
        %v2768 = vstv %s2767
        %v2769 = vmul.f32 %v2768, %v395
        %2771 = vrot.lane.b32.xlu0 %v2769, 127
        %v2772 = vpop.permute.xlu0 %2771
        %v2774 = vadd.f32 %v2710, %v2772
        %s2775 = sld [smem:[#allocation7 + $0x1d]]
        %v2776 = vstv %s2775
        %v2777 = vmul.f32 %v2776, %v395
        %2779 = vrot.lane.b32.xlu0 %v2777, 126
        %v2780 = vpop.permute.xlu0 %2779
        %v2782 = vadd.f32 %v2718, %v2780
        %s2783 = sld [smem:[#allocation7 + $0x41]]
        %v2784 = vstv %s2783
        %v2785 = vmul.f32 %v2784, %v395
        %2787 = vrot.lane.b32.xlu0 %v2785, 126
        %v2788 = vpop.permute.xlu0 %2787
        %v2790 = vadd.f32 %v2726, %v2788
        %s2791 = sld [smem:[#allocation7 + $0x65]]
        %v2792 = vstv %s2791
        %v2793 = vmul.f32 %v2792, %v395
        %2795 = vrot.lane.b32.xlu0 %v2793, 126
        %v2796 = vpop.permute.xlu0 %2795
        %v2798 = vadd.f32 %v2734, %v2796
        %s2799 = sld [smem:[#allocation7 + $0x89]]
        %v2800 = vstv %s2799
        %v2801 = vmul.f32 %v2800, %v395
        %2803 = vrot.lane.b32.xlu0 %v2801, 126
        %v2804 = vpop.permute.xlu0 %2803
        %v2806 = vadd.f32 %v2742, %v2804
        %s2807 = sld [smem:[#allocation7 + $0xad]]
        %v2808 = vstv %s2807
        %v2809 = vmul.f32 %v2808, %v395
        %2811 = vrot.lane.b32.xlu0 %v2809, 126
        %v2812 = vpop.permute.xlu0 %2811
        %v2814 = vadd.f32 %v2750, %v2812
        %s2815 = sld [smem:[#allocation7 + $0xd1]]
        %v2816 = vstv %s2815
        %v2817 = vmul.f32 %v2816, %v395
        %2819 = vrot.lane.b32.xlu0 %v2817, 126
        %v2820 = vpop.permute.xlu0 %2819
        %v2822 = vadd.f32 %v2758, %v2820
        %s2823 = sld [smem:[#allocation7 + $0xf5]]
        %v2824 = vstv %s2823
        %v2825 = vmul.f32 %v2824, %v395
        %2827 = vrot.lane.b32.xlu0 %v2825, 126
        %v2828 = vpop.permute.xlu0 %2827
        %v2830 = vadd.f32 %v2766, %v2828
        %s2831 = sld [smem:[#allocation7 + $0x119]]
        %v2832 = vstv %s2831
        %v2833 = vmul.f32 %v2832, %v395
        %2835 = vrot.lane.b32.xlu0 %v2833, 126
        %v2836 = vpop.permute.xlu0 %2835
        %v2838 = vadd.f32 %v2774, %v2836
        %s2839 = sld [smem:[#allocation7 + $0x1e]]
        %v2840 = vstv %s2839
        %v2841 = vmul.f32 %v2840, %v395
        %v2842 = vmul.f32 %v2840, %v396
        %v2845 = vrot.slane %v2841, 1
        %v2846 = vrot.slane %v2842, 1
        %v2847 = vsel %vm587, %v2845, %v2846
        %v2849 = vadd.f32 %v2782, %v2847
        %s2850 = sld [smem:[#allocation7 + $0x42]]
        %v2851 = vstv %s2850
        %v2852 = vmul.f32 %v2851, %v395
        %v2853 = vmul.f32 %v2851, %v396
        %v2856 = vrot.slane %v2852, 1
        %v2857 = vrot.slane %v2853, 1
        %v2858 = vsel %vm587, %v2856, %v2857
        %v2860 = vadd.f32 %v2790, %v2858
        %s2861 = sld [smem:[#allocation7 + $0x66]]
        %v2862 = vstv %s2861
        %v2863 = vmul.f32 %v2862, %v395
        %v2864 = vmul.f32 %v2862, %v396
        %v2867 = vrot.slane %v2863, 1
        %v2868 = vrot.slane %v2864, 1
        %v2869 = vsel %vm587, %v2867, %v2868
        %v2871 = vadd.f32 %v2798, %v2869
        %s2872 = sld [smem:[#allocation7 + $0x8a]]
        %v2873 = vstv %s2872
        %v2874 = vmul.f32 %v2873, %v395
        %v2875 = vmul.f32 %v2873, %v396
        %v2878 = vrot.slane %v2874, 1
        %v2879 = vrot.slane %v2875, 1
        %v2880 = vsel %vm587, %v2878, %v2879
        %v2882 = vadd.f32 %v2806, %v2880
        %s2883 = sld [smem:[#allocation7 + $0xae]]
        %v2884 = vstv %s2883
        %v2885 = vmul.f32 %v2884, %v395
        %v2886 = vmul.f32 %v2884, %v396
        %v2889 = vrot.slane %v2885, 1
        %v2890 = vrot.slane %v2886, 1
        %v2891 = vsel %vm587, %v2889, %v2890
        %v2893 = vadd.f32 %v2814, %v2891
        %s2894 = sld [smem:[#allocation7 + $0xd2]]
        %v2895 = vstv %s2894
        %v2896 = vmul.f32 %v2895, %v395
        %v2897 = vmul.f32 %v2895, %v396
        %v2900 = vrot.slane %v2896, 1
        %v2901 = vrot.slane %v2897, 1
        %v2902 = vsel %vm587, %v2900, %v2901
        %v2904 = vadd.f32 %v2822, %v2902
        %s2905 = sld [smem:[#allocation7 + $0xf6]]
        %v2906 = vstv %s2905
        %v2907 = vmul.f32 %v2906, %v395
        %v2908 = vmul.f32 %v2906, %v396
        %v2911 = vrot.slane %v2907, 1
        %v2912 = vrot.slane %v2908, 1
        %v2913 = vsel %vm587, %v2911, %v2912
        %v2915 = vadd.f32 %v2830, %v2913
        %s2916 = sld [smem:[#allocation7 + $0x11a]]
        %v2917 = vstv %s2916
        %v2918 = vmul.f32 %v2917, %v395
        %v2919 = vmul.f32 %v2917, %v396
        %v2922 = vrot.slane %v2918, 1
        %v2923 = vrot.slane %v2919, 1
        %v2924 = vsel %vm587, %v2922, %v2923
        %v2926 = vadd.f32 %v2838, %v2924
        %s2927 = sld [smem:[#allocation7 + $0x1f]]
        %v2928 = vstv %s2927
        %v2929 = vmul.f32 %v2928, %v395
        %v2930 = vmul.f32 %v2928, %v396
        %v2933 = vrot.slane %v2929, 1
        %v2934 = vrot.slane %v2930, 1
        %v2935 = vsel %vm587, %v2933, %v2934
        %2936 = vrot.lane.b32.xlu0 %v2935, 127
        %v2937 = vpop.permute.xlu0 %2936
        %v2939 = vadd.f32 %v2849, %v2937
        %s2940 = sld [smem:[#allocation7 + $0x43]]
        %v2941 = vstv %s2940
        %v2942 = vmul.f32 %v2941, %v395
        %v2943 = vmul.f32 %v2941, %v396
        %v2946 = vrot.slane %v2942, 1
        %v2947 = vrot.slane %v2943, 1
        %v2948 = vsel %vm587, %v2946, %v2947
        %2949 = vrot.lane.b32.xlu0 %v2948, 127
        %v2950 = vpop.permute.xlu0 %2949
        %v2952 = vadd.f32 %v2860, %v2950
        %s2953 = sld [smem:[#allocation7 + $0x67]]
        %v2954 = vstv %s2953
        %v2955 = vmul.f32 %v2954, %v395
        %v2956 = vmul.f32 %v2954, %v396
        %v2959 = vrot.slane %v2955, 1
        %v2960 = vrot.slane %v2956, 1
        %v2961 = vsel %vm587, %v2959, %v2960
        %2962 = vrot.lane.b32.xlu0 %v2961, 127
        %v2963 = vpop.permute.xlu0 %2962
        %v2965 = vadd.f32 %v2871, %v2963
        %s2966 = sld [smem:[#allocation7 + $0x8b]]
        %v2967 = vstv %s2966
        %v2968 = vmul.f32 %v2967, %v395
        %v2969 = vmul.f32 %v2967, %v396
        %v2972 = vrot.slane %v2968, 1
        %v2973 = vrot.slane %v2969, 1
        %v2974 = vsel %vm587, %v2972, %v2973
        %2975 = vrot.lane.b32.xlu0 %v2974, 127
        %v2976 = vpop.permute.xlu0 %2975
        %v2978 = vadd.f32 %v2882, %v2976
        %s2979 = sld [smem:[#allocation7 + $0xaf]]
        %v2980 = vstv %s2979
        %v2981 = vmul.f32 %v2980, %v395
        %v2982 = vmul.f32 %v2980, %v396
        %v2985 = vrot.slane %v2981, 1
        %v2986 = vrot.slane %v2982, 1
        %v2987 = vsel %vm587, %v2985, %v2986
        %2988 = vrot.lane.b32.xlu0 %v2987, 127
        %v2989 = vpop.permute.xlu0 %2988
        %v2991 = vadd.f32 %v2893, %v2989
        %s2992 = sld [smem:[#allocation7 + $0xd3]]
        %v2993 = vstv %s2992
        %v2994 = vmul.f32 %v2993, %v395
        %v2995 = vmul.f32 %v2993, %v396
        %v2998 = vrot.slane %v2994, 1
        %v2999 = vrot.slane %v2995, 1
        %v3000 = vsel %vm587, %v2998, %v2999
        %3001 = vrot.lane.b32.xlu0 %v3000, 127
        %v3002 = vpop.permute.xlu0 %3001
        %v3004 = vadd.f32 %v2904, %v3002
        %s3005 = sld [smem:[#allocation7 + $0xf7]]
        %v3006 = vstv %s3005
        %v3007 = vmul.f32 %v3006, %v395
        %v3008 = vmul.f32 %v3006, %v396
        %v3011 = vrot.slane %v3007, 1
        %v3012 = vrot.slane %v3008, 1
        %v3013 = vsel %vm587, %v3011, %v3012
        %3014 = vrot.lane.b32.xlu0 %v3013, 127
        %v3015 = vpop.permute.xlu0 %3014
        %v3017 = vadd.f32 %v2915, %v3015
        %s3018 = sld [smem:[#allocation7 + $0x11b]]
        %v3019 = vstv %s3018
        %v3020 = vmul.f32 %v3019, %v395
        %v3021 = vmul.f32 %v3019, %v396
        %v3024 = vrot.slane %v3020, 1
        %v3025 = vrot.slane %v3021, 1
        %v3026 = vsel %vm587, %v3024, %v3025
        %3027 = vrot.lane.b32.xlu0 %v3026, 127
        %v3028 = vpop.permute.xlu0 %3027
        %v3030 = vadd.f32 %v2926, %v3028
        %s3031 = sld [smem:[#allocation7 + $0x20]]
        %v3032 = vstv %s3031
        %v3033 = vmul.f32 %v3032, %v395
        %v3034 = vmul.f32 %v3032, %v396
        %v3037 = vrot.slane %v3033, 1
        %v3038 = vrot.slane %v3034, 1
        %v3039 = vsel %vm587, %v3037, %v3038
        %3040 = vrot.lane.b32.xlu0 %v3039, 126
        %v3041 = vpop.permute.xlu0 %3040
        %v3043 = vadd.f32 %v2939, %v3041
        %s3044 = sld [smem:[#allocation7 + $0x44]]
        %v3045 = vstv %s3044
        %v3046 = vmul.f32 %v3045, %v395
        %v3047 = vmul.f32 %v3045, %v396
        %v3050 = vrot.slane %v3046, 1
        %v3051 = vrot.slane %v3047, 1
        %v3052 = vsel %vm587, %v3050, %v3051
        %3053 = vrot.lane.b32.xlu0 %v3052, 126
        %v3054 = vpop.permute.xlu0 %3053
        %v3056 = vadd.f32 %v2952, %v3054
        %s3057 = sld [smem:[#allocation7 + $0x68]]
        %v3058 = vstv %s3057
        %v3059 = vmul.f32 %v3058, %v395
        %v3060 = vmul.f32 %v3058, %v396
        %v3063 = vrot.slane %v3059, 1
        %v3064 = vrot.slane %v3060, 1
        %v3065 = vsel %vm587, %v3063, %v3064
        %3066 = vrot.lane.b32.xlu0 %v3065, 126
        %v3067 = vpop.permute.xlu0 %3066
        %v3069 = vadd.f32 %v2965, %v3067
        %s3070 = sld [smem:[#allocation7 + $0x8c]]
        %v3071 = vstv %s3070
        %v3072 = vmul.f32 %v3071, %v395
        %v3073 = vmul.f32 %v3071, %v396
        %v3076 = vrot.slane %v3072, 1
        %v3077 = vrot.slane %v3073, 1
        %v3078 = vsel %vm587, %v3076, %v3077
        %3079 = vrot.lane.b32.xlu0 %v3078, 126
        %v3080 = vpop.permute.xlu0 %3079
        %v3082 = vadd.f32 %v2978, %v3080
        %s3083 = sld [smem:[#allocation7 + $0xb0]]
        %v3084 = vstv %s3083
        %v3085 = vmul.f32 %v3084, %v395
        %v3086 = vmul.f32 %v3084, %v396
        %v3089 = vrot.slane %v3085, 1
        %v3090 = vrot.slane %v3086, 1
        %v3091 = vsel %vm587, %v3089, %v3090
        %3092 = vrot.lane.b32.xlu0 %v3091, 126
        %v3093 = vpop.permute.xlu0 %3092
        %v3095 = vadd.f32 %v2991, %v3093
        %s3096 = sld [smem:[#allocation7 + $0xd4]]
        %v3097 = vstv %s3096
        %v3098 = vmul.f32 %v3097, %v395
        %v3099 = vmul.f32 %v3097, %v396
        %v3102 = vrot.slane %v3098, 1
        %v3103 = vrot.slane %v3099, 1
        %v3104 = vsel %vm587, %v3102, %v3103
        %3105 = vrot.lane.b32.xlu0 %v3104, 126
        %v3106 = vpop.permute.xlu0 %3105
        %v3108 = vadd.f32 %v3004, %v3106
        %s3109 = sld [smem:[#allocation7 + $0xf8]]
        %v3110 = vstv %s3109
        %v3111 = vmul.f32 %v3110, %v395
        %v3112 = vmul.f32 %v3110, %v396
        %v3115 = vrot.slane %v3111, 1
        %v3116 = vrot.slane %v3112, 1
        %v3117 = vsel %vm587, %v3115, %v3116
        %3118 = vrot.lane.b32.xlu0 %v3117, 126
        %v3119 = vpop.permute.xlu0 %3118
        %v3121 = vadd.f32 %v3017, %v3119
        %s3122 = sld [smem:[#allocation7 + $0x11c]]
        %v3123 = vstv %s3122
        %v3124 = vmul.f32 %v3123, %v395
        %v3125 = vmul.f32 %v3123, %v396
        %v3128 = vrot.slane %v3124, 1
        %v3129 = vrot.slane %v3125, 1
        %v3130 = vsel %vm587, %v3128, %v3129
        %3131 = vrot.lane.b32.xlu0 %v3130, 126
        %v3132 = vpop.permute.xlu0 %3131
        %v3134 = vadd.f32 %v3030, %v3132
        %s3135 = sld [smem:[#allocation7 + $0x21]]
        %v3136 = vstv %s3135
        %v3137 = vmul.f32 %v3136, %v395
        %v3138 = vmul.f32 %v3136, %v396
        %v3141 = vrot.slane %v3137, 2
        %v3142 = vrot.slane %v3138, 2
        %v3143 = vsel %vm884, %v3141, %v3142
        %v3145 = vadd.f32 %v3043, %v3143
        %s3146 = sld [smem:[#allocation7 + $0x45]]
        %v3147 = vstv %s3146
        %v3148 = vmul.f32 %v3147, %v395
        %v3149 = vmul.f32 %v3147, %v396
        %v3152 = vrot.slane %v3148, 2
        %v3153 = vrot.slane %v3149, 2
        %v3154 = vsel %vm884, %v3152, %v3153
        %v3156 = vadd.f32 %v3056, %v3154
        %s3157 = sld [smem:[#allocation7 + $0x69]]
        %v3158 = vstv %s3157
        %v3159 = vmul.f32 %v3158, %v395
        %v3160 = vmul.f32 %v3158, %v396
        %v3163 = vrot.slane %v3159, 2
        %v3164 = vrot.slane %v3160, 2
        %v3165 = vsel %vm884, %v3163, %v3164
        %v3167 = vadd.f32 %v3069, %v3165
        %s3168 = sld [smem:[#allocation7 + $0x8d]]
        %v3169 = vstv %s3168
        %v3170 = vmul.f32 %v3169, %v395
        %v3171 = vmul.f32 %v3169, %v396
        %v3174 = vrot.slane %v3170, 2
        %v3175 = vrot.slane %v3171, 2
        %v3176 = vsel %vm884, %v3174, %v3175
        %v3178 = vadd.f32 %v3082, %v3176
        %s3179 = sld [smem:[#allocation7 + $0xb1]]
        %v3180 = vstv %s3179
        %v3181 = vmul.f32 %v3180, %v395
        %v3182 = vmul.f32 %v3180, %v396
        %v3185 = vrot.slane %v3181, 2
        %v3186 = vrot.slane %v3182, 2
        %v3187 = vsel %vm884, %v3185, %v3186
        %v3189 = vadd.f32 %v3095, %v3187
        %s3190 = sld [smem:[#allocation7 + $0xd5]]
        %v3191 = vstv %s3190
        %v3192 = vmul.f32 %v3191, %v395
        %v3193 = vmul.f32 %v3191, %v396
        %v3196 = vrot.slane %v3192, 2
        %v3197 = vrot.slane %v3193, 2
        %v3198 = vsel %vm884, %v3196, %v3197
        %v3200 = vadd.f32 %v3108, %v3198
        %s3201 = sld [smem:[#allocation7 + $0xf9]]
        %v3202 = vstv %s3201
        %v3203 = vmul.f32 %v3202, %v395
        %v3204 = vmul.f32 %v3202, %v396
        %v3207 = vrot.slane %v3203, 2
        %v3208 = vrot.slane %v3204, 2
        %v3209 = vsel %vm884, %v3207, %v3208
        %v3211 = vadd.f32 %v3121, %v3209
        %s3212 = sld [smem:[#allocation7 + $0x11d]]
        %v3213 = vstv %s3212
        %v3214 = vmul.f32 %v3213, %v395
        %v3215 = vmul.f32 %v3213, %v396
        %v3218 = vrot.slane %v3214, 2
        %v3219 = vrot.slane %v3215, 2
        %v3220 = vsel %vm884, %v3218, %v3219
        %v3222 = vadd.f32 %v3134, %v3220
        %s3223 = sld [smem:[#allocation7 + $0x22]]
        %v3224 = vstv %s3223
        %v3225 = vmul.f32 %v3224, %v395
        %v3226 = vmul.f32 %v3224, %v396
        %v3229 = vrot.slane %v3225, 2
        %v3230 = vrot.slane %v3226, 2
        %v3231 = vsel %vm884, %v3229, %v3230
        %3232 = vrot.lane.b32.xlu0 %v3231, 127
        %v3233 = vpop.permute.xlu0 %3232
        %v3235 = vadd.f32 %v3145, %v3233
        %s3236 = sld [smem:[#allocation7 + $0x46]]
        %v3237 = vstv %s3236
        %v3238 = vmul.f32 %v3237, %v395
        %v3239 = vmul.f32 %v3237, %v396
        %v3242 = vrot.slane %v3238, 2
        %v3243 = vrot.slane %v3239, 2
        %v3244 = vsel %vm884, %v3242, %v3243
        %3245 = vrot.lane.b32.xlu0 %v3244, 127
        %v3246 = vpop.permute.xlu0 %3245
        %v3248 = vadd.f32 %v3156, %v3246
        %s3249 = sld [smem:[#allocation7 + $0x6a]]
        %v3250 = vstv %s3249
        %v3251 = vmul.f32 %v3250, %v395
        %v3252 = vmul.f32 %v3250, %v396
        %v3255 = vrot.slane %v3251, 2
        %v3256 = vrot.slane %v3252, 2
        %v3257 = vsel %vm884, %v3255, %v3256
        %3258 = vrot.lane.b32.xlu0 %v3257, 127
        %v3259 = vpop.permute.xlu0 %3258
        %v3261 = vadd.f32 %v3167, %v3259
        %s3262 = sld [smem:[#allocation7 + $0x8e]]
        %v3263 = vstv %s3262
        %v3264 = vmul.f32 %v3263, %v395
        %v3265 = vmul.f32 %v3263, %v396
        %v3268 = vrot.slane %v3264, 2
        %v3269 = vrot.slane %v3265, 2
        %v3270 = vsel %vm884, %v3268, %v3269
        %3271 = vrot.lane.b32.xlu0 %v3270, 127
        %v3272 = vpop.permute.xlu0 %3271
        %v3274 = vadd.f32 %v3178, %v3272
        %s3275 = sld [smem:[#allocation7 + $0xb2]]
        %v3276 = vstv %s3275
        %v3277 = vmul.f32 %v3276, %v395
        %v3278 = vmul.f32 %v3276, %v396
        %v3281 = vrot.slane %v3277, 2
        %v3282 = vrot.slane %v3278, 2
        %v3283 = vsel %vm884, %v3281, %v3282
        %3284 = vrot.lane.b32.xlu0 %v3283, 127
        %v3285 = vpop.permute.xlu0 %3284
        %v3287 = vadd.f32 %v3189, %v3285
        %s3288 = sld [smem:[#allocation7 + $0xd6]]
        %v3289 = vstv %s3288
        %v3290 = vmul.f32 %v3289, %v395
        %v3291 = vmul.f32 %v3289, %v396
        %v3294 = vrot.slane %v3290, 2
        %v3295 = vrot.slane %v3291, 2
        %v3296 = vsel %vm884, %v3294, %v3295
        %3297 = vrot.lane.b32.xlu0 %v3296, 127
        %v3298 = vpop.permute.xlu0 %3297
        %v3300 = vadd.f32 %v3200, %v3298
        %s3301 = sld [smem:[#allocation7 + $0xfa]]
        %v3302 = vstv %s3301
        %v3303 = vmul.f32 %v3302, %v395
        %v3304 = vmul.f32 %v3302, %v396
        %v3307 = vrot.slane %v3303, 2
        %v3308 = vrot.slane %v3304, 2
        %v3309 = vsel %vm884, %v3307, %v3308
        %3310 = vrot.lane.b32.xlu0 %v3309, 127
        %v3311 = vpop.permute.xlu0 %3310
        %v3313 = vadd.f32 %v3211, %v3311
        %s3314 = sld [smem:[#allocation7 + $0x11e]]
        %v3315 = vstv %s3314
        %v3316 = vmul.f32 %v3315, %v395
        %v3317 = vmul.f32 %v3315, %v396
        %v3320 = vrot.slane %v3316, 2
        %v3321 = vrot.slane %v3317, 2
        %v3322 = vsel %vm884, %v3320, %v3321
        %3323 = vrot.lane.b32.xlu0 %v3322, 127
        %v3324 = vpop.permute.xlu0 %3323
        %v3326 = vadd.f32 %v3222, %v3324
        %s3327 = sld [smem:[#allocation7 + $0x23]]
        %v3328 = vstv %s3327
        %v3329 = vmul.f32 %v3328, %v395
        %v3330 = vmul.f32 %v3328, %v396
        %v3333 = vrot.slane %v3329, 2
        %v3334 = vrot.slane %v3330, 2
        %v3335 = vsel %vm884, %v3333, %v3334
        %3336 = vrot.lane.b32.xlu0 %v3335, 126
        %v3337 = vpop.permute.xlu0 %3336
        %v3339 = vadd.f32 %v3235, %v3337
        %s3340 = sld [smem:[#allocation7 + $0x47]]
        %v3341 = vstv %s3340
        %v3342 = vmul.f32 %v3341, %v395
        %v3343 = vmul.f32 %v3341, %v396
        %v3346 = vrot.slane %v3342, 2
        %v3347 = vrot.slane %v3343, 2
        %v3348 = vsel %vm884, %v3346, %v3347
        %3349 = vrot.lane.b32.xlu0 %v3348, 126
        %v3350 = vpop.permute.xlu0 %3349
        %v3352 = vadd.f32 %v3248, %v3350
        %s3353 = sld [smem:[#allocation7 + $0x6b]]
        %v3354 = vstv %s3353
        %v3355 = vmul.f32 %v3354, %v395
        %v3356 = vmul.f32 %v3354, %v396
        %v3359 = vrot.slane %v3355, 2
        %v3360 = vrot.slane %v3356, 2
        %v3361 = vsel %vm884, %v3359, %v3360
        %3362 = vrot.lane.b32.xlu0 %v3361, 126
        %v3363 = vpop.permute.xlu0 %3362
        %v3365 = vadd.f32 %v3261, %v3363
        %s3366 = sld [smem:[#allocation7 + $0x8f]]
        %v3367 = vstv %s3366
        %v3368 = vmul.f32 %v3367, %v395
        %v3369 = vmul.f32 %v3367, %v396
        %v3372 = vrot.slane %v3368, 2
        %v3373 = vrot.slane %v3369, 2
        %v3374 = vsel %vm884, %v3372, %v3373
        %3375 = vrot.lane.b32.xlu0 %v3374, 126
        %v3376 = vpop.permute.xlu0 %3375
        %v3378 = vadd.f32 %v3274, %v3376
        %s3379 = sld [smem:[#allocation7 + $0xb3]]
        %v3380 = vstv %s3379
        %v3381 = vmul.f32 %v3380, %v395
        %v3382 = vmul.f32 %v3380, %v396
        %v3385 = vrot.slane %v3381, 2
        %v3386 = vrot.slane %v3382, 2
        %v3387 = vsel %vm884, %v3385, %v3386
        %3388 = vrot.lane.b32.xlu0 %v3387, 126
        %v3389 = vpop.permute.xlu0 %3388
        %v3391 = vadd.f32 %v3287, %v3389
        %s3392 = sld [smem:[#allocation7 + $0xd7]]
        %v3393 = vstv %s3392
        %v3394 = vmul.f32 %v3393, %v395
        %v3395 = vmul.f32 %v3393, %v396
        %v3398 = vrot.slane %v3394, 2
        %v3399 = vrot.slane %v3395, 2
        %v3400 = vsel %vm884, %v3398, %v3399
        %3401 = vrot.lane.b32.xlu0 %v3400, 126
        %v3402 = vpop.permute.xlu0 %3401
        %v3404 = vadd.f32 %v3300, %v3402
        %s3405 = sld [smem:[#allocation7 + $0xfb]]
        %v3406 = vstv %s3405
        %v3407 = vmul.f32 %v3406, %v395
        %v3408 = vmul.f32 %v3406, %v396
        %v3411 = vrot.slane %v3407, 2
        %v3412 = vrot.slane %v3408, 2
        %v3413 = vsel %vm884, %v3411, %v3412
        %3414 = vrot.lane.b32.xlu0 %v3413, 126
        %v3415 = vpop.permute.xlu0 %3414
        %v3417 = vadd.f32 %v3313, %v3415
        %s3418 = sld [smem:[#allocation7 + $0x11f]]
        %v3419 = vstv %s3418
        %v3420 = vmul.f32 %v3419, %v395
        %v3421 = vmul.f32 %v3419, %v396
        %v3424 = vrot.slane %v3420, 2
        %v3425 = vrot.slane %v3421, 2
        %v3426 = vsel %vm884, %v3424, %v3425
        %3427 = vrot.lane.b32.xlu0 %v3426, 126
        %v3428 = vpop.permute.xlu0 %3427
        %v3430 = vadd.f32 %v3326, %v3428
        %vm3431 = vcmask 130048
        %3432 = vst.msk [vmem:[%s257] sm:$0xff] %vm3431, %v3339
        %s3433 = scalar_lea.vmem %s257, 8 [#allocation9]
        %3434 = vst.msk [vmem:[%s3433] sm:$0xff] %vm3431, %v3352
        %s3435 = scalar_lea.vmem %s257, 16 [#allocation9]
        %3436 = vst.msk [vmem:[%s3435] sm:$0xff] %vm3431, %v3365
        %s3437 = scalar_lea.vmem %s257, 24 [#allocation9]
        %3438 = vst.msk [vmem:[%s3437] sm:$0xff] %vm3431, %v3378
        %s3439 = scalar_lea.vmem %s257, 32 [#allocation9]
        %3440 = vst.msk [vmem:[%s3439] sm:$0xff] %vm3431, %v3391
        %s3441 = scalar_lea.vmem %s257, 40 [#allocation9]
        %3442 = vst.msk [vmem:[%s3441] sm:$0xff] %vm3431, %v3404
        %s3443 = scalar_lea.vmem %s257, 48 [#allocation9]
        %3444 = vst.msk [vmem:[%s3443] sm:$0xff] %vm3431, %v3417
        %s3445 = scalar_lea.vmem %s257, 56 [#allocation9]
        %3446 = vst.msk [vmem:[%s3445] sm:$0xff] %vm3431, %v3430
        %v3447 = vsel %vm3431, %v3339, 0.0
        %3448 = vadd.xlane.f32.xlu0 %v3447
        %v3449 = vpop.xlane.xlu0 %3448
        %v3450 = vrot.slane %v3449, 4
        %v3451 = vadd.f32 %v3449, %v3450
        %v3452 = vrot.slane %v3451, 2
        %v3453 = vadd.f32 %v3451, %v3452
        %v3454 = vrot.slane %v3453, 1
        %v3455 = vadd.f32 %v3453, %v3454
        %v3456 = vsel %vm3431, %v3352, 0.0
        %3457 = vadd.xlane.f32.xlu0 %v3456
        %v3458 = vpop.xlane.xlu0 %3457
        %v3459 = vrot.slane %v3458, 4
        %v3460 = vadd.f32 %v3458, %v3459
        %v3461 = vrot.slane %v3460, 2
        %v3462 = vadd.f32 %v3460, %v3461
        %v3463 = vrot.slane %v3462, 1
        %v3464 = vadd.f32 %v3462, %v3463
        %v3465 = vsel %vm3431, %v3365, 0.0
        %3466 = vadd.xlane.f32.xlu0 %v3465
        %v3467 = vpop.xlane.xlu0 %3466
        %v3468 = vrot.slane %v3467, 4
        %v3469 = vadd.f32 %v3467, %v3468
        %v3470 = vrot.slane %v3469, 2
        %v3471 = vadd.f32 %v3469, %v3470
        %v3472 = vrot.slane %v3471, 1
        %v3473 = vadd.f32 %v3471, %v3472
        %v3474 = vsel %vm3431, %v3378, 0.0
        %3475 = vadd.xlane.f32.xlu0 %v3474
        %v3476 = vpop.xlane.xlu0 %3475
        %v3477 = vrot.slane %v3476, 4
        %v3478 = vadd.f32 %v3476, %v3477
        %v3479 = vrot.slane %v3478, 2
        %v3480 = vadd.f32 %v3478, %v3479
        %v3481 = vrot.slane %v3480, 1
        %v3482 = vadd.f32 %v3480, %v3481
        %v3483 = vsel %vm3431, %v3391, 0.0
        %3484 = vadd.xlane.f32.xlu0 %v3483
        %v3485 = vpop.xlane.xlu0 %3484
        %v3486 = vrot.slane %v3485, 4
        %v3487 = vadd.f32 %v3485, %v3486
        %v3488 = vrot.slane %v3487, 2
        %v3489 = vadd.f32 %v3487, %v3488
        %v3490 = vrot.slane %v3489, 1
        %v3491 = vadd.f32 %v3489, %v3490
        %v3492 = vsel %vm3431, %v3404, 0.0
        %3493 = vadd.xlane.f32.xlu0 %v3492
        %v3494 = vpop.xlane.xlu0 %3493
        %v3495 = vrot.slane %v3494, 4
        %v3496 = vadd.f32 %v3494, %v3495
        %v3497 = vrot.slane %v3496, 2
        %v3498 = vadd.f32 %v3496, %v3497
        %v3499 = vrot.slane %v3498, 1
        %v3500 = vadd.f32 %v3498, %v3499
        %v3501 = vsel %vm3431, %v3417, 0.0
        %3502 = vadd.xlane.f32.xlu0 %v3501
        %v3503 = vpop.xlane.xlu0 %3502
        %v3504 = vrot.slane %v3503, 4
        %v3505 = vadd.f32 %v3503, %v3504
        %v3506 = vrot.slane %v3505, 2
        %v3507 = vadd.f32 %v3505, %v3506
        %v3508 = vrot.slane %v3507, 1
        %v3509 = vadd.f32 %v3507, %v3508
        %v3510 = vsel %vm3431, %v3430, 0.0
        %3511 = vadd.xlane.f32.xlu0 %v3510
        %v3512 = vpop.xlane.xlu0 %3511
        %v3513 = vrot.slane %v3512, 4
        %v3514 = vadd.f32 %v3512, %v3513
        %v3515 = vrot.slane %v3514, 2
        %v3516 = vadd.f32 %v3514, %v3515
        %v3517 = vrot.slane %v3516, 1
        %v3518 = vadd.f32 %v3516, %v3517
        %v3519 = vsel %vm338, %v3455, %v3464
        %vm3520 = vcmask 1041408
        %v3521 = vsel %vm3520, %v3519, %v3473
        %vm3522 = vcmask 1042432
        %v3523 = vsel %vm3522, %v3521, %v3482
        %vm3524 = vcmask 1043456
        %v3525 = vsel %vm3524, %v3523, %v3491
        %vm3526 = vcmask 1044480
        %v3527 = vsel %vm3526, %v3525, %v3500
        %v3528 = vsel %vm884, %v3527, %v3509
        %v3529 = vsel %vm587, %v3528, %v3518
        %v3530 = vmul.f32 %v3339, %v3339
        %v3531 = vsel %vm3431, %v3530, 0.0
        %3532 = vadd.xlane.f32.xlu0 %v3531
        %v3533 = vpop.xlane.xlu0 %3532
        %v3534 = vrot.slane %v3533, 4
        %v3535 = vadd.f32 %v3533, %v3534
        %v3536 = vrot.slane %v3535, 2
        %v3537 = vadd.f32 %v3535, %v3536
        %v3538 = vrot.slane %v3537, 1
        %v3539 = vadd.f32 %v3537, %v3538
        %v3540 = vmul.f32 %v3352, %v3352
        %v3541 = vsel %vm3431, %v3540, 0.0
        %3542 = vadd.xlane.f32.xlu0 %v3541
        %v3543 = vpop.xlane.xlu0 %3542
        %v3544 = vrot.slane %v3543, 4
        %v3545 = vadd.f32 %v3543, %v3544
        %v3546 = vrot.slane %v3545, 2
        %v3547 = vadd.f32 %v3545, %v3546
        %v3548 = vrot.slane %v3547, 1
        %v3549 = vadd.f32 %v3547, %v3548
        %v3550 = vmul.f32 %v3365, %v3365
        %v3551 = vsel %vm3431, %v3550, 0.0
        %3552 = vadd.xlane.f32.xlu0 %v3551
        %v3553 = vpop.xlane.xlu0 %3552
        %v3554 = vrot.slane %v3553, 4
        %v3555 = vadd.f32 %v3553, %v3554
        %v3556 = vrot.slane %v3555, 2
        %v3557 = vadd.f32 %v3555, %v3556
        %v3558 = vrot.slane %v3557, 1
        %v3559 = vadd.f32 %v3557, %v3558
        %v3560 = vmul.f32 %v3378, %v3378
        %v3561 = vsel %vm3431, %v3560, 0.0
        %3562 = vadd.xlane.f32.xlu0 %v3561
        %v3563 = vpop.xlane.xlu0 %3562
        %v3564 = vrot.slane %v3563, 4
        %v3565 = vadd.f32 %v3563, %v3564
        %v3566 = vrot.slane %v3565, 2
        %v3567 = vadd.f32 %v3565, %v3566
        %v3568 = vrot.slane %v3567, 1
        %v3569 = vadd.f32 %v3567, %v3568
        %v3570 = vmul.f32 %v3391, %v3391
        %v3571 = vsel %vm3431, %v3570, 0.0
        %3572 = vadd.xlane.f32.xlu0 %v3571
        %v3573 = vpop.xlane.xlu0 %3572
        %v3574 = vrot.slane %v3573, 4
        %v3575 = vadd.f32 %v3573, %v3574
        %v3576 = vrot.slane %v3575, 2
        %v3577 = vadd.f32 %v3575, %v3576
        %v3578 = vrot.slane %v3577, 1
        %v3579 = vadd.f32 %v3577, %v3578
        %v3580 = vmul.f32 %v3404, %v3404
        %v3581 = vsel %vm3431, %v3580, 0.0
        %3582 = vadd.xlane.f32.xlu0 %v3581
        %v3583 = vpop.xlane.xlu0 %3582
        %v3584 = vrot.slane %v3583, 4
        %v3585 = vadd.f32 %v3583, %v3584
        %v3586 = vrot.slane %v3585, 2
        %v3587 = vadd.f32 %v3585, %v3586
        %v3588 = vrot.slane %v3587, 1
        %v3589 = vadd.f32 %v3587, %v3588
        %v3590 = vmul.f32 %v3417, %v3417
        %v3591 = vsel %vm3431, %v3590, 0.0
        %3592 = vadd.xlane.f32.xlu0 %v3591
        %v3593 = vpop.xlane.xlu0 %3592
        %v3594 = vrot.slane %v3593, 4
        %v3595 = vadd.f32 %v3593, %v3594
        %v3596 = vrot.slane %v3595, 2
        %v3597 = vadd.f32 %v3595, %v3596
        %v3598 = vrot.slane %v3597, 1
        %v3599 = vadd.f32 %v3597, %v3598
        %v3600 = vmul.f32 %v3430, %v3430
        %v3601 = vsel %vm3431, %v3600, 0.0
        %3602 = vadd.xlane.f32.xlu0 %v3601
        %v3603 = vpop.xlane.xlu0 %3602
        %v3604 = vrot.slane %v3603, 4
        %v3605 = vadd.f32 %v3603, %v3604
        %v3606 = vrot.slane %v3605, 2
        %v3607 = vadd.f32 %v3605, %v3606
        %v3608 = vrot.slane %v3607, 1
        %v3609 = vadd.f32 %v3607, %v3608
        %v3610 = vsel %vm338, %v3539, %v3549
        %v3611 = vsel %vm3520, %v3610, %v3559
        %v3612 = vsel %vm3522, %v3611, %v3569
        %v3613 = vsel %vm3524, %v3612, %v3579
        %v3614 = vsel %vm3526, %v3613, %v3589
        %v3615 = vsel %vm884, %v3614, %v3599
        %v3616 = vsel %vm587, %v3615, %v3609
        %3618 = vrot.lane.b32.xlu0 %v3616, 1
        %v3619 = vpop.permute.xlu0 %3618
        %v3621 = vsel %vm379, %v3529, %v3619
        %vm3622 = vcmask 15360
        %3623 = vst.msk [vmem:[%s275] sm:$0xff] %vm3622, %v3621
        %s3624 = sand.u32 %s114, 1
        %s3625 = scalar_lea.sflag [#allocation4], %s3624
        %s3626 = sand.u32 %s114, 1
        %s3627 = smul.addr %s3626, 64
        %s3628 = scalar_lea.vmem [#allocation9], %s3627
        %p3629 = scmp.lt.s32.totalorder %s28, 1
        %s3630 = scalar_select %p3629, %s28, 1
        %p3631 = scmp.lt.s32.totalorder %s29, 1
        %s3632 = scalar_select %p3631, %s29, 1
        %s3633 = smul.addr %s3630, 2
        %s3634 = sadd.s32 %s3632, %s3633
        %s3635 = smul.addr %s3634, 8
        %s3636 = scalar_lea.vmem %s4, %s3635
        // Predicated region
        $region45: #{tpu_custom_call.1} parent=31 // pred_check
          %p3637 = pneg %p124
        $region46: #{tpu_custom_call.1} parent=31 // pred_check_branch
          %3639 = sbr.rel (%p3637) target = $region48
        $region47: #{tpu_custom_call.1} parent=31 // pred_region
          %s3641 = ssub.s32 1024, 1024
          %3642 = vsyncadd %s3625, %s3641
          %s3643 = smul.addr %s28, 16
          %s3644 = sadd.s32 %s29, %s3643
          %s3645 = smul.addr %s3644, 128
          %s3646 = scalar_lea.hbm %s3, %s3645
          %s3647 = sshll.u32 %s3628, 4
          %s3648 = int_to_ptr.vmem [resolvable:$true] %s3647
          %3653 = dma.vmem_to_hbm [thread:$0]  %s3648, 1024, %s3646, %s3625, 128, 256, 8
        $region48: #{tpu_custom_call.1} parent=31 // pred_fallthru
          _
        // Predicated region
        $region49: #{tpu_custom_call.1} parent=31 // pred_check
          %p3654 = pneg %p152
        $region50: #{tpu_custom_call.1} parent=31 // pred_check_branch
          %3656 = sbr.rel (%p3654) target = $region52
        $region51: #{tpu_custom_call.1} parent=31 // pred_region
          _
        $region52: #{tpu_custom_call.1} parent=31 // pred_fallthru
          _
      $region32: #{tpu_custom_call.1} parent=5 // pred_fallthru
        _
      %p3657 = scmp.le.s32.totalorder 2, %s19
      // Predicated region
      $region53: #{tpu_custom_call.1} parent=5 // pred_check
        %p3658 = pneg %p3657
      $region54: #{tpu_custom_call.1} parent=5 // pred_check_branch
        %3660 = sbr.rel (%p3658) target = $region56
      $region55: #{tpu_custom_call.1} parent=5 // pred_region
        %s3661 = ssub.s32 %s19, 2
        // Predicated region
        $region57: #{tpu_custom_call.1} parent=55 // pred_check
          %p3662 = pneg %p130
        $region58: #{tpu_custom_call.1} parent=55 // pred_check_branch
          %3664 = sbr.rel (%p3662) target = $region60
        $region59: #{tpu_custom_call.1} parent=55 // pred_region
          %s3665 = sand.u32 %s115, 1
          %s3666 = scalar_lea.sflag [#allocation4], %s3665
          %s3667 = sand.u32 %s115, 1
          %s3668 = smul.addr %s3667, 64
          %s3669 = scalar_lea.vmem [#allocation9], %s3668
          %3670 = dma.done %s3666, 1024
        $region60: #{tpu_custom_call.1} parent=55 // pred_fallthru
          _
        // Predicated region
        $region61: #{tpu_custom_call.1} parent=55 // pred_check
          %p3671 = pneg %p158
        $region62: #{tpu_custom_call.1} parent=55 // pred_check_branch
          %3673 = sbr.rel (%p3671) target = $region64
        $region63: #{tpu_custom_call.1} parent=55 // pred_region
          %p3674 = scmp.lt.s32.totalorder %s30, 1
          %s3675 = scalar_select %p3674, %s30, 1
          %p3676 = scmp.lt.s32.totalorder %s31, 1
          %s3677 = scalar_select %p3676, %s31, 1
          %s3678 = smul.addr %s3675, 2
          %s3679 = sadd.s32 %s3677, %s3678
          %s3680 = smul.addr %s3679, 8
          %s3681 = scalar_lea.vmem %s4, %s3680
        $region64: #{tpu_custom_call.1} parent=55 // pred_fallthru
          _
      $region56: #{tpu_custom_call.1} parent=5 // pred_fallthru
        _
    $region6: #{tpu_custom_call.1} parent=1 // loop_footer
      %s23 = sadd.s32 1, %s19
    $region7: #{tpu_custom_call.1} parent=1 // loop_footer_branch
      %18 = sbr.rel target = $region3
    $region8: #{tpu_custom_call.1} parent=1 // loop_exit
      _
    %3682 = vsyncpa [#allocation3], 1
    %s3683 = scalar_lea.sflag [#allocation3], 1
    %3684 = vsyncpa %s3683, 1
    %3685 = vsyncpa [#allocation4], 1
    %s3686 = scalar_lea.sflag [#allocation4], 1
    %3687 = vsyncpa %s3686, 1
    %3688 = vsyncpa [#allocation5], 1
    %s3689 = scalar_lea.sflag [#allocation5], 1
    %3690 = vsyncpa %s3689, 1
    %3691 = vsyncpa [#allocation6], 1
    %s3692 = scalar_lea.sflag [#allocation6], 1
    %3693 = vsyncpa %s3692, 1

</llo_original>
